<compile_context>
chip_gen: v6e
topology: v6e:2x2x1
jax: 0.10.0
libtpu: 0.0.40
codegen_flags: <defaults>
</compile_context>

<pallas_src>
import functools
import math

import jax
import jax.numpy as jnp
import numpy as np
from jax.experimental import pallas as pl
from jax.experimental.pallas import tpu as pltpu


# ---------------------------------------------------------------------------
# Elementwise helpers (run on VPU/EUP inside the kernel).
# ---------------------------------------------------------------------------
def _erf_approx(x):
    # Abramowitz & Stegun 7.1.26 rational approximation of erf, |err| <= 1.5e-7.
    a1, a2, a3, a4, a5 = 0.254829592, -0.284496736, 1.421413741, -1.453152027, 1.061405429
    p = 0.3275911
    ax = jnp.abs(x)
    t = 1.0 / (1.0 + p * ax)
    poly = ((((a5 * t + a4) * t + a3) * t + a2) * t + a1) * t
    y = 1.0 - poly * jnp.exp(-ax * ax)
    return jnp.where(x >= 0, y, -y)


def _gelu_exact(x):
    return 0.5 * x * (1.0 + _erf_approx(x * (1.0 / math.sqrt(2.0))))


def _layernorm(x, g, b, eps=1e-5):
    mu = jnp.mean(x, axis=-1, keepdims=True)
    var = jnp.mean((x - mu) ** 2, axis=-1, keepdims=True)
    return (x - mu) * jax.lax.rsqrt(var + eps) * g + b


# Row layout of the packed per-layer vector-parameter matrix "vec": (8, max(E, mlp))
_ROW_BQ, _ROW_BK, _ROW_BV, _ROW_BO, _ROW_LNG, _ROW_LNB, _ROW_B1, _ROW_B2 = range(8)


# ---------------------------------------------------------------------------
# One PerceiverAttention block, evaluated entirely inside the kernel.
# ---------------------------------------------------------------------------
def _attention_layer(x, q, wqkv, wo, w1, w2, vec, attn_sc, *,
                     n_heads, E, mlp, self_attn):
    d = E // n_heads
    scale = 1.0 / math.sqrt(d)

    bq = vec[_ROW_BQ:_ROW_BQ + 1, :E]
    bk = vec[_ROW_BK:_ROW_BK + 1, :E]
    bv = vec[_ROW_BV:_ROW_BV + 1, :E]
    bo = vec[_ROW_BO:_ROW_BO + 1, :E]
    ln_g = vec[_ROW_LNG:_ROW_LNG + 1, :E]
    ln_b = vec[_ROW_LNB:_ROW_LNB + 1, :E]
    b1 = vec[_ROW_B1:_ROW_B1 + 1, :mlp]
    b2 = vec[_ROW_B2:_ROW_B2 + 1, :E]

    # In-projections (packed QKV weight -> fewer, wider MXU pushes).
    if self_attn:
        qkv = jnp.dot(q, wqkv, preferred_element_type=jnp.float32)
        Q = qkv[:, :E] + bq
        K = qkv[:, E:2 * E] + bk
        V = qkv[:, 2 * E:] + bv
    else:
        Q = jnp.dot(q, wqkv[:, :E], preferred_element_type=jnp.float32) + bq
        kv = jnp.dot(x, wqkv[:, E:], preferred_element_type=jnp.float32)
        K = kv[:, :E] + bk
        V = kv[:, E:] + bv

    # Per-head scaled dot-product attention; head outputs land in a VMEM scratch
    # at static column slices (no lane-axis concatenate).
    for h in range(n_heads):
        sl = slice(h * d, (h + 1) * d)
        s = jax.lax.dot_general(Q[:, sl], K[:, sl], (((1,), (1,)), ((), ())),
                                preferred_element_type=jnp.float32) * scale
        s = s - jnp.max(s, axis=-1, keepdims=True)
        p = jnp.exp(s)
        p = p * pl.reciprocal(jnp.sum(p, axis=-1, keepdims=True), approx=True)
        attn_sc[:, sl] = jnp.dot(p, V[:, sl], preferred_element_type=jnp.float32)

    # Output projection + residual with the query stream.
    attn = jnp.dot(attn_sc[...], wo, preferred_element_type=jnp.float32) + bo
    resid = attn + q

    # LayerNorm -> Linear -> GELU -> Linear -> residual.
    y = _layernorm(resid, ln_g, ln_b)
    h1 = _gelu_exact(jnp.dot(y, w1, preferred_element_type=jnp.float32) + b1)
    h2 = jnp.dot(h1, w2, preferred_element_type=jnp.float32) + b2
    return h2 + resid


# ---------------------------------------------------------------------------
# Fused kernel: optional cross-attention + all latent-transformer layers.
# ---------------------------------------------------------------------------
def _perceiver_io_block_kernel(*refs, inner_ca, n_layers, trnfr_heads, E,
                               mlp_c, mlp_t):
    pos = 0
    if inner_ca:
        x_ref = refs[pos]; pos += 1
    l_ref = refs[pos]; pos += 1
    if inner_ca:
        cwqkv, cwo, cw1, cw2, cvec = refs[pos:pos + 5]; pos += 5
    twqkv, two, tw1, tw2, tvec = refs[pos:pos + 5]; pos += 5
    out_ref = refs[pos]
    attn_sc = refs[pos + 1]

    lat = l_ref[0]                       # (L, E) latent stream, resident in vregs
    if inner_ca:
        lat = _attention_layer(x_ref[0], lat, cwqkv[...], cwo[...], cw1[...],
                               cw2[...], cvec[...], attn_sc,
                               n_heads=1, E=E, mlp=mlp_c, self_attn=False)
    for i in range(n_layers):            # static unroll over latent layers
        lat = _attention_layer(lat, lat, twqkv[i], two[i], tw1[i], tw2[i],
                               tvec[i], attn_sc,
                               n_heads=trnfr_heads, E=E, mlp=mlp_t,
                               self_attn=True)
    out_ref[0] = lat.astype(out_ref.dtype)


def perceiver_io_block(x, l, params, *, trnfr_heads, inner_ca=True):
    """x: (B, S, E) byte-array stream, l: (B, L, E) latents -> (B, L, E)."""
    B, L, E = l.shape
    layers = params["layers"]
    n_layers = len(layers)
    mlp_t = layers[0]["w1"].shape[1]

    # Stack latent-layer weights along a leading layer axis: 5 operands total.
    t_wqkv = jnp.stack([lp["wqkv"] for lp in layers])
    t_wo = jnp.stack([lp["wo"] for lp in layers])
    t_w1 = jnp.stack([lp["w1"] for lp in layers])
    t_w2 = jnp.stack([lp["w2"] for lp in layers])
    t_vec = jnp.stack([lp["vec"] for lp in layers])

    def _full(shape):
        zeros = (0,) * len(shape)
        return pl.BlockSpec(shape, lambda b: zeros)

    operands, in_specs = [], []
    mlp_c = 0
    if inner_ca:
        S = x.shape[1]
        cp = params["cross"]
        mlp_c = cp["w1"].shape[1]
        operands.append(x)
        in_specs.append(pl.BlockSpec((1, S, E), lambda b: (b, 0, 0)))
    operands.append(l)
    in_specs.append(pl.BlockSpec((1, L, E), lambda b: (b, 0, 0)))
    if inner_ca:
        for arr in (cp["wqkv"], cp["wo"], cp["w1"], cp["w2"], cp["vec"]):
            operands.append(arr)
            in_specs.append(_full(arr.shape))
    for arr in (t_wqkv, t_wo, t_w1, t_w2, t_vec):
        operands.append(arr)
        in_specs.append(_full(arr.shape))

    kernel = functools.partial(
        _perceiver_io_block_kernel, inner_ca=inner_ca, n_layers=n_layers,
        trnfr_heads=trnfr_heads, E=E, mlp_c=mlp_c, mlp_t=mlp_t)

    return pl.pallas_call(
        kernel,
        out_shape=jax.ShapeDtypeStruct((B, L, E), l.dtype),
        grid=(B,),
        in_specs=in_specs,
        out_specs=pl.BlockSpec((1, L, E), lambda b: (b, 0, 0)),
        scratch_shapes=[pltpu.VMEM((L, E), jnp.float32)],
        compiler_params=pltpu.CompilerParams(dimension_semantics=("parallel",)),
    )(*operands)


# ---------------------------------------------------------------------------
# Deterministic synthetic parameter init (shapes from the nn.Module __init__),
# stored directly in the packed layout the kernel consumes.
# ---------------------------------------------------------------------------
def init_attention_params(key, embed_dim, mlp_dim):
    ks = jax.random.split(key, 10)
    n = lambda k, shape, s=0.08: jax.random.normal(k, shape, jnp.float32) * s
    E = embed_dim
    W = max(E, mlp_dim)
    wq, wk, wv = n(ks[0], (E, E)), n(ks[1], (E, E)), n(ks[2], (E, E))
    vec = jnp.zeros((8, W), jnp.float32)
    vec = vec.at[_ROW_BQ, :E].set(n(ks[3], (E,)))
    vec = vec.at[_ROW_BK, :E].set(n(ks[4], (E,)))
    vec = vec.at[_ROW_BV, :E].set(n(ks[5], (E,)))
    vec = vec.at[_ROW_BO, :E].set(n(ks[7], (E,)))
    vec = vec.at[_ROW_LNG, :E].set(jnp.ones((E,), jnp.float32))
    # ln2_b / b1 / b2 rows stay zero (PyTorch default zero-init biases).
    return {
        "wqkv": jnp.concatenate([wq, wk, wv], axis=1),   # (E, 3E)
        "wo": n(ks[6], (E, E)),
        "w1": n(ks[8], (E, mlp_dim)),
        "w2": n(ks[9], (mlp_dim, E)),
        "vec": vec,                                       # (8, max(E, mlp))
    }


def init_perceiver_io_block_params(key, embed_dim, attn_mlp_dim, trnfr_mlp_dim,
                                   trnfr_layers, inner_ca=True):
    keys = jax.random.split(key, trnfr_layers + 1)
    params = {
        "layers": [init_attention_params(keys[i + 1], embed_dim, trnfr_mlp_dim)
                   for i in range(trnfr_layers)]
    }
    if inner_ca:
        params["cross"] = init_attention_params(keys[0], embed_dim, attn_mlp_dim)
    return params


# ---------------------------------------------------------------------------
# Pure-JAX reference (correctness check of the Pallas path).
# ---------------------------------------------------------------------------
def _ref_attention(x, q, p, n_heads):
    B, S, E = x.shape
    L = q.shape[1]
    d = E // n_heads
    hp = jax.lax.Precision.HIGHEST
    mlp = p["w1"].shape[1]
    wqkv, vec = p["wqkv"], p["vec"]
    wq, wk, wv = wqkv[:, :E], wqkv[:, E:2 * E], wqkv[:, 2 * E:]
    bq, bk, bv = vec[_ROW_BQ, :E], vec[_ROW_BK, :E], vec[_ROW_BV, :E]
    bo, ln_g, ln_b = vec[_ROW_BO, :E], vec[_ROW_LNG, :E], vec[_ROW_LNB, :E]
    b1, b2 = vec[_ROW_B1, :mlp], vec[_ROW_B2, :E]

    Q = jnp.einsum("ble,ef->blf", q, wq, precision=hp) + bq
    K = jnp.einsum("bse,ef->bsf", x, wk, precision=hp) + bk
    V = jnp.einsum("bse,ef->bsf", x, wv, precision=hp) + bv
    Q = Q.reshape(B, L, n_heads, d).transpose(0, 2, 1, 3)
    K = K.reshape(B, S, n_heads, d).transpose(0, 2, 1, 3)
    V = V.reshape(B, S, n_heads, d).transpose(0, 2, 1, 3)
    s = jnp.einsum("bhld,bhsd->bhls", Q, K, precision=hp) / math.sqrt(d)
    a = jax.nn.softmax(s, axis=-1)
    o = jnp.einsum("bhls,bhsd->bhld", a, V, precision=hp)
    o = o.transpose(0, 2, 1, 3).reshape(B, L, E)
    o = jnp.einsum("ble,ef->blf", o, p["wo"], precision=hp) + bo
    resid = o + q
    y = _layernorm(resid, ln_g, ln_b)
    h1 = jnp.einsum("ble,em->blm", y, p["w1"], precision=hp) + b1
    h1 = 0.5 * h1 * (1.0 + jax.scipy.special.erf(h1 / math.sqrt(2.0)))
    h2 = jnp.einsum("blm,me->ble", h1, p["w2"], precision=hp) + b2
    return h2 + resid


def _ref_block(x, l, params, *, trnfr_heads, inner_ca=True):
    if inner_ca:
        l = _ref_attention(x, l, params["cross"], 1)
    for lp in params["layers"]:
        l = _ref_attention(l, l, lp, trnfr_heads)
    return l


if __name__ == "__main__":
    # Small config: embed_dim=32, attn_mlp_dim=64, trnfr_mlp_dim=64,
    # trnfr_heads=4, trnfr_layers=2, inner_ca=True.
    B, S, L, E = 2, 16, 8, 32
    attn_mlp_dim, trnfr_mlp_dim = 64, 64
    trnfr_heads, trnfr_layers = 4, 2

    key = jax.random.PRNGKey(0)
    kx, kl, kp = jax.random.split(key, 3)
    x = jax.random.normal(kx, (B, S, E), jnp.float32)   # input byte-array stream
    l = jax.random.normal(kl, (B, L, E), jnp.float32)   # latents
    params = init_perceiver_io_block_params(kp, E, attn_mlp_dim, trnfr_mlp_dim,
                                            trnfr_layers, inner_ca=True)

    out = perceiver_io_block(x, l, params, trnfr_heads=trnfr_heads, inner_ca=True)
    out = jax.block_until_ready(out)
    assert out.shape == (B, L, E)

    ref = jax.block_until_ready(
        _ref_block(x, l, params, trnfr_heads=trnfr_heads, inner_ca=True))
    np.testing.assert_allclose(np.asarray(out), np.asarray(ref), rtol=2e-3, atol=2e-3)

    print("KERNEL_OK")
</pallas_src>

<mosaic_0001>
module attributes {stable_mosaic.version = 11 : i64} {
  func.func @_perceiver_io_block_kernel(%arg0: i32, %arg1: memref<1x16x32xf32, #tpu.memory_space<vmem>>, %arg2: memref<1x8x32xf32, #tpu.memory_space<vmem>>, %arg3: memref<32x96xf32, #tpu.memory_space<vmem>>, %arg4: memref<32x32xf32, #tpu.memory_space<vmem>>, %arg5: memref<32x64xf32, #tpu.memory_space<vmem>>, %arg6: memref<64x32xf32, #tpu.memory_space<vmem>>, %arg7: memref<8x64xf32, #tpu.memory_space<vmem>>, %arg8: memref<2x32x96xf32, #tpu.memory_space<vmem>>, %arg9: memref<2x32x32xf32, #tpu.memory_space<vmem>>, %arg10: memref<2x32x64xf32, #tpu.memory_space<vmem>>, %arg11: memref<2x64x32xf32, #tpu.memory_space<vmem>>, %arg12: memref<2x8x64xf32, #tpu.memory_space<vmem>>, %arg13: memref<1x8x32xf32, #tpu.memory_space<vmem>>, %arg14: memref<8x32xf32, #tpu.memory_space<vmem>>) attributes {dimension_semantics = [#tpu.dimension_semantics<parallel>], iteration_bounds = array<i64: 2>, scalar_prefetch = 0 : i64, scratch_operands = 1 : i64, tpu.core_type = #tpu.core_type<tc>, window_params = [{transform_indices = @transform_0, window_bounds = array<i64: 1, 16, 32>}, {transform_indices = @transform_1, window_bounds = array<i64: 1, 8, 32>}, {pipeline_mode = #tpu.pipeline_mode<synchronous>, transform_indices = @transform_2, window_bounds = array<i64: 32, 96>}, {pipeline_mode = #tpu.pipeline_mode<synchronous>, transform_indices = @transform_3, window_bounds = array<i64: 32, 32>}, {pipeline_mode = #tpu.pipeline_mode<synchronous>, transform_indices = @transform_4, window_bounds = array<i64: 32, 64>}, {pipeline_mode = #tpu.pipeline_mode<synchronous>, transform_indices = @transform_5, window_bounds = array<i64: 64, 32>}, {pipeline_mode = #tpu.pipeline_mode<synchronous>, transform_indices = @transform_6, window_bounds = array<i64: 8, 64>}, {pipeline_mode = #tpu.pipeline_mode<synchronous>, transform_indices = @transform_7, window_bounds = array<i64: 2, 32, 96>}, {pipeline_mode = #tpu.pipeline_mode<synchronous>, transform_indices = @transform_8, window_bounds = array<i64: 2, 32, 32>}, {pipeline_mode = #tpu.pipeline_mode<synchronous>, transform_indices = @transform_9, window_bounds = array<i64: 2, 32, 64>}, {pipeline_mode = #tpu.pipeline_mode<synchronous>, transform_indices = @transform_10, window_bounds = array<i64: 2, 64, 32>}, {pipeline_mode = #tpu.pipeline_mode<synchronous>, transform_indices = @transform_11, window_bounds = array<i64: 2, 8, 64>}, {transform_indices = @transform_12, window_bounds = array<i64: 1, 8, 32>}]} {
    %c0 = arith.constant 0 : index
    %c0_0 = arith.constant 0 : index
    %c0_1 = arith.constant 0 : index
    %0 = vector.load %arg2[%c0, %c0_0, %c0_1] : memref<1x8x32xf32, #tpu.memory_space<vmem>>, vector<1x8x32xf32>
    %1 = vector.shape_cast %0 : vector<1x8x32xf32> to vector<8x32xf32>
    %c0_2 = arith.constant 0 : index
    %c0_3 = arith.constant 0 : index
    %c0_4 = arith.constant 0 : index
    %2 = vector.load %arg1[%c0_2, %c0_3, %c0_4] : memref<1x16x32xf32, #tpu.memory_space<vmem>>, vector<1x16x32xf32>
    %3 = vector.shape_cast %2 : vector<1x16x32xf32> to vector<16x32xf32>
    %c0_5 = arith.constant 0 : index
    %c0_6 = arith.constant 0 : index
    %4 = vector.load %arg3[%c0_5, %c0_6] : memref<32x96xf32, #tpu.memory_space<vmem>>, vector<32x96xf32>
    %c0_7 = arith.constant 0 : index
    %c0_8 = arith.constant 0 : index
    %5 = vector.load %arg4[%c0_7, %c0_8] : memref<32x32xf32, #tpu.memory_space<vmem>>, vector<32x32xf32>
    %c0_9 = arith.constant 0 : index
    %c0_10 = arith.constant 0 : index
    %6 = vector.load %arg5[%c0_9, %c0_10] : memref<32x64xf32, #tpu.memory_space<vmem>>, vector<32x64xf32>
    %c0_11 = arith.constant 0 : index
    %c0_12 = arith.constant 0 : index
    %7 = vector.load %arg6[%c0_11, %c0_12] : memref<64x32xf32, #tpu.memory_space<vmem>>, vector<64x32xf32>
    %c0_13 = arith.constant 0 : index
    %c0_14 = arith.constant 0 : index
    %8 = vector.load %arg7[%c0_13, %c0_14] : memref<8x64xf32, #tpu.memory_space<vmem>>, vector<8x64xf32>
    %9 = vector.extract_strided_slice %8 {offsets = [0, 0], sizes = [1, 32], strides = [1, 1]} : vector<8x64xf32> to vector<1x32xf32>
    %10 = vector.extract_strided_slice %8 {offsets = [1, 0], sizes = [1, 32], strides = [1, 1]} : vector<8x64xf32> to vector<1x32xf32>
    %11 = vector.extract_strided_slice %8 {offsets = [2, 0], sizes = [1, 32], strides = [1, 1]} : vector<8x64xf32> to vector<1x32xf32>
    %12 = vector.extract_strided_slice %8 {offsets = [3, 0], sizes = [1, 32], strides = [1, 1]} : vector<8x64xf32> to vector<1x32xf32>
    %13 = vector.extract_strided_slice %8 {offsets = [4, 0], sizes = [1, 32], strides = [1, 1]} : vector<8x64xf32> to vector<1x32xf32>
    %14 = vector.extract_strided_slice %8 {offsets = [5, 0], sizes = [1, 32], strides = [1, 1]} : vector<8x64xf32> to vector<1x32xf32>
    %15 = vector.extract_strided_slice %8 {offsets = [6, 0], sizes = [1, 64], strides = [1, 1]} : vector<8x64xf32> to vector<1x64xf32>
    %16 = vector.extract_strided_slice %8 {offsets = [7, 0], sizes = [1, 32], strides = [1, 1]} : vector<8x64xf32> to vector<1x32xf32>
    %17 = vector.extract_strided_slice %4 {offsets = [0, 0], sizes = [32, 32], strides = [1, 1]} : vector<32x96xf32> to vector<32x32xf32>
    %cst = arith.constant dense<0.000000e+00> : vector<8x32xf32>
    %18 = tpu.matmul %1, %17, %cst {dimension_numbers = #tpu.dot_dimension_numbers<[1], [0], [0], [1], [0, 0, 1, 1], [], []>} : vector<8x32xf32>, vector<32x32xf32>, vector<8x32xf32> -> vector<8x32xf32>
    %19 = vector.broadcast %9 : vector<1x32xf32> to vector<8x32xf32>
    %20 = arith.addf %18, %19 : vector<8x32xf32>
    %21 = vector.extract_strided_slice %4 {offsets = [0, 32], sizes = [32, 64], strides = [1, 1]} : vector<32x96xf32> to vector<32x64xf32>
    %cst_15 = arith.constant dense<0.000000e+00> : vector<16x64xf32>
    %22 = tpu.matmul %3, %21, %cst_15 {dimension_numbers = #tpu.dot_dimension_numbers<[1], [0], [0], [1], [0, 0, 1, 1], [], []>} : vector<16x32xf32>, vector<32x64xf32>, vector<16x64xf32> -> vector<16x64xf32>
    %23 = vector.extract_strided_slice %22 {offsets = [0, 0], sizes = [16, 32], strides = [1, 1]} : vector<16x64xf32> to vector<16x32xf32>
    %24 = vector.broadcast %10 : vector<1x32xf32> to vector<16x32xf32>
    %25 = arith.addf %23, %24 : vector<16x32xf32>
    %26 = vector.extract_strided_slice %22 {offsets = [0, 32], sizes = [16, 32], strides = [1, 1]} : vector<16x64xf32> to vector<16x32xf32>
    %27 = vector.broadcast %11 : vector<1x32xf32> to vector<16x32xf32>
    %28 = arith.addf %26, %27 : vector<16x32xf32>
    %cst_16 = arith.constant dense<0.000000e+00> : vector<8x16xf32>
    %29 = tpu.matmul %20, %25, %cst_16 {dimension_numbers = #tpu.dot_dimension_numbers<[1], [1], [0], [0], [0, 0, 1, 0], [], []>} : vector<8x32xf32>, vector<16x32xf32>, vector<8x16xf32> -> vector<8x16xf32>
    %cst_17 = arith.constant 0.176776692 : f32
    %30 = vector.broadcast %cst_17 : f32 to vector<8x16xf32>
    %31 = arith.mulf %29, %30 : vector<8x16xf32>
    %cst_18 = arith.constant dense<0xFF800000> : vector<8xf32>
    %32 = vector.multi_reduction <maximumf>, %31, %cst_18 [1] : vector<8x16xf32> to vector<8xf32>
    %33 = vector.shape_cast %32 : vector<8xf32> to vector<8x1xf32>
    %34 = vector.broadcast %33 : vector<8x1xf32> to vector<8x16xf32>
    %35 = arith.subf %31, %34 : vector<8x16xf32>
    %36 = math.exp %35 : vector<8x16xf32>
    %cst_19 = arith.constant dense<0.000000e+00> : vector<8xf32>
    %37 = vector.multi_reduction <add>, %36, %cst_19 [1] : vector<8x16xf32> to vector<8xf32>
    %38 = vector.shape_cast %37 : vector<8xf32> to vector<8x1xf32>
    %39 = tpu.reciprocal %38 {approx = true} : vector<8x1xf32> -> vector<8x1xf32>
    %40 = vector.broadcast %39 : vector<8x1xf32> to vector<8x16xf32>
    %41 = arith.mulf %36, %40 : vector<8x16xf32>
    %cst_20 = arith.constant dense<0.000000e+00> : vector<8x32xf32>
    %42 = tpu.matmul %41, %28, %cst_20 {dimension_numbers = #tpu.dot_dimension_numbers<[1], [0], [0], [1], [0, 0, 1, 1], [], []>} : vector<8x16xf32>, vector<16x32xf32>, vector<8x32xf32> -> vector<8x32xf32>
    %c0_21 = arith.constant 0 : index
    %c0_22 = arith.constant 0 : index
    %43 = vector.load %arg14[%c0_21, %c0_22] : memref<8x32xf32, #tpu.memory_space<vmem>>, vector<8x32xf32>
    tpu.vector_store %arg14[%c0_21, %c0_22], %42 {strides = array<i32>} : memref<8x32xf32, #tpu.memory_space<vmem>>, vector<8x32xf32>,
    %c0_23 = arith.constant 0 : index
    %c0_24 = arith.constant 0 : index
    %44 = vector.load %arg14[%c0_23, %c0_24] : memref<8x32xf32, #tpu.memory_space<vmem>>, vector<8x32xf32>
    %cst_25 = arith.constant dense<0.000000e+00> : vector<8x32xf32>
    %45 = tpu.matmul %44, %5, %cst_25 {dimension_numbers = #tpu.dot_dimension_numbers<[1], [0], [0], [1], [0, 0, 1, 1], [], []>} : vector<8x32xf32>, vector<32x32xf32>, vector<8x32xf32> -> vector<8x32xf32>
    %46 = vector.broadcast %12 : vector<1x32xf32> to vector<8x32xf32>
    %47 = arith.addf %45, %46 : vector<8x32xf32>
    %48 = arith.addf %47, %1 : vector<8x32xf32>
    %cst_26 = arith.constant dense<0.000000e+00> : vector<8xf32>
    %49 = vector.multi_reduction <add>, %48, %cst_26 [1] : vector<8x32xf32> to vector<8xf32>
    %50 = vector.shape_cast %49 : vector<8xf32> to vector<8x1xf32>
    %cst_27 = arith.constant 3.200000e+01 : f32
    %51 = vector.broadcast %cst_27 : f32 to vector<8x1xf32>
    %52 = arith.divf %50, %51 : vector<8x1xf32>
    %53 = vector.broadcast %52 : vector<8x1xf32> to vector<8x32xf32>
    %54 = arith.subf %48, %53 : vector<8x32xf32>
    %55 = arith.mulf %54, %54 : vector<8x32xf32>
    %cst_28 = arith.constant dense<0.000000e+00> : vector<8xf32>
    %56 = vector.multi_reduction <add>, %55, %cst_28 [1] : vector<8x32xf32> to vector<8xf32>
    %57 = vector.shape_cast %56 : vector<8xf32> to vector<8x1xf32>
    %cst_29 = arith.constant 3.200000e+01 : f32
    %58 = vector.broadcast %cst_29 : f32 to vector<8x1xf32>
    %59 = arith.divf %57, %58 : vector<8x1xf32>
    %60 = vector.broadcast %52 : vector<8x1xf32> to vector<8x32xf32>
    %61 = arith.subf %48, %60 : vector<8x32xf32>
    %cst_30 = arith.constant 9.99999974E-6 : f32
    %62 = vector.broadcast %cst_30 : f32 to vector<8x1xf32>
    %63 = arith.addf %59, %62 : vector<8x1xf32>
    %64 = math.rsqrt %63 : vector<8x1xf32>
    %65 = vector.broadcast %64 : vector<8x1xf32> to vector<8x32xf32>
    %66 = arith.mulf %61, %65 : vector<8x32xf32>
    %67 = vector.broadcast %13 : vector<1x32xf32> to vector<8x32xf32>
    %68 = arith.mulf %66, %67 : vector<8x32xf32>
    %69 = vector.broadcast %14 : vector<1x32xf32> to vector<8x32xf32>
    %70 = arith.addf %68, %69 : vector<8x32xf32>
    %cst_31 = arith.constant dense<0.000000e+00> : vector<8x64xf32>
    %71 = tpu.matmul %70, %6, %cst_31 {dimension_numbers = #tpu.dot_dimension_numbers<[1], [0], [0], [1], [0, 0, 1, 1], [], []>} : vector<8x32xf32>, vector<32x64xf32>, vector<8x64xf32> -> vector<8x64xf32>
    %72 = vector.broadcast %15 : vector<1x64xf32> to vector<8x64xf32>
    %73 = arith.addf %71, %72 : vector<8x64xf32>
    %cst_32 = arith.constant 5.000000e-01 : f32
    %74 = vector.broadcast %cst_32 : f32 to vector<8x64xf32>
    %75 = arith.mulf %74, %73 : vector<8x64xf32>
    %cst_33 = arith.constant 0.707106769 : f32
    %76 = vector.broadcast %cst_33 : f32 to vector<8x64xf32>
    %77 = arith.mulf %73, %76 : vector<8x64xf32>
    %78 = math.absf %77 : vector<8x64xf32>
    %cst_34 = arith.constant 0.327591091 : f32
    %79 = vector.broadcast %cst_34 : f32 to vector<8x64xf32>
    %80 = arith.mulf %79, %78 : vector<8x64xf32>
    %cst_35 = arith.constant 1.000000e+00 : f32
    %81 = vector.broadcast %cst_35 : f32 to vector<8x64xf32>
    %82 = arith.addf %81, %80 : vector<8x64xf32>
    %cst_36 = arith.constant 1.000000e+00 : f32
    %83 = vector.broadcast %cst_36 : f32 to vector<8x64xf32>
    %84 = arith.divf %83, %82 : vector<8x64xf32>
    %cst_37 = arith.constant 1.06140542 : f32
    %85 = vector.broadcast %cst_37 : f32 to vector<8x64xf32>
    %86 = arith.mulf %85, %84 : vector<8x64xf32>
    %cst_38 = arith.constant -1.45315206 : f32
    %87 = vector.broadcast %cst_38 : f32 to vector<8x64xf32>
    %88 = arith.addf %86, %87 : vector<8x64xf32>
    %89 = arith.mulf %88, %84 : vector<8x64xf32>
    %cst_39 = arith.constant 1.42141378 : f32
    %90 = vector.broadcast %cst_39 : f32 to vector<8x64xf32>
    %91 = arith.addf %89, %90 : vector<8x64xf32>
    %92 = arith.mulf %91, %84 : vector<8x64xf32>
    %cst_40 = arith.constant -0.284496725 : f32
    %93 = vector.broadcast %cst_40 : f32 to vector<8x64xf32>
    %94 = arith.addf %92, %93 : vector<8x64xf32>
    %95 = arith.mulf %94, %84 : vector<8x64xf32>
    %cst_41 = arith.constant 0.254829586 : f32
    %96 = vector.broadcast %cst_41 : f32 to vector<8x64xf32>
    %97 = arith.addf %95, %96 : vector<8x64xf32>
    %98 = arith.mulf %97, %84 : vector<8x64xf32>
    %cst_42 = arith.constant 0.000000e+00 : f32
    %99 = vector.broadcast %cst_42 : f32 to vector<8x64xf32>
    %100 = arith.subf %99, %78 : vector<8x64xf32>
    %101 = arith.mulf %100, %78 : vector<8x64xf32>
    %102 = math.exp %101 : vector<8x64xf32>
    %103 = arith.mulf %98, %102 : vector<8x64xf32>
    %cst_43 = arith.constant 1.000000e+00 : f32
    %104 = vector.broadcast %cst_43 : f32 to vector<8x64xf32>
    %105 = arith.subf %104, %103 : vector<8x64xf32>
    %cst_44 = arith.constant 0.000000e+00 : f32
    %106 = vector.broadcast %cst_44 : f32 to vector<8x64xf32>
    %107 = arith.cmpf oge, %77, %106 : vector<8x64xf32>
    %cst_45 = arith.constant 0.000000e+00 : f32
    %108 = vector.broadcast %cst_45 : f32 to vector<8x64xf32>
    %109 = arith.subf %108, %105 : vector<8x64xf32>
    %110 = arith.select %107, %105, %109 : vector<8x64xi1>, vector<8x64xf32>
    %cst_46 = arith.constant 1.000000e+00 : f32
    %111 = vector.broadcast %cst_46 : f32 to vector<8x64xf32>
    %112 = arith.addf %111, %110 : vector<8x64xf32>
    %113 = arith.mulf %75, %112 : vector<8x64xf32>
    %cst_47 = arith.constant dense<0.000000e+00> : vector<8x32xf32>
    %114 = tpu.matmul %113, %7, %cst_47 {dimension_numbers = #tpu.dot_dimension_numbers<[1], [0], [0], [1], [0, 0, 1, 1], [], []>} : vector<8x64xf32>, vector<64x32xf32>, vector<8x32xf32> -> vector<8x32xf32>
    %115 = vector.broadcast %16 : vector<1x32xf32> to vector<8x32xf32>
    %116 = arith.addf %114, %115 : vector<8x32xf32>
    %117 = arith.addf %116, %48 : vector<8x32xf32>
    %c0_48 = arith.constant 0 : index
    %c0_49 = arith.constant 0 : index
    %c0_50 = arith.constant 0 : index
    %118 = vector.load %arg8[%c0_48, %c0_49, %c0_50] : memref<2x32x96xf32, #tpu.memory_space<vmem>>, vector<1x32x96xf32>
    %119 = vector.shape_cast %118 : vector<1x32x96xf32> to vector<32x96xf32>
    %c0_51 = arith.constant 0 : index
    %c0_52 = arith.constant 0 : index
    %c0_53 = arith.constant 0 : index
    %120 = vector.load %arg9[%c0_51, %c0_52, %c0_53] : memref<2x32x32xf32, #tpu.memory_space<vmem>>, vector<1x32x32xf32>
    %121 = vector.shape_cast %120 : vector<1x32x32xf32> to vector<32x32xf32>
    %c0_54 = arith.constant 0 : index
    %c0_55 = arith.constant 0 : index
    %c0_56 = arith.constant 0 : index
    %122 = vector.load %arg10[%c0_54, %c0_55, %c0_56] : memref<2x32x64xf32, #tpu.memory_space<vmem>>, vector<1x32x64xf32>
    %123 = vector.shape_cast %122 : vector<1x32x64xf32> to vector<32x64xf32>
    %c0_57 = arith.constant 0 : index
    %c0_58 = arith.constant 0 : index
    %c0_59 = arith.constant 0 : index
    %124 = vector.load %arg11[%c0_57, %c0_58, %c0_59] : memref<2x64x32xf32, #tpu.memory_space<vmem>>, vector<1x64x32xf32>
    %125 = vector.shape_cast %124 : vector<1x64x32xf32> to vector<64x32xf32>
    %c0_60 = arith.constant 0 : index
    %c0_61 = arith.constant 0 : index
    %c0_62 = arith.constant 0 : index
    %126 = vector.load %arg12[%c0_60, %c0_61, %c0_62] : memref<2x8x64xf32, #tpu.memory_space<vmem>>, vector<1x8x64xf32>
    %127 = vector.shape_cast %126 : vector<1x8x64xf32> to vector<8x64xf32>
    %128 = vector.extract_strided_slice %127 {offsets = [0, 0], sizes = [1, 32], strides = [1, 1]} : vector<8x64xf32> to vector<1x32xf32>
    %129 = vector.extract_strided_slice %127 {offsets = [1, 0], sizes = [1, 32], strides = [1, 1]} : vector<8x64xf32> to vector<1x32xf32>
    %130 = vector.extract_strided_slice %127 {offsets = [2, 0], sizes = [1, 32], strides = [1, 1]} : vector<8x64xf32> to vector<1x32xf32>
    %131 = vector.extract_strided_slice %127 {offsets = [3, 0], sizes = [1, 32], strides = [1, 1]} : vector<8x64xf32> to vector<1x32xf32>
    %132 = vector.extract_strided_slice %127 {offsets = [4, 0], sizes = [1, 32], strides = [1, 1]} : vector<8x64xf32> to vector<1x32xf32>
    %133 = vector.extract_strided_slice %127 {offsets = [5, 0], sizes = [1, 32], strides = [1, 1]} : vector<8x64xf32> to vector<1x32xf32>
    %134 = vector.extract_strided_slice %127 {offsets = [6, 0], sizes = [1, 64], strides = [1, 1]} : vector<8x64xf32> to vector<1x64xf32>
    %135 = vector.extract_strided_slice %127 {offsets = [7, 0], sizes = [1, 32], strides = [1, 1]} : vector<8x64xf32> to vector<1x32xf32>
    %cst_63 = arith.constant dense<0.000000e+00> : vector<8x96xf32>
    %136 = tpu.matmul %117, %119, %cst_63 {dimension_numbers = #tpu.dot_dimension_numbers<[1], [0], [0], [1], [0, 0, 1, 1], [], []>} : vector<8x32xf32>, vector<32x96xf32>, vector<8x96xf32> -> vector<8x96xf32>
    %137 = vector.extract_strided_slice %136 {offsets = [0, 0], sizes = [8, 32], strides = [1, 1]} : vector<8x96xf32> to vector<8x32xf32>
    %138 = vector.broadcast %128 : vector<1x32xf32> to vector<8x32xf32>
    %139 = arith.addf %137, %138 : vector<8x32xf32>
    %140 = vector.extract_strided_slice %136 {offsets = [0, 32], sizes = [8, 32], strides = [1, 1]} : vector<8x96xf32> to vector<8x32xf32>
    %141 = vector.broadcast %129 : vector<1x32xf32> to vector<8x32xf32>
    %142 = arith.addf %140, %141 : vector<8x32xf32>
    %143 = vector.extract_strided_slice %136 {offsets = [0, 64], sizes = [8, 32], strides = [1, 1]} : vector<8x96xf32> to vector<8x32xf32>
    %144 = vector.broadcast %130 : vector<1x32xf32> to vector<8x32xf32>
    %145 = arith.addf %143, %144 : vector<8x32xf32>
    %146 = vector.extract_strided_slice %139 {offsets = [0, 0], sizes = [8, 8], strides = [1, 1]} : vector<8x32xf32> to vector<8x8xf32>
    %147 = vector.extract_strided_slice %142 {offsets = [0, 0], sizes = [8, 8], strides = [1, 1]} : vector<8x32xf32> to vector<8x8xf32>
    %cst_64 = arith.constant dense<0.000000e+00> : vector<8x8xf32>
    %148 = tpu.matmul %146, %147, %cst_64 {dimension_numbers = #tpu.dot_dimension_numbers<[1], [1], [0], [0], [0, 0, 1, 0], [], []>} : vector<8x8xf32>, vector<8x8xf32>, vector<8x8xf32> -> vector<8x8xf32>
    %cst_65 = arith.constant 0.353553385 : f32
    %149 = vector.broadcast %cst_65 : f32 to vector<8x8xf32>
    %150 = arith.mulf %148, %149 : vector<8x8xf32>
    %cst_66 = arith.constant dense<0xFF800000> : vector<8xf32>
    %151 = vector.multi_reduction <maximumf>, %150, %cst_66 [1] : vector<8x8xf32> to vector<8xf32>
    %152 = vector.shape_cast %151 : vector<8xf32> to vector<8x1xf32>
    %153 = vector.broadcast %152 : vector<8x1xf32> to vector<8x8xf32>
    %154 = arith.subf %150, %153 : vector<8x8xf32>
    %155 = math.exp %154 : vector<8x8xf32>
    %cst_67 = arith.constant dense<0.000000e+00> : vector<8xf32>
    %156 = vector.multi_reduction <add>, %155, %cst_67 [1] : vector<8x8xf32> to vector<8xf32>
    %157 = vector.shape_cast %156 : vector<8xf32> to vector<8x1xf32>
    %158 = tpu.reciprocal %157 {approx = true} : vector<8x1xf32> -> vector<8x1xf32>
    %159 = vector.broadcast %158 : vector<8x1xf32> to vector<8x8xf32>
    %160 = arith.mulf %155, %159 : vector<8x8xf32>
    %161 = vector.extract_strided_slice %145 {offsets = [0, 0], sizes = [8, 8], strides = [1, 1]} : vector<8x32xf32> to vector<8x8xf32>
    %cst_68 = arith.constant dense<0.000000e+00> : vector<8x8xf32>
    %162 = tpu.matmul %160, %161, %cst_68 {dimension_numbers = #tpu.dot_dimension_numbers<[1], [0], [0], [1], [0, 0, 1, 1], [], []>} : vector<8x8xf32>, vector<8x8xf32>, vector<8x8xf32> -> vector<8x8xf32>
    %c0_69 = arith.constant 0 : index
    %c0_70 = arith.constant 0 : index
    %163 = vector.load %arg14[%c0_69, %c0_70] : memref<8x32xf32, #tpu.memory_space<vmem>>, vector<8x8xf32>
    tpu.vector_store %arg14[%c0_69, %c0_70], %162 {strides = array<i32>} : memref<8x32xf32, #tpu.memory_space<vmem>>, vector<8x8xf32>,
    %164 = vector.extract_strided_slice %139 {offsets = [0, 8], sizes = [8, 8], strides = [1, 1]} : vector<8x32xf32> to vector<8x8xf32>
    %165 = vector.extract_strided_slice %142 {offsets = [0, 8], sizes = [8, 8], strides = [1, 1]} : vector<8x32xf32> to vector<8x8xf32>
    %cst_71 = arith.constant dense<0.000000e+00> : vector<8x8xf32>
    %166 = tpu.matmul %164, %165, %cst_71 {dimension_numbers = #tpu.dot_dimension_numbers<[1], [1], [0], [0], [0, 0, 1, 0], [], []>} : vector<8x8xf32>, vector<8x8xf32>, vector<8x8xf32> -> vector<8x8xf32>
    %cst_72 = arith.constant 0.353553385 : f32
    %167 = vector.broadcast %cst_72 : f32 to vector<8x8xf32>
    %168 = arith.mulf %166, %167 : vector<8x8xf32>
    %cst_73 = arith.constant dense<0xFF800000> : vector<8xf32>
    %169 = vector.multi_reduction <maximumf>, %168, %cst_73 [1] : vector<8x8xf32> to vector<8xf32>
    %170 = vector.shape_cast %169 : vector<8xf32> to vector<8x1xf32>
    %171 = vector.broadcast %170 : vector<8x1xf32> to vector<8x8xf32>
    %172 = arith.subf %168, %171 : vector<8x8xf32>
    %173 = math.exp %172 : vector<8x8xf32>
    %cst_74 = arith.constant dense<0.000000e+00> : vector<8xf32>
    %174 = vector.multi_reduction <add>, %173, %cst_74 [1] : vector<8x8xf32> to vector<8xf32>
    %175 = vector.shape_cast %174 : vector<8xf32> to vector<8x1xf32>
    %176 = tpu.reciprocal %175 {approx = true} : vector<8x1xf32> -> vector<8x1xf32>
    %177 = vector.broadcast %176 : vector<8x1xf32> to vector<8x8xf32>
    %178 = arith.mulf %173, %177 : vector<8x8xf32>
    %179 = vector.extract_strided_slice %145 {offsets = [0, 8], sizes = [8, 8], strides = [1, 1]} : vector<8x32xf32> to vector<8x8xf32>
    %cst_75 = arith.constant dense<0.000000e+00> : vector<8x8xf32>
    %180 = tpu.matmul %178, %179, %cst_75 {dimension_numbers = #tpu.dot_dimension_numbers<[1], [0], [0], [1], [0, 0, 1, 1], [], []>} : vector<8x8xf32>, vector<8x8xf32>, vector<8x8xf32> -> vector<8x8xf32>
    %c0_76 = arith.constant 0 : index
    %c8 = arith.constant 8 : index
    %181 = vector.load %arg14[%c0_76, %c8] : memref<8x32xf32, #tpu.memory_space<vmem>>, vector<8x8xf32>
    tpu.vector_store %arg14[%c0_76, %c8], %180 {strides = array<i32>} : memref<8x32xf32, #tpu.memory_space<vmem>>, vector<8x8xf32>,
    %182 = vector.extract_strided_slice %139 {offsets = [0, 16], sizes = [8, 8], strides = [1, 1]} : vector<8x32xf32> to vector<8x8xf32>
    %183 = vector.extract_strided_slice %142 {offsets = [0, 16], sizes = [8, 8], strides = [1, 1]} : vector<8x32xf32> to vector<8x8xf32>
    %cst_77 = arith.constant dense<0.000000e+00> : vector<8x8xf32>
    %184 = tpu.matmul %182, %183, %cst_77 {dimension_numbers = #tpu.dot_dimension_numbers<[1], [1], [0], [0], [0, 0, 1, 0], [], []>} : vector<8x8xf32>, vector<8x8xf32>, vector<8x8xf32> -> vector<8x8xf32>
    %cst_78 = arith.constant 0.353553385 : f32
    %185 = vector.broadcast %cst_78 : f32 to vector<8x8xf32>
    %186 = arith.mulf %184, %185 : vector<8x8xf32>
    %cst_79 = arith.constant dense<0xFF800000> : vector<8xf32>
    %187 = vector.multi_reduction <maximumf>, %186, %cst_79 [1] : vector<8x8xf32> to vector<8xf32>
    %188 = vector.shape_cast %187 : vector<8xf32> to vector<8x1xf32>
    %189 = vector.broadcast %188 : vector<8x1xf32> to vector<8x8xf32>
    %190 = arith.subf %186, %189 : vector<8x8xf32>
    %191 = math.exp %190 : vector<8x8xf32>
    %cst_80 = arith.constant dense<0.000000e+00> : vector<8xf32>
    %192 = vector.multi_reduction <add>, %191, %cst_80 [1] : vector<8x8xf32> to vector<8xf32>
    %193 = vector.shape_cast %192 : vector<8xf32> to vector<8x1xf32>
    %194 = tpu.reciprocal %193 {approx = true} : vector<8x1xf32> -> vector<8x1xf32>
    %195 = vector.broadcast %194 : vector<8x1xf32> to vector<8x8xf32>
    %196 = arith.mulf %191, %195 : vector<8x8xf32>
    %197 = vector.extract_strided_slice %145 {offsets = [0, 16], sizes = [8, 8], strides = [1, 1]} : vector<8x32xf32> to vector<8x8xf32>
    %cst_81 = arith.constant dense<0.000000e+00> : vector<8x8xf32>
    %198 = tpu.matmul %196, %197, %cst_81 {dimension_numbers = #tpu.dot_dimension_numbers<[1], [0], [0], [1], [0, 0, 1, 1], [], []>} : vector<8x8xf32>, vector<8x8xf32>, vector<8x8xf32> -> vector<8x8xf32>
    %c0_82 = arith.constant 0 : index
    %c16 = arith.constant 16 : index
    %199 = vector.load %arg14[%c0_82, %c16] : memref<8x32xf32, #tpu.memory_space<vmem>>, vector<8x8xf32>
    tpu.vector_store %arg14[%c0_82, %c16], %198 {strides = array<i32>} : memref<8x32xf32, #tpu.memory_space<vmem>>, vector<8x8xf32>,
    %200 = vector.extract_strided_slice %139 {offsets = [0, 24], sizes = [8, 8], strides = [1, 1]} : vector<8x32xf32> to vector<8x8xf32>
    %201 = vector.extract_strided_slice %142 {offsets = [0, 24], sizes = [8, 8], strides = [1, 1]} : vector<8x32xf32> to vector<8x8xf32>
    %cst_83 = arith.constant dense<0.000000e+00> : vector<8x8xf32>
    %202 = tpu.matmul %200, %201, %cst_83 {dimension_numbers = #tpu.dot_dimension_numbers<[1], [1], [0], [0], [0, 0, 1, 0], [], []>} : vector<8x8xf32>, vector<8x8xf32>, vector<8x8xf32> -> vector<8x8xf32>
    %cst_84 = arith.constant 0.353553385 : f32
    %203 = vector.broadcast %cst_84 : f32 to vector<8x8xf32>
    %204 = arith.mulf %202, %203 : vector<8x8xf32>
    %cst_85 = arith.constant dense<0xFF800000> : vector<8xf32>
    %205 = vector.multi_reduction <maximumf>, %204, %cst_85 [1] : vector<8x8xf32> to vector<8xf32>
    %206 = vector.shape_cast %205 : vector<8xf32> to vector<8x1xf32>
    %207 = vector.broadcast %206 : vector<8x1xf32> to vector<8x8xf32>
    %208 = arith.subf %204, %207 : vector<8x8xf32>
    %209 = math.exp %208 : vector<8x8xf32>
    %cst_86 = arith.constant dense<0.000000e+00> : vector<8xf32>
    %210 = vector.multi_reduction <add>, %209, %cst_86 [1] : vector<8x8xf32> to vector<8xf32>
    %211 = vector.shape_cast %210 : vector<8xf32> to vector<8x1xf32>
    %212 = tpu.reciprocal %211 {approx = true} : vector<8x1xf32> -> vector<8x1xf32>
    %213 = vector.broadcast %212 : vector<8x1xf32> to vector<8x8xf32>
    %214 = arith.mulf %209, %213 : vector<8x8xf32>
    %215 = vector.extract_strided_slice %145 {offsets = [0, 24], sizes = [8, 8], strides = [1, 1]} : vector<8x32xf32> to vector<8x8xf32>
    %cst_87 = arith.constant dense<0.000000e+00> : vector<8x8xf32>
    %216 = tpu.matmul %214, %215, %cst_87 {dimension_numbers = #tpu.dot_dimension_numbers<[1], [0], [0], [1], [0, 0, 1, 1], [], []>} : vector<8x8xf32>, vector<8x8xf32>, vector<8x8xf32> -> vector<8x8xf32>
    %c0_88 = arith.constant 0 : index
    %c24 = arith.constant 24 : index
    %217 = vector.load %arg14[%c0_88, %c24] : memref<8x32xf32, #tpu.memory_space<vmem>>, vector<8x8xf32>
    tpu.vector_store %arg14[%c0_88, %c24], %216 {strides = array<i32>} : memref<8x32xf32, #tpu.memory_space<vmem>>, vector<8x8xf32>,
    %c0_89 = arith.constant 0 : index
    %c0_90 = arith.constant 0 : index
    %218 = vector.load %arg14[%c0_89, %c0_90] : memref<8x32xf32, #tpu.memory_space<vmem>>, vector<8x32xf32>
    %cst_91 = arith.constant dense<0.000000e+00> : vector<8x32xf32>
    %219 = tpu.matmul %218, %121, %cst_91 {dimension_numbers = #tpu.dot_dimension_numbers<[1], [0], [0], [1], [0, 0, 1, 1], [], []>} : vector<8x32xf32>, vector<32x32xf32>, vector<8x32xf32> -> vector<8x32xf32>
    %220 = vector.broadcast %131 : vector<1x32xf32> to vector<8x32xf32>
    %221 = arith.addf %219, %220 : vector<8x32xf32>
    %222 = arith.addf %221, %117 : vector<8x32xf32>
    %cst_92 = arith.constant dense<0.000000e+00> : vector<8xf32>
    %223 = vector.multi_reduction <add>, %222, %cst_92 [1] : vector<8x32xf32> to vector<8xf32>
    %224 = vector.shape_cast %223 : vector<8xf32> to vector<8x1xf32>
    %cst_93 = arith.constant 3.200000e+01 : f32
    %225 = vector.broadcast %cst_93 : f32 to vector<8x1xf32>
    %226 = arith.divf %224, %225 : vector<8x1xf32>
    %227 = vector.broadcast %226 : vector<8x1xf32> to vector<8x32xf32>
    %228 = arith.subf %222, %227 : vector<8x32xf32>
    %229 = arith.mulf %228, %228 : vector<8x32xf32>
    %cst_94 = arith.constant dense<0.000000e+00> : vector<8xf32>
    %230 = vector.multi_reduction <add>, %229, %cst_94 [1] : vector<8x32xf32> to vector<8xf32>
    %231 = vector.shape_cast %230 : vector<8xf32> to vector<8x1xf32>
    %cst_95 = arith.constant 3.200000e+01 : f32
    %232 = vector.broadcast %cst_95 : f32 to vector<8x1xf32>
    %233 = arith.divf %231, %232 : vector<8x1xf32>
    %234 = vector.broadcast %226 : vector<8x1xf32> to vector<8x32xf32>
    %235 = arith.subf %222, %234 : vector<8x32xf32>
    %cst_96 = arith.constant 9.99999974E-6 : f32
    %236 = vector.broadcast %cst_96 : f32 to vector<8x1xf32>
    %237 = arith.addf %233, %236 : vector<8x1xf32>
    %238 = math.rsqrt %237 : vector<8x1xf32>
    %239 = vector.broadcast %238 : vector<8x1xf32> to vector<8x32xf32>
    %240 = arith.mulf %235, %239 : vector<8x32xf32>
    %241 = vector.broadcast %132 : vector<1x32xf32> to vector<8x32xf32>
    %242 = arith.mulf %240, %241 : vector<8x32xf32>
    %243 = vector.broadcast %133 : vector<1x32xf32> to vector<8x32xf32>
    %244 = arith.addf %242, %243 : vector<8x32xf32>
    %cst_97 = arith.constant dense<0.000000e+00> : vector<8x64xf32>
    %245 = tpu.matmul %244, %123, %cst_97 {dimension_numbers = #tpu.dot_dimension_numbers<[1], [0], [0], [1], [0, 0, 1, 1], [], []>} : vector<8x32xf32>, vector<32x64xf32>, vector<8x64xf32> -> vector<8x64xf32>
    %246 = vector.broadcast %134 : vector<1x64xf32> to vector<8x64xf32>
    %247 = arith.addf %245, %246 : vector<8x64xf32>
    %cst_98 = arith.constant 5.000000e-01 : f32
    %248 = vector.broadcast %cst_98 : f32 to vector<8x64xf32>
    %249 = arith.mulf %248, %247 : vector<8x64xf32>
    %cst_99 = arith.constant 0.707106769 : f32
    %250 = vector.broadcast %cst_99 : f32 to vector<8x64xf32>
    %251 = arith.mulf %247, %250 : vector<8x64xf32>
    %252 = math.absf %251 : vector<8x64xf32>
    %cst_100 = arith.constant 0.327591091 : f32
    %253 = vector.broadcast %cst_100 : f32 to vector<8x64xf32>
    %254 = arith.mulf %253, %252 : vector<8x64xf32>
    %cst_101 = arith.constant 1.000000e+00 : f32
    %255 = vector.broadcast %cst_101 : f32 to vector<8x64xf32>
    %256 = arith.addf %255, %254 : vector<8x64xf32>
    %cst_102 = arith.constant 1.000000e+00 : f32
    %257 = vector.broadcast %cst_102 : f32 to vector<8x64xf32>
    %258 = arith.divf %257, %256 : vector<8x64xf32>
    %cst_103 = arith.constant 1.06140542 : f32
    %259 = vector.broadcast %cst_103 : f32 to vector<8x64xf32>
    %260 = arith.mulf %259, %258 : vector<8x64xf32>
    %cst_104 = arith.constant -1.45315206 : f32
    %261 = vector.broadcast %cst_104 : f32 to vector<8x64xf32>
    %262 = arith.addf %260, %261 : vector<8x64xf32>
    %263 = arith.mulf %262, %258 : vector<8x64xf32>
    %cst_105 = arith.constant 1.42141378 : f32
    %264 = vector.broadcast %cst_105 : f32 to vector<8x64xf32>
    %265 = arith.addf %263, %264 : vector<8x64xf32>
    %266 = arith.mulf %265, %258 : vector<8x64xf32>
    %cst_106 = arith.constant -0.284496725 : f32
    %267 = vector.broadcast %cst_106 : f32 to vector<8x64xf32>
    %268 = arith.addf %266, %267 : vector<8x64xf32>
    %269 = arith.mulf %268, %258 : vector<8x64xf32>
    %cst_107 = arith.constant 0.254829586 : f32
    %270 = vector.broadcast %cst_107 : f32 to vector<8x64xf32>
    %271 = arith.addf %269, %270 : vector<8x64xf32>
    %272 = arith.mulf %271, %258 : vector<8x64xf32>
    %cst_108 = arith.constant 0.000000e+00 : f32
    %273 = vector.broadcast %cst_108 : f32 to vector<8x64xf32>
    %274 = arith.subf %273, %252 : vector<8x64xf32>
    %275 = arith.mulf %274, %252 : vector<8x64xf32>
    %276 = math.exp %275 : vector<8x64xf32>
    %277 = arith.mulf %272, %276 : vector<8x64xf32>
    %cst_109 = arith.constant 1.000000e+00 : f32
    %278 = vector.broadcast %cst_109 : f32 to vector<8x64xf32>
    %279 = arith.subf %278, %277 : vector<8x64xf32>
    %cst_110 = arith.constant 0.000000e+00 : f32
    %280 = vector.broadcast %cst_110 : f32 to vector<8x64xf32>
    %281 = arith.cmpf oge, %251, %280 : vector<8x64xf32>
    %cst_111 = arith.constant 0.000000e+00 : f32
    %282 = vector.broadcast %cst_111 : f32 to vector<8x64xf32>
    %283 = arith.subf %282, %279 : vector<8x64xf32>
    %284 = arith.select %281, %279, %283 : vector<8x64xi1>, vector<8x64xf32>
    %cst_112 = arith.constant 1.000000e+00 : f32
    %285 = vector.broadcast %cst_112 : f32 to vector<8x64xf32>
    %286 = arith.addf %285, %284 : vector<8x64xf32>
    %287 = arith.mulf %249, %286 : vector<8x64xf32>
    %cst_113 = arith.constant dense<0.000000e+00> : vector<8x32xf32>
    %288 = tpu.matmul %287, %125, %cst_113 {dimension_numbers = #tpu.dot_dimension_numbers<[1], [0], [0], [1], [0, 0, 1, 1], [], []>} : vector<8x64xf32>, vector<64x32xf32>, vector<8x32xf32> -> vector<8x32xf32>
    %289 = vector.broadcast %135 : vector<1x32xf32> to vector<8x32xf32>
    %290 = arith.addf %288, %289 : vector<8x32xf32>
    %291 = arith.addf %290, %222 : vector<8x32xf32>
    %c1 = arith.constant 1 : index
    %c0_114 = arith.constant 0 : index
    %c0_115 = arith.constant 0 : index
    %292 = vector.load %arg8[%c1, %c0_114, %c0_115] : memref<2x32x96xf32, #tpu.memory_space<vmem>>, vector<1x32x96xf32>
    %293 = vector.shape_cast %292 : vector<1x32x96xf32> to vector<32x96xf32>
    %c1_116 = arith.constant 1 : index
    %c0_117 = arith.constant 0 : index
    %c0_118 = arith.constant 0 : index
    %294 = vector.load %arg9[%c1_116, %c0_117, %c0_118] : memref<2x32x32xf32, #tpu.memory_space<vmem>>, vector<1x32x32xf32>
    %295 = vector.shape_cast %294 : vector<1x32x32xf32> to vector<32x32xf32>
    %c1_119 = arith.constant 1 : index
    %c0_120 = arith.constant 0 : index
    %c0_121 = arith.constant 0 : index
    %296 = vector.load %arg10[%c1_119, %c0_120, %c0_121] : memref<2x32x64xf32, #tpu.memory_space<vmem>>, vector<1x32x64xf32>
    %297 = vector.shape_cast %296 : vector<1x32x64xf32> to vector<32x64xf32>
    %c1_122 = arith.constant 1 : index
    %c0_123 = arith.constant 0 : index
    %c0_124 = arith.constant 0 : index
    %298 = vector.load %arg11[%c1_122, %c0_123, %c0_124] : memref<2x64x32xf32, #tpu.memory_space<vmem>>, vector<1x64x32xf32>
    %299 = vector.shape_cast %298 : vector<1x64x32xf32> to vector<64x32xf32>
    %c1_125 = arith.constant 1 : index
    %c0_126 = arith.constant 0 : index
    %c0_127 = arith.constant 0 : index
    %300 = vector.load %arg12[%c1_125, %c0_126, %c0_127] : memref<2x8x64xf32, #tpu.memory_space<vmem>>, vector<1x8x64xf32>
    %301 = vector.shape_cast %300 : vector<1x8x64xf32> to vector<8x64xf32>
    %302 = vector.extract_strided_slice %301 {offsets = [0, 0], sizes = [1, 32], strides = [1, 1]} : vector<8x64xf32> to vector<1x32xf32>
    %303 = vector.extract_strided_slice %301 {offsets = [1, 0], sizes = [1, 32], strides = [1, 1]} : vector<8x64xf32> to vector<1x32xf32>
    %304 = vector.extract_strided_slice %301 {offsets = [2, 0], sizes = [1, 32], strides = [1, 1]} : vector<8x64xf32> to vector<1x32xf32>
    %305 = vector.extract_strided_slice %301 {offsets = [3, 0], sizes = [1, 32], strides = [1, 1]} : vector<8x64xf32> to vector<1x32xf32>
    %306 = vector.extract_strided_slice %301 {offsets = [4, 0], sizes = [1, 32], strides = [1, 1]} : vector<8x64xf32> to vector<1x32xf32>
    %307 = vector.extract_strided_slice %301 {offsets = [5, 0], sizes = [1, 32], strides = [1, 1]} : vector<8x64xf32> to vector<1x32xf32>
    %308 = vector.extract_strided_slice %301 {offsets = [6, 0], sizes = [1, 64], strides = [1, 1]} : vector<8x64xf32> to vector<1x64xf32>
    %309 = vector.extract_strided_slice %301 {offsets = [7, 0], sizes = [1, 32], strides = [1, 1]} : vector<8x64xf32> to vector<1x32xf32>
    %cst_128 = arith.constant dense<0.000000e+00> : vector<8x96xf32>
    %310 = tpu.matmul %291, %293, %cst_128 {dimension_numbers = #tpu.dot_dimension_numbers<[1], [0], [0], [1], [0, 0, 1, 1], [], []>} : vector<8x32xf32>, vector<32x96xf32>, vector<8x96xf32> -> vector<8x96xf32>
    %311 = vector.extract_strided_slice %310 {offsets = [0, 0], sizes = [8, 32], strides = [1, 1]} : vector<8x96xf32> to vector<8x32xf32>
    %312 = vector.broadcast %302 : vector<1x32xf32> to vector<8x32xf32>
    %313 = arith.addf %311, %312 : vector<8x32xf32>
    %314 = vector.extract_strided_slice %310 {offsets = [0, 32], sizes = [8, 32], strides = [1, 1]} : vector<8x96xf32> to vector<8x32xf32>
    %315 = vector.broadcast %303 : vector<1x32xf32> to vector<8x32xf32>
    %316 = arith.addf %314, %315 : vector<8x32xf32>
    %317 = vector.extract_strided_slice %310 {offsets = [0, 64], sizes = [8, 32], strides = [1, 1]} : vector<8x96xf32> to vector<8x32xf32>
    %318 = vector.broadcast %304 : vector<1x32xf32> to vector<8x32xf32>
    %319 = arith.addf %317, %318 : vector<8x32xf32>
    %320 = vector.extract_strided_slice %313 {offsets = [0, 0], sizes = [8, 8], strides = [1, 1]} : vector<8x32xf32> to vector<8x8xf32>
    %321 = vector.extract_strided_slice %316 {offsets = [0, 0], sizes = [8, 8], strides = [1, 1]} : vector<8x32xf32> to vector<8x8xf32>
    %cst_129 = arith.constant dense<0.000000e+00> : vector<8x8xf32>
    %322 = tpu.matmul %320, %321, %cst_129 {dimension_numbers = #tpu.dot_dimension_numbers<[1], [1], [0], [0], [0, 0, 1, 0], [], []>} : vector<8x8xf32>, vector<8x8xf32>, vector<8x8xf32> -> vector<8x8xf32>
    %cst_130 = arith.constant 0.353553385 : f32
    %323 = vector.broadcast %cst_130 : f32 to vector<8x8xf32>
    %324 = arith.mulf %322, %323 : vector<8x8xf32>
    %cst_131 = arith.constant dense<0xFF800000> : vector<8xf32>
    %325 = vector.multi_reduction <maximumf>, %324, %cst_131 [1] : vector<8x8xf32> to vector<8xf32>
    %326 = vector.shape_cast %325 : vector<8xf32> to vector<8x1xf32>
    %327 = vector.broadcast %326 : vector<8x1xf32> to vector<8x8xf32>
    %328 = arith.subf %324, %327 : vector<8x8xf32>
    %329 = math.exp %328 : vector<8x8xf32>
    %cst_132 = arith.constant dense<0.000000e+00> : vector<8xf32>
    %330 = vector.multi_reduction <add>, %329, %cst_132 [1] : vector<8x8xf32> to vector<8xf32>
    %331 = vector.shape_cast %330 : vector<8xf32> to vector<8x1xf32>
    %332 = tpu.reciprocal %331 {approx = true} : vector<8x1xf32> -> vector<8x1xf32>
    %333 = vector.broadcast %332 : vector<8x1xf32> to vector<8x8xf32>
    %334 = arith.mulf %329, %333 : vector<8x8xf32>
    %335 = vector.extract_strided_slice %319 {offsets = [0, 0], sizes = [8, 8], strides = [1, 1]} : vector<8x32xf32> to vector<8x8xf32>
    %cst_133 = arith.constant dense<0.000000e+00> : vector<8x8xf32>
    %336 = tpu.matmul %334, %335, %cst_133 {dimension_numbers = #tpu.dot_dimension_numbers<[1], [0], [0], [1], [0, 0, 1, 1], [], []>} : vector<8x8xf32>, vector<8x8xf32>, vector<8x8xf32> -> vector<8x8xf32>
    %c0_134 = arith.constant 0 : index
    %c0_135 = arith.constant 0 : index
    %337 = vector.load %arg14[%c0_134, %c0_135] : memref<8x32xf32, #tpu.memory_space<vmem>>, vector<8x8xf32>
    tpu.vector_store %arg14[%c0_134, %c0_135], %336 {strides = array<i32>} : memref<8x32xf32, #tpu.memory_space<vmem>>, vector<8x8xf32>,
    %338 = vector.extract_strided_slice %313 {offsets = [0, 8], sizes = [8, 8], strides = [1, 1]} : vector<8x32xf32> to vector<8x8xf32>
    %339 = vector.extract_strided_slice %316 {offsets = [0, 8], sizes = [8, 8], strides = [1, 1]} : vector<8x32xf32> to vector<8x8xf32>
    %cst_136 = arith.constant dense<0.000000e+00> : vector<8x8xf32>
    %340 = tpu.matmul %338, %339, %cst_136 {dimension_numbers = #tpu.dot_dimension_numbers<[1], [1], [0], [0], [0, 0, 1, 0], [], []>} : vector<8x8xf32>, vector<8x8xf32>, vector<8x8xf32> -> vector<8x8xf32>
    %cst_137 = arith.constant 0.353553385 : f32
    %341 = vector.broadcast %cst_137 : f32 to vector<8x8xf32>
    %342 = arith.mulf %340, %341 : vector<8x8xf32>
    %cst_138 = arith.constant dense<0xFF800000> : vector<8xf32>
    %343 = vector.multi_reduction <maximumf>, %342, %cst_138 [1] : vector<8x8xf32> to vector<8xf32>
    %344 = vector.shape_cast %343 : vector<8xf32> to vector<8x1xf32>
    %345 = vector.broadcast %344 : vector<8x1xf32> to vector<8x8xf32>
    %346 = arith.subf %342, %345 : vector<8x8xf32>
    %347 = math.exp %346 : vector<8x8xf32>
    %cst_139 = arith.constant dense<0.000000e+00> : vector<8xf32>
    %348 = vector.multi_reduction <add>, %347, %cst_139 [1] : vector<8x8xf32> to vector<8xf32>
    %349 = vector.shape_cast %348 : vector<8xf32> to vector<8x1xf32>
    %350 = tpu.reciprocal %349 {approx = true} : vector<8x1xf32> -> vector<8x1xf32>
    %351 = vector.broadcast %350 : vector<8x1xf32> to vector<8x8xf32>
    %352 = arith.mulf %347, %351 : vector<8x8xf32>
    %353 = vector.extract_strided_slice %319 {offsets = [0, 8], sizes = [8, 8], strides = [1, 1]} : vector<8x32xf32> to vector<8x8xf32>
    %cst_140 = arith.constant dense<0.000000e+00> : vector<8x8xf32>
    %354 = tpu.matmul %352, %353, %cst_140 {dimension_numbers = #tpu.dot_dimension_numbers<[1], [0], [0], [1], [0, 0, 1, 1], [], []>} : vector<8x8xf32>, vector<8x8xf32>, vector<8x8xf32> -> vector<8x8xf32>
    %c0_141 = arith.constant 0 : index
    %c8_142 = arith.constant 8 : index
    %355 = vector.load %arg14[%c0_141, %c8_142] : memref<8x32xf32, #tpu.memory_space<vmem>>, vector<8x8xf32>
    tpu.vector_store %arg14[%c0_141, %c8_142], %354 {strides = array<i32>} : memref<8x32xf32, #tpu.memory_space<vmem>>, vector<8x8xf32>,
    %356 = vector.extract_strided_slice %313 {offsets = [0, 16], sizes = [8, 8], strides = [1, 1]} : vector<8x32xf32> to vector<8x8xf32>
    %357 = vector.extract_strided_slice %316 {offsets = [0, 16], sizes = [8, 8], strides = [1, 1]} : vector<8x32xf32> to vector<8x8xf32>
    %cst_143 = arith.constant dense<0.000000e+00> : vector<8x8xf32>
    %358 = tpu.matmul %356, %357, %cst_143 {dimension_numbers = #tpu.dot_dimension_numbers<[1], [1], [0], [0], [0, 0, 1, 0], [], []>} : vector<8x8xf32>, vector<8x8xf32>, vector<8x8xf32> -> vector<8x8xf32>
    %cst_144 = arith.constant 0.353553385 : f32
    %359 = vector.broadcast %cst_144 : f32 to vector<8x8xf32>
    %360 = arith.mulf %358, %359 : vector<8x8xf32>
    %cst_145 = arith.constant dense<0xFF800000> : vector<8xf32>
    %361 = vector.multi_reduction <maximumf>, %360, %cst_145 [1] : vector<8x8xf32> to vector<8xf32>
    %362 = vector.shape_cast %361 : vector<8xf32> to vector<8x1xf32>
    %363 = vector.broadcast %362 : vector<8x1xf32> to vector<8x8xf32>
    %364 = arith.subf %360, %363 : vector<8x8xf32>
    %365 = math.exp %364 : vector<8x8xf32>
    %cst_146 = arith.constant dense<0.000000e+00> : vector<8xf32>
    %366 = vector.multi_reduction <add>, %365, %cst_146 [1] : vector<8x8xf32> to vector<8xf32>
    %367 = vector.shape_cast %366 : vector<8xf32> to vector<8x1xf32>
    %368 = tpu.reciprocal %367 {approx = true} : vector<8x1xf32> -> vector<8x1xf32>
    %369 = vector.broadcast %368 : vector<8x1xf32> to vector<8x8xf32>
    %370 = arith.mulf %365, %369 : vector<8x8xf32>
    %371 = vector.extract_strided_slice %319 {offsets = [0, 16], sizes = [8, 8], strides = [1, 1]} : vector<8x32xf32> to vector<8x8xf32>
    %cst_147 = arith.constant dense<0.000000e+00> : vector<8x8xf32>
    %372 = tpu.matmul %370, %371, %cst_147 {dimension_numbers = #tpu.dot_dimension_numbers<[1], [0], [0], [1], [0, 0, 1, 1], [], []>} : vector<8x8xf32>, vector<8x8xf32>, vector<8x8xf32> -> vector<8x8xf32>
    %c0_148 = arith.constant 0 : index
    %c16_149 = arith.constant 16 : index
    %373 = vector.load %arg14[%c0_148, %c16_149] : memref<8x32xf32, #tpu.memory_space<vmem>>, vector<8x8xf32>
    tpu.vector_store %arg14[%c0_148, %c16_149], %372 {strides = array<i32>} : memref<8x32xf32, #tpu.memory_space<vmem>>, vector<8x8xf32>,
    %374 = vector.extract_strided_slice %313 {offsets = [0, 24], sizes = [8, 8], strides = [1, 1]} : vector<8x32xf32> to vector<8x8xf32>
    %375 = vector.extract_strided_slice %316 {offsets = [0, 24], sizes = [8, 8], strides = [1, 1]} : vector<8x32xf32> to vector<8x8xf32>
    %cst_150 = arith.constant dense<0.000000e+00> : vector<8x8xf32>
    %376 = tpu.matmul %374, %375, %cst_150 {dimension_numbers = #tpu.dot_dimension_numbers<[1], [1], [0], [0], [0, 0, 1, 0], [], []>} : vector<8x8xf32>, vector<8x8xf32>, vector<8x8xf32> -> vector<8x8xf32>
    %cst_151 = arith.constant 0.353553385 : f32
    %377 = vector.broadcast %cst_151 : f32 to vector<8x8xf32>
    %378 = arith.mulf %376, %377 : vector<8x8xf32>
    %cst_152 = arith.constant dense<0xFF800000> : vector<8xf32>
    %379 = vector.multi_reduction <maximumf>, %378, %cst_152 [1] : vector<8x8xf32> to vector<8xf32>
    %380 = vector.shape_cast %379 : vector<8xf32> to vector<8x1xf32>
    %381 = vector.broadcast %380 : vector<8x1xf32> to vector<8x8xf32>
    %382 = arith.subf %378, %381 : vector<8x8xf32>
    %383 = math.exp %382 : vector<8x8xf32>
    %cst_153 = arith.constant dense<0.000000e+00> : vector<8xf32>
    %384 = vector.multi_reduction <add>, %383, %cst_153 [1] : vector<8x8xf32> to vector<8xf32>
    %385 = vector.shape_cast %384 : vector<8xf32> to vector<8x1xf32>
    %386 = tpu.reciprocal %385 {approx = true} : vector<8x1xf32> -> vector<8x1xf32>
    %387 = vector.broadcast %386 : vector<8x1xf32> to vector<8x8xf32>
    %388 = arith.mulf %383, %387 : vector<8x8xf32>
    %389 = vector.extract_strided_slice %319 {offsets = [0, 24], sizes = [8, 8], strides = [1, 1]} : vector<8x32xf32> to vector<8x8xf32>
    %cst_154 = arith.constant dense<0.000000e+00> : vector<8x8xf32>
    %390 = tpu.matmul %388, %389, %cst_154 {dimension_numbers = #tpu.dot_dimension_numbers<[1], [0], [0], [1], [0, 0, 1, 1], [], []>} : vector<8x8xf32>, vector<8x8xf32>, vector<8x8xf32> -> vector<8x8xf32>
    %c0_155 = arith.constant 0 : index
    %c24_156 = arith.constant 24 : index
    %391 = vector.load %arg14[%c0_155, %c24_156] : memref<8x32xf32, #tpu.memory_space<vmem>>, vector<8x8xf32>
    tpu.vector_store %arg14[%c0_155, %c24_156], %390 {strides = array<i32>} : memref<8x32xf32, #tpu.memory_space<vmem>>, vector<8x8xf32>,
    %c0_157 = arith.constant 0 : index
    %c0_158 = arith.constant 0 : index
    %392 = vector.load %arg14[%c0_157, %c0_158] : memref<8x32xf32, #tpu.memory_space<vmem>>, vector<8x32xf32>
    %cst_159 = arith.constant dense<0.000000e+00> : vector<8x32xf32>
    %393 = tpu.matmul %392, %295, %cst_159 {dimension_numbers = #tpu.dot_dimension_numbers<[1], [0], [0], [1], [0, 0, 1, 1], [], []>} : vector<8x32xf32>, vector<32x32xf32>, vector<8x32xf32> -> vector<8x32xf32>
    %394 = vector.broadcast %305 : vector<1x32xf32> to vector<8x32xf32>
    %395 = arith.addf %393, %394 : vector<8x32xf32>
    %396 = arith.addf %395, %291 : vector<8x32xf32>
    %cst_160 = arith.constant dense<0.000000e+00> : vector<8xf32>
    %397 = vector.multi_reduction <add>, %396, %cst_160 [1] : vector<8x32xf32> to vector<8xf32>
    %398 = vector.shape_cast %397 : vector<8xf32> to vector<8x1xf32>
    %cst_161 = arith.constant 3.200000e+01 : f32
    %399 = vector.broadcast %cst_161 : f32 to vector<8x1xf32>
    %400 = arith.divf %398, %399 : vector<8x1xf32>
    %401 = vector.broadcast %400 : vector<8x1xf32> to vector<8x32xf32>
    %402 = arith.subf %396, %401 : vector<8x32xf32>
    %403 = arith.mulf %402, %402 : vector<8x32xf32>
    %cst_162 = arith.constant dense<0.000000e+00> : vector<8xf32>
    %404 = vector.multi_reduction <add>, %403, %cst_162 [1] : vector<8x32xf32> to vector<8xf32>
    %405 = vector.shape_cast %404 : vector<8xf32> to vector<8x1xf32>
    %cst_163 = arith.constant 3.200000e+01 : f32
    %406 = vector.broadcast %cst_163 : f32 to vector<8x1xf32>
    %407 = arith.divf %405, %406 : vector<8x1xf32>
    %408 = vector.broadcast %400 : vector<8x1xf32> to vector<8x32xf32>
    %409 = arith.subf %396, %408 : vector<8x32xf32>
    %cst_164 = arith.constant 9.99999974E-6 : f32
    %410 = vector.broadcast %cst_164 : f32 to vector<8x1xf32>
    %411 = arith.addf %407, %410 : vector<8x1xf32>
    %412 = math.rsqrt %411 : vector<8x1xf32>
    %413 = vector.broadcast %412 : vector<8x1xf32> to vector<8x32xf32>
    %414 = arith.mulf %409, %413 : vector<8x32xf32>
    %415 = vector.broadcast %306 : vector<1x32xf32> to vector<8x32xf32>
    %416 = arith.mulf %414, %415 : vector<8x32xf32>
    %417 = vector.broadcast %307 : vector<1x32xf32> to vector<8x32xf32>
    %418 = arith.addf %416, %417 : vector<8x32xf32>
    %cst_165 = arith.constant dense<0.000000e+00> : vector<8x64xf32>
    %419 = tpu.matmul %418, %297, %cst_165 {dimension_numbers = #tpu.dot_dimension_numbers<[1], [0], [0], [1], [0, 0, 1, 1], [], []>} : vector<8x32xf32>, vector<32x64xf32>, vector<8x64xf32> -> vector<8x64xf32>
    %420 = vector.broadcast %308 : vector<1x64xf32> to vector<8x64xf32>
    %421 = arith.addf %419, %420 : vector<8x64xf32>
    %cst_166 = arith.constant 5.000000e-01 : f32
    %422 = vector.broadcast %cst_166 : f32 to vector<8x64xf32>
    %423 = arith.mulf %422, %421 : vector<8x64xf32>
    %cst_167 = arith.constant 0.707106769 : f32
    %424 = vector.broadcast %cst_167 : f32 to vector<8x64xf32>
    %425 = arith.mulf %421, %424 : vector<8x64xf32>
    %426 = math.absf %425 : vector<8x64xf32>
    %cst_168 = arith.constant 0.327591091 : f32
    %427 = vector.broadcast %cst_168 : f32 to vector<8x64xf32>
    %428 = arith.mulf %427, %426 : vector<8x64xf32>
    %cst_169 = arith.constant 1.000000e+00 : f32
    %429 = vector.broadcast %cst_169 : f32 to vector<8x64xf32>
    %430 = arith.addf %429, %428 : vector<8x64xf32>
    %cst_170 = arith.constant 1.000000e+00 : f32
    %431 = vector.broadcast %cst_170 : f32 to vector<8x64xf32>
    %432 = arith.divf %431, %430 : vector<8x64xf32>
    %cst_171 = arith.constant 1.06140542 : f32
    %433 = vector.broadcast %cst_171 : f32 to vector<8x64xf32>
    %434 = arith.mulf %433, %432 : vector<8x64xf32>
    %cst_172 = arith.constant -1.45315206 : f32
    %435 = vector.broadcast %cst_172 : f32 to vector<8x64xf32>
    %436 = arith.addf %434, %435 : vector<8x64xf32>
    %437 = arith.mulf %436, %432 : vector<8x64xf32>
    %cst_173 = arith.constant 1.42141378 : f32
    %438 = vector.broadcast %cst_173 : f32 to vector<8x64xf32>
    %439 = arith.addf %437, %438 : vector<8x64xf32>
    %440 = arith.mulf %439, %432 : vector<8x64xf32>
    %cst_174 = arith.constant -0.284496725 : f32
    %441 = vector.broadcast %cst_174 : f32 to vector<8x64xf32>
    %442 = arith.addf %440, %441 : vector<8x64xf32>
    %443 = arith.mulf %442, %432 : vector<8x64xf32>
    %cst_175 = arith.constant 0.254829586 : f32
    %444 = vector.broadcast %cst_175 : f32 to vector<8x64xf32>
    %445 = arith.addf %443, %444 : vector<8x64xf32>
    %446 = arith.mulf %445, %432 : vector<8x64xf32>
    %cst_176 = arith.constant 0.000000e+00 : f32
    %447 = vector.broadcast %cst_176 : f32 to vector<8x64xf32>
    %448 = arith.subf %447, %426 : vector<8x64xf32>
    %449 = arith.mulf %448, %426 : vector<8x64xf32>
    %450 = math.exp %449 : vector<8x64xf32>
    %451 = arith.mulf %446, %450 : vector<8x64xf32>
    %cst_177 = arith.constant 1.000000e+00 : f32
    %452 = vector.broadcast %cst_177 : f32 to vector<8x64xf32>
    %453 = arith.subf %452, %451 : vector<8x64xf32>
    %cst_178 = arith.constant 0.000000e+00 : f32
    %454 = vector.broadcast %cst_178 : f32 to vector<8x64xf32>
    %455 = arith.cmpf oge, %425, %454 : vector<8x64xf32>
    %cst_179 = arith.constant 0.000000e+00 : f32
    %456 = vector.broadcast %cst_179 : f32 to vector<8x64xf32>
    %457 = arith.subf %456, %453 : vector<8x64xf32>
    %458 = arith.select %455, %453, %457 : vector<8x64xi1>, vector<8x64xf32>
    %cst_180 = arith.constant 1.000000e+00 : f32
    %459 = vector.broadcast %cst_180 : f32 to vector<8x64xf32>
    %460 = arith.addf %459, %458 : vector<8x64xf32>
    %461 = arith.mulf %423, %460 : vector<8x64xf32>
    %cst_181 = arith.constant dense<0.000000e+00> : vector<8x32xf32>
    %462 = tpu.matmul %461, %299, %cst_181 {dimension_numbers = #tpu.dot_dimension_numbers<[1], [0], [0], [1], [0, 0, 1, 1], [], []>} : vector<8x64xf32>, vector<64x32xf32>, vector<8x32xf32> -> vector<8x32xf32>
    %463 = vector.broadcast %309 : vector<1x32xf32> to vector<8x32xf32>
    %464 = arith.addf %462, %463 : vector<8x32xf32>
    %465 = arith.addf %464, %396 : vector<8x32xf32>
    %c0_182 = arith.constant 0 : index
    %c0_183 = arith.constant 0 : index
    %c0_184 = arith.constant 0 : index
    %466 = vector.load %arg13[%c0_182, %c0_183, %c0_184] : memref<1x8x32xf32, #tpu.memory_space<vmem>>, vector<1x8x32xf32>
    %467 = vector.shape_cast %466 : vector<1x8x32xf32> to vector<8x32xf32>
    %468 = vector.shape_cast %465 : vector<8x32xf32> to vector<1x8x32xf32>
    tpu.vector_store %arg13[%c0_182, %c0_183, %c0_184], %468 {strides = array<i32>} : memref<1x8x32xf32, #tpu.memory_space<vmem>>, vector<1x8x32xf32>,
    return
  }
  func.func @transform_0(%arg0: i32) -> (i32, i32, i32) {
    %c0_i32 = arith.constant 0 : i32
    %c0_i32_0 = arith.constant 0 : i32
    %c0_i32_1 = arith.constant 0 : i32
    return %arg0, %c0_i32, %c0_i32_0 : i32, i32, i32
  }
  func.func @transform_1(%arg0: i32) -> (i32, i32, i32) {
    %c0_i32 = arith.constant 0 : i32
    %c0_i32_0 = arith.constant 0 : i32
    %c0_i32_1 = arith.constant 0 : i32
    return %arg0, %c0_i32, %c0_i32_0 : i32, i32, i32
  }
  func.func @transform_2(%arg0: i32) -> (i32, i32) {
    %c0_i32 = arith.constant 0 : i32
    %c0_i32_0 = arith.constant 0 : i32
    %c0_i32_1 = arith.constant 0 : i32
    return %c0_i32, %c0_i32_0 : i32, i32
  }
  func.func @transform_3(%arg0: i32) -> (i32, i32) {
    %c0_i32 = arith.constant 0 : i32
    %c0_i32_0 = arith.constant 0 : i32
    %c0_i32_1 = arith.constant 0 : i32
    return %c0_i32, %c0_i32_0 : i32, i32
  }
  func.func @transform_4(%arg0: i32) -> (i32, i32) {
    %c0_i32 = arith.constant 0 : i32
    %c0_i32_0 = arith.constant 0 : i32
    %c0_i32_1 = arith.constant 0 : i32
    return %c0_i32, %c0_i32_0 : i32, i32
  }
  func.func @transform_5(%arg0: i32) -> (i32, i32) {
    %c0_i32 = arith.constant 0 : i32
    %c0_i32_0 = arith.constant 0 : i32
    %c0_i32_1 = arith.constant 0 : i32
    return %c0_i32, %c0_i32_0 : i32, i32
  }
  func.func @transform_6(%arg0: i32) -> (i32, i32) {
    %c0_i32 = arith.constant 0 : i32
    %c0_i32_0 = arith.constant 0 : i32
    %c0_i32_1 = arith.constant 0 : i32
    return %c0_i32, %c0_i32_0 : i32, i32
  }
  func.func @transform_7(%arg0: i32) -> (i32, i32, i32) {
    %c0_i32 = arith.constant 0 : i32
    %c0_i32_0 = arith.constant 0 : i32
    %c0_i32_1 = arith.constant 0 : i32
    %c0_i32_2 = arith.constant 0 : i32
    return %c0_i32, %c0_i32_0, %c0_i32_1 : i32, i32, i32
  }
  func.func @transform_8(%arg0: i32) -> (i32, i32, i32) {
    %c0_i32 = arith.constant 0 : i32
    %c0_i32_0 = arith.constant 0 : i32
    %c0_i32_1 = arith.constant 0 : i32
    %c0_i32_2 = arith.constant 0 : i32
    return %c0_i32, %c0_i32_0, %c0_i32_1 : i32, i32, i32
  }
  func.func @transform_9(%arg0: i32) -> (i32, i32, i32) {
    %c0_i32 = arith.constant 0 : i32
    %c0_i32_0 = arith.constant 0 : i32
    %c0_i32_1 = arith.constant 0 : i32
    %c0_i32_2 = arith.constant 0 : i32
    return %c0_i32, %c0_i32_0, %c0_i32_1 : i32, i32, i32
  }
  func.func @transform_10(%arg0: i32) -> (i32, i32, i32) {
    %c0_i32 = arith.constant 0 : i32
    %c0_i32_0 = arith.constant 0 : i32
    %c0_i32_1 = arith.constant 0 : i32
    %c0_i32_2 = arith.constant 0 : i32
    return %c0_i32, %c0_i32_0, %c0_i32_1 : i32, i32, i32
  }
  func.func @transform_11(%arg0: i32) -> (i32, i32, i32) {
    %c0_i32 = arith.constant 0 : i32
    %c0_i32_0 = arith.constant 0 : i32
    %c0_i32_1 = arith.constant 0 : i32
    %c0_i32_2 = arith.constant 0 : i32
    return %c0_i32, %c0_i32_0, %c0_i32_1 : i32, i32, i32
  }
  func.func @transform_12(%arg0: i32) -> (i32, i32, i32) {
    %c0_i32 = arith.constant 0 : i32
    %c0_i32_0 = arith.constant 0 : i32
    %c0_i32_1 = arith.constant 0 : i32
    return %arg0, %c0_i32, %c0_i32_0 : i32, i32, i32
  }
}

</mosaic_0001>

<llo_original>
// kernel: tpu_custom_call.1
$region0: #{tpu_custom_call.1}
  #allocation0 [shape = 'u32[]', space=smem, size = 0x4, offset = 0x4, fixed_abs, tag = 'smem constant byte address 0x4 - core index']
  #allocation1 [shape = 'u32[144,128]{1,0:T(1,128)}', space=vmem, size = 0x12000, scoped, tag = 'internal scratch']
  #allocation2 [shape = 'f32[8,32]{1,0:T(8,128)}', space=vmem, size = 0x1000, scoped, tag = 'scratch operand']
  %s0 = inlined_call_operand.vmem [shape: f32[2,16,32], index: 0, kind: input, shape index: {}]
  %s1 = inlined_call_operand.vmem [shape: f32[2,8,32], index: 1, kind: input, shape index: {}]
  %s2 = inlined_call_operand.hbm [shape: f32[32,96], index: 2, kind: input, shape index: {}]
  %s3 = inlined_call_operand.hbm [shape: f32[32,32], index: 3, kind: input, shape index: {}]
  %s4 = inlined_call_operand.hbm [shape: f32[32,64], index: 4, kind: input, shape index: {}]
  %s5 = inlined_call_operand.vmem [shape: f32[64,32], index: 5, kind: input, shape index: {}]
  %s6 = inlined_call_operand.hbm [shape: f32[8,64], index: 6, kind: input, shape index: {}]
  %s7 = inlined_call_operand.vmem [shape: f32[2,32,96], index: 7, kind: input, shape index: {}]
  %s8 = inlined_call_operand.vmem [shape: f32[2,32,32], index: 8, kind: input, shape index: {}]
  %s9 = inlined_call_operand.vmem [shape: f32[2,32,64], index: 9, kind: input, shape index: {}]
  %s10 = inlined_call_operand.vmem [shape: f32[2,64,32], index: 10, kind: input, shape index: {}]
  %s11 = inlined_call_operand.hbm [shape: f32[2,8,64], index: 11, kind: input, shape index: {}]
  %s12 = inlined_call_operand.hbm [shape: f32[2,8,32], index: 12, kind: output, shape index: {}]
  %s13 = sld [smem:[#allocation0]]
  $region101: #{tpu_custom_call.1} parent=0
    _
  %s15 = ssub.s32 1, %s13
  %s16 = scalar_select 0, %s15, %s13
  $region1: #{tpu_custom_call.1} parent=0
    #allocation3 [shape = 'u8[16384]{0}', space=vmem, size = 0x4000, scoped, tag = 'input window, operand 2, single buffered']
    #allocation4 [shape = 's32[2]{0}', space=sflag, size = 0x8, scoped, tag = 'scoped memory for tpu_custom_call.1']
    #allocation5 [shape = 's32[2]{0}', space=sflag, size = 0x8, scoped, tag = 'scoped memory for tpu_custom_call.1']
    #allocation6 [shape = 'u8[16384]{0}', space=vmem, size = 0x4000, scoped, tag = 'input window, operand 3, single buffered']
    #allocation7 [shape = 's32[1]{0}', space=sflag, size = 0x4, scoped, tag = 'scoped memory for tpu_custom_call.1']
    #allocation8 [shape = 'u8[16384]{0}', space=vmem, size = 0x4000, scoped, tag = 'input window, operand 4, single buffered']
    #allocation9 [shape = 'u8[4096]{0}', space=vmem, size = 0x1000, scoped, tag = 'input window, operand 6, single buffered']
    #allocation10 [shape = 's32[1]{0}', space=sflag, size = 0x4, scoped, tag = 'scoped memory for tpu_custom_call.1']
    #allocation11 [shape = 'u8[8192]{0}', space=vmem, size = 0x2000, scoped, tag = 'input window, operand 11, single buffered']
    #allocation12 [shape = 'u8[8192]{0}', space=vmem, size = 0x2000, scoped, tag = 'output window, operand 0']
    %17 = vsyncpa [#allocation4], 0
    %18 = vsyncpa [#allocation7], 0
    %19 = vsyncpa [#allocation10], 0
    %20 = vsyncpa [#allocation5], 0
    %s21 = scalar_lea.sflag [#allocation5], 1
    %22 = vsyncpa %s21, 0
    loop: start=0, step=1, limit=4
    $region2: #{tpu_custom_call.1} parent=1 // loop_pre_header
      _
    $region3: #{tpu_custom_call.1} parent=1 // loop_header
      %s24 = sphi 0, %s28
      %p25 = scmp.ge.s32.totalorder %s24, 4
      %s34 = sphi 0, %s36
      %s37 = sphi 0, %s34
      %s38 = sphi 0, %s37
      %s54 = sphi 0, %s38
      %s60 = sphi 0, %s62
      %s63 = sphi 0, %s60
      %s64 = sphi 0, %s63
      %s80 = sphi 0, %s64
      %s84 = sphi 0, %s84
      %s86 = sphi 0, %s84
      %s87 = sphi 0, %s86
      %s101 = sphi 0, %s87
      %s105 = sphi 0, %s105
      %s107 = sphi 0, %s105
      %s108 = sphi 0, %s107
      %s122 = sphi 0, %s108
      %s126 = sphi 0, %s126
      %s128 = sphi 0, %s126
      %s129 = sphi 0, %s128
      %s143 = sphi 0, %s129
      %s147 = sphi 0, %s147
      %s149 = sphi 0, %s147
      %s150 = sphi 0, %s149
      %s164 = sphi 0, %s150
      %s168 = sphi 0, %s168
      %s170 = sphi 0, %s168
      %s171 = sphi 0, %s170
      %s185 = sphi 0, %s171
      %s189 = sphi 0, %s189
      %s191 = sphi 0, %s189
      %s192 = sphi 0, %s191
      %s206 = sphi 0, %s192
      %s210 = sphi 0, %s210
      %s212 = sphi 0, %s210
      %s213 = sphi 0, %s212
      %s227 = sphi 0, %s213
      %s231 = sphi 0, %s231
      %s233 = sphi 0, %s231
      %s234 = sphi 0, %s233
      %s248 = sphi 0, %s234
      %s252 = sphi 0, %s252
      %s254 = sphi 0, %s252
      %s255 = sphi 0, %s254
      %s269 = sphi 0, %s255
      %s273 = sphi 0, %s273
      %s275 = sphi 0, %s273
      %s276 = sphi 0, %s275
      %s290 = sphi 0, %s276
      %s296 = sphi 0, %s298
      %s299 = sphi 0, %s296
      %s300 = sphi 0, %s299
      %s316 = sphi 0, %s300
    $region4: #{tpu_custom_call.1} parent=1 // loop_header_branch
      %27 = sbr.rel (%p25) target = $region8
    $region5: #{tpu_custom_call.1} parent=1 // loop_body
      %s29 = ssub.s32 %s24, 1
      %s30 = ssub.s32 %s24, 2
      %s31 = sadd.s32 %s24, 1
      %s32 = ssub.s32 %s24, %s31
      %p33 = scmp.eq.s32.totalorder %s32, 0
      %s35 = sadd.s32 %s34, 1
      %s36 = scalar_select %p33, %s34, %s35
      %p39 = pneg %p33
      %p40 = scmp.eq.s32.totalorder %s24, 1
      %p41 = por %p39, %p40
      %p42 = scmp.ne.s32.totalorder %s34, %s37
      %p43 = scmp.eq.s32.totalorder %s24, 0
      %p44 = por %p42, %p43
      %p45 = scmp.ne.s32.totalorder %s34, %s37
      %p46 = scmp.eq.s32.totalorder %s29, 1
      %p47 = por %p45, %p46
      %p48 = scmp.ne.s32.totalorder %s37, %s38
      %p49 = scmp.eq.s32.totalorder %s29, 0
      %p50 = por %p48, %p49
      %p51 = scmp.ne.s32.totalorder %s37, %s38
      %p52 = scmp.eq.s32.totalorder %s30, 1
      %p53 = por %p51, %p52
      %p55 = scmp.ne.s32.totalorder %s38, %s54
      %p56 = scmp.eq.s32.totalorder %s30, 0
      %p57 = por %p55, %p56
      %s58 = ssub.s32 %s24, %s31
      %p59 = scmp.eq.s32.totalorder %s58, 0
      %s61 = sadd.s32 %s60, 1
      %s62 = scalar_select %p59, %s60, %s61
      %p65 = pneg %p59
      %p66 = scmp.eq.s32.totalorder %s24, 1
      %p67 = por %p65, %p66
      %p68 = scmp.ne.s32.totalorder %s60, %s63
      %p69 = scmp.eq.s32.totalorder %s24, 0
      %p70 = por %p68, %p69
      %p71 = scmp.ne.s32.totalorder %s60, %s63
      %p72 = scmp.eq.s32.totalorder %s29, 1
      %p73 = por %p71, %p72
      %p74 = scmp.ne.s32.totalorder %s63, %s64
      %p75 = scmp.eq.s32.totalorder %s29, 0
      %p76 = por %p74, %p75
      %p77 = scmp.ne.s32.totalorder %s63, %s64
      %p78 = scmp.eq.s32.totalorder %s30, 1
      %p79 = por %p77, %p78
      %p81 = scmp.ne.s32.totalorder %s64, %s80
      %p82 = scmp.eq.s32.totalorder %s30, 0
      %p83 = por %p81, %p82
      %s85 = sadd.s32 %s84, 1
      %p88 = scmp.eq.s32.totalorder %s24, 1
      %p89 = scmp.ne.s32.totalorder %s84, %s86
      %p90 = scmp.eq.s32.totalorder %s24, 0
      %p91 = por %p89, %p90
      %p92 = scmp.ne.s32.totalorder %s84, %s86
      %p93 = scmp.eq.s32.totalorder %s29, 1
      %p94 = por %p92, %p93
      %p95 = scmp.ne.s32.totalorder %s86, %s87
      %p96 = scmp.eq.s32.totalorder %s29, 0
      %p97 = por %p95, %p96
      %p98 = scmp.ne.s32.totalorder %s86, %s87
      %p99 = scmp.eq.s32.totalorder %s30, 1
      %p100 = por %p98, %p99
      %p102 = scmp.ne.s32.totalorder %s87, %s101
      %p103 = scmp.eq.s32.totalorder %s30, 0
      %p104 = por %p102, %p103
      %s106 = sadd.s32 %s105, 1
      %p109 = scmp.eq.s32.totalorder %s24, 1
      %p110 = scmp.ne.s32.totalorder %s105, %s107
      %p111 = scmp.eq.s32.totalorder %s24, 0
      %p112 = por %p110, %p111
      %p113 = scmp.ne.s32.totalorder %s105, %s107
      %p114 = scmp.eq.s32.totalorder %s29, 1
      %p115 = por %p113, %p114
      %p116 = scmp.ne.s32.totalorder %s107, %s108
      %p117 = scmp.eq.s32.totalorder %s29, 0
      %p118 = por %p116, %p117
      %p119 = scmp.ne.s32.totalorder %s107, %s108
      %p120 = scmp.eq.s32.totalorder %s30, 1
      %p121 = por %p119, %p120
      %p123 = scmp.ne.s32.totalorder %s108, %s122
      %p124 = scmp.eq.s32.totalorder %s30, 0
      %p125 = por %p123, %p124
      %s127 = sadd.s32 %s126, 1
      %p130 = scmp.eq.s32.totalorder %s24, 1
      %p131 = scmp.ne.s32.totalorder %s126, %s128
      %p132 = scmp.eq.s32.totalorder %s24, 0
      %p133 = por %p131, %p132
      %p134 = scmp.ne.s32.totalorder %s126, %s128
      %p135 = scmp.eq.s32.totalorder %s29, 1
      %p136 = por %p134, %p135
      %p137 = scmp.ne.s32.totalorder %s128, %s129
      %p138 = scmp.eq.s32.totalorder %s29, 0
      %p139 = por %p137, %p138
      %p140 = scmp.ne.s32.totalorder %s128, %s129
      %p141 = scmp.eq.s32.totalorder %s30, 1
      %p142 = por %p140, %p141
      %p144 = scmp.ne.s32.totalorder %s129, %s143
      %p145 = scmp.eq.s32.totalorder %s30, 0
      %p146 = por %p144, %p145
      %s148 = sadd.s32 %s147, 1
      %p151 = scmp.eq.s32.totalorder %s24, 1
      %p152 = scmp.ne.s32.totalorder %s147, %s149
      %p153 = scmp.eq.s32.totalorder %s24, 0
      %p154 = por %p152, %p153
      %p155 = scmp.ne.s32.totalorder %s147, %s149
      %p156 = scmp.eq.s32.totalorder %s29, 1
      %p157 = por %p155, %p156
      %p158 = scmp.ne.s32.totalorder %s149, %s150
      %p159 = scmp.eq.s32.totalorder %s29, 0
      %p160 = por %p158, %p159
      %p161 = scmp.ne.s32.totalorder %s149, %s150
      %p162 = scmp.eq.s32.totalorder %s30, 1
      %p163 = por %p161, %p162
      %p165 = scmp.ne.s32.totalorder %s150, %s164
      %p166 = scmp.eq.s32.totalorder %s30, 0
      %p167 = por %p165, %p166
      %s169 = sadd.s32 %s168, 1
      %p172 = scmp.eq.s32.totalorder %s24, 1
      %p173 = scmp.ne.s32.totalorder %s168, %s170
      %p174 = scmp.eq.s32.totalorder %s24, 0
      %p175 = por %p173, %p174
      %p176 = scmp.ne.s32.totalorder %s168, %s170
      %p177 = scmp.eq.s32.totalorder %s29, 1
      %p178 = por %p176, %p177
      %p179 = scmp.ne.s32.totalorder %s170, %s171
      %p180 = scmp.eq.s32.totalorder %s29, 0
      %p181 = por %p179, %p180
      %p182 = scmp.ne.s32.totalorder %s170, %s171
      %p183 = scmp.eq.s32.totalorder %s30, 1
      %p184 = por %p182, %p183
      %p186 = scmp.ne.s32.totalorder %s171, %s185
      %p187 = scmp.eq.s32.totalorder %s30, 0
      %p188 = por %p186, %p187
      %s190 = sadd.s32 %s189, 1
      %p193 = scmp.eq.s32.totalorder %s24, 1
      %p194 = scmp.ne.s32.totalorder %s189, %s191
      %p195 = scmp.eq.s32.totalorder %s24, 0
      %p196 = por %p194, %p195
      %p197 = scmp.ne.s32.totalorder %s189, %s191
      %p198 = scmp.eq.s32.totalorder %s29, 1
      %p199 = por %p197, %p198
      %p200 = scmp.ne.s32.totalorder %s191, %s192
      %p201 = scmp.eq.s32.totalorder %s29, 0
      %p202 = por %p200, %p201
      %p203 = scmp.ne.s32.totalorder %s191, %s192
      %p204 = scmp.eq.s32.totalorder %s30, 1
      %p205 = por %p203, %p204
      %p207 = scmp.ne.s32.totalorder %s192, %s206
      %p208 = scmp.eq.s32.totalorder %s30, 0
      %p209 = por %p207, %p208
      %s211 = sadd.s32 %s210, 1
      %p214 = scmp.eq.s32.totalorder %s24, 1
      %p215 = scmp.ne.s32.totalorder %s210, %s212
      %p216 = scmp.eq.s32.totalorder %s24, 0
      %p217 = por %p215, %p216
      %p218 = scmp.ne.s32.totalorder %s210, %s212
      %p219 = scmp.eq.s32.totalorder %s29, 1
      %p220 = por %p218, %p219
      %p221 = scmp.ne.s32.totalorder %s212, %s213
      %p222 = scmp.eq.s32.totalorder %s29, 0
      %p223 = por %p221, %p222
      %p224 = scmp.ne.s32.totalorder %s212, %s213
      %p225 = scmp.eq.s32.totalorder %s30, 1
      %p226 = por %p224, %p225
      %p228 = scmp.ne.s32.totalorder %s213, %s227
      %p229 = scmp.eq.s32.totalorder %s30, 0
      %p230 = por %p228, %p229
      %s232 = sadd.s32 %s231, 1
      %p235 = scmp.eq.s32.totalorder %s24, 1
      %p236 = scmp.ne.s32.totalorder %s231, %s233
      %p237 = scmp.eq.s32.totalorder %s24, 0
      %p238 = por %p236, %p237
      %p239 = scmp.ne.s32.totalorder %s231, %s233
      %p240 = scmp.eq.s32.totalorder %s29, 1
      %p241 = por %p239, %p240
      %p242 = scmp.ne.s32.totalorder %s233, %s234
      %p243 = scmp.eq.s32.totalorder %s29, 0
      %p244 = por %p242, %p243
      %p245 = scmp.ne.s32.totalorder %s233, %s234
      %p246 = scmp.eq.s32.totalorder %s30, 1
      %p247 = por %p245, %p246
      %p249 = scmp.ne.s32.totalorder %s234, %s248
      %p250 = scmp.eq.s32.totalorder %s30, 0
      %p251 = por %p249, %p250
      %s253 = sadd.s32 %s252, 1
      %p256 = scmp.eq.s32.totalorder %s24, 1
      %p257 = scmp.ne.s32.totalorder %s252, %s254
      %p258 = scmp.eq.s32.totalorder %s24, 0
      %p259 = por %p257, %p258
      %p260 = scmp.ne.s32.totalorder %s252, %s254
      %p261 = scmp.eq.s32.totalorder %s29, 1
      %p262 = por %p260, %p261
      %p263 = scmp.ne.s32.totalorder %s254, %s255
      %p264 = scmp.eq.s32.totalorder %s29, 0
      %p265 = por %p263, %p264
      %p266 = scmp.ne.s32.totalorder %s254, %s255
      %p267 = scmp.eq.s32.totalorder %s30, 1
      %p268 = por %p266, %p267
      %p270 = scmp.ne.s32.totalorder %s255, %s269
      %p271 = scmp.eq.s32.totalorder %s30, 0
      %p272 = por %p270, %p271
      %s274 = sadd.s32 %s273, 1
      %p277 = scmp.eq.s32.totalorder %s24, 1
      %p278 = scmp.ne.s32.totalorder %s273, %s275
      %p279 = scmp.eq.s32.totalorder %s24, 0
      %p280 = por %p278, %p279
      %p281 = scmp.ne.s32.totalorder %s273, %s275
      %p282 = scmp.eq.s32.totalorder %s29, 1
      %p283 = por %p281, %p282
      %p284 = scmp.ne.s32.totalorder %s275, %s276
      %p285 = scmp.eq.s32.totalorder %s29, 0
      %p286 = por %p284, %p285
      %p287 = scmp.ne.s32.totalorder %s275, %s276
      %p288 = scmp.eq.s32.totalorder %s30, 1
      %p289 = por %p287, %p288
      %p291 = scmp.ne.s32.totalorder %s276, %s290
      %p292 = scmp.eq.s32.totalorder %s30, 0
      %p293 = por %p291, %p292
      %s294 = ssub.s32 %s24, %s31
      %p295 = scmp.eq.s32.totalorder %s294, 0
      %s297 = sadd.s32 %s296, 1
      %s298 = scalar_select %p295, %s296, %s297
      %p301 = pneg %p295
      %p302 = scmp.eq.s32.totalorder %s24, 1
      %p303 = por %p301, %p302
      %p304 = scmp.ne.s32.totalorder %s296, %s299
      %p305 = scmp.eq.s32.totalorder %s24, 0
      %p306 = por %p304, %p305
      %p307 = scmp.ne.s32.totalorder %s296, %s299
      %p308 = scmp.eq.s32.totalorder %s29, 1
      %p309 = por %p307, %p308
      %p310 = scmp.ne.s32.totalorder %s299, %s300
      %p311 = scmp.eq.s32.totalorder %s29, 0
      %p312 = por %p310, %p311
      %p313 = scmp.ne.s32.totalorder %s299, %s300
      %p314 = scmp.eq.s32.totalorder %s30, 1
      %p315 = por %p313, %p314
      %p317 = scmp.ne.s32.totalorder %s300, %s316
      %p318 = scmp.eq.s32.totalorder %s30, 0
      %p319 = por %p317, %p318
      %p320 = scmp.le.s32.totalorder 1, %s24
      %p321 = scmp.lt.s32.totalorder %s24, 3
      %p322 = pnand %p320, %p321
      %p323 = pneg %p322
      // Predicated region
      $region9: #{tpu_custom_call.1} parent=5 // pred_check
        _
      $region10: #{tpu_custom_call.1} parent=5 // pred_check_branch
        %325 = sbr.rel (%p322) target = $region12
      $region11: #{tpu_custom_call.1} parent=5 // pred_region
        %s326 = ssub.s32 %s24, 1
        // Predicated region
        $region13: #{tpu_custom_call.1} parent=11 // pred_check
          %p327 = pneg %p97
        $region14: #{tpu_custom_call.1} parent=11 // pred_check_branch
          %329 = sbr.rel (%p327) target = $region16
        $region15: #{tpu_custom_call.1} parent=11 // pred_region
          %s331 = ssub.s32 512, 512
          %332 = vsyncadd [#allocation4], %s331
          %s333 = sshll.u32 [#allocation3], 4
          %s334 = int_to_ptr.vmem [resolvable:$true] %s333
          %339 = dma.hbm_to_vmem [thread:$0]  %s2, 512, %s334, [#allocation4], 128, 128, 8
        $region16: #{tpu_custom_call.1} parent=11 // pred_fallthru
          _
        // Predicated region
        $region17: #{tpu_custom_call.1} parent=11 // pred_check
          %p340 = pneg %p118
        $region18: #{tpu_custom_call.1} parent=11 // pred_check_branch
          %342 = sbr.rel (%p340) target = $region20
        $region19: #{tpu_custom_call.1} parent=11 // pred_region
          %s344 = ssub.s32 512, 512
          %345 = vsyncadd [#allocation7], %s344
          %s346 = sshll.u32 [#allocation6], 4
          %s347 = int_to_ptr.vmem [resolvable:$true] %s346
          %352 = dma.hbm_to_vmem [thread:$0]  %s3, 512, %s347, [#allocation7], 128, 128, 8
        $region20: #{tpu_custom_call.1} parent=11 // pred_fallthru
          _
        // Predicated region
        $region21: #{tpu_custom_call.1} parent=11 // pred_check
          %p353 = pneg %p139
        $region22: #{tpu_custom_call.1} parent=11 // pred_check_branch
          %355 = sbr.rel (%p353) target = $region24
        $region23: #{tpu_custom_call.1} parent=11 // pred_region
          %s357 = ssub.s32 512, 512
          %358 = vsyncadd [#allocation7], %s357
          %s359 = sshll.u32 [#allocation8], 4
          %s360 = int_to_ptr.vmem [resolvable:$true] %s359
          %365 = dma.hbm_to_vmem [thread:$0]  %s4, 512, %s360, [#allocation7], 128, 128, 8
        $region24: #{tpu_custom_call.1} parent=11 // pred_fallthru
          _
        // Predicated region
        $region25: #{tpu_custom_call.1} parent=11 // pred_check
          %p366 = pneg %p160
        $region26: #{tpu_custom_call.1} parent=11 // pred_check_branch
          %368 = sbr.rel (%p366) target = $region28
        $region27: #{tpu_custom_call.1} parent=11 // pred_region
          _
        $region28: #{tpu_custom_call.1} parent=11 // pred_fallthru
          _
        // Predicated region
        $region29: #{tpu_custom_call.1} parent=11 // pred_check
          %p369 = pneg %p181
        $region30: #{tpu_custom_call.1} parent=11 // pred_check_branch
          %371 = sbr.rel (%p369) target = $region32
        $region31: #{tpu_custom_call.1} parent=11 // pred_region
          %s373 = ssub.s32 128, 128
          %374 = vsyncadd [#allocation10], %s373
          %s376 = sshll.u32 [#allocation9], 4
          %s377 = int_to_ptr.vmem [resolvable:$true] %s376
          %379 = dma.hbm_to_vmem [thread:$0]  %s6, 128, %s377, [#allocation10]
        $region32: #{tpu_custom_call.1} parent=11 // pred_fallthru
          _
        // Predicated region
        $region33: #{tpu_custom_call.1} parent=11 // pred_check
          %p380 = pneg %p202
        $region34: #{tpu_custom_call.1} parent=11 // pred_check_branch
          %382 = sbr.rel (%p380) target = $region36
        $region35: #{tpu_custom_call.1} parent=11 // pred_region
          _
        $region36: #{tpu_custom_call.1} parent=11 // pred_fallthru
          _
        // Predicated region
        $region37: #{tpu_custom_call.1} parent=11 // pred_check
          %p383 = pneg %p223
        $region38: #{tpu_custom_call.1} parent=11 // pred_check_branch
          %385 = sbr.rel (%p383) target = $region40
        $region39: #{tpu_custom_call.1} parent=11 // pred_region
          _
        $region40: #{tpu_custom_call.1} parent=11 // pred_fallthru
          _
        // Predicated region
        $region41: #{tpu_custom_call.1} parent=11 // pred_check
          %p386 = pneg %p244
        $region42: #{tpu_custom_call.1} parent=11 // pred_check_branch
          %388 = sbr.rel (%p386) target = $region44
        $region43: #{tpu_custom_call.1} parent=11 // pred_region
          _
        $region44: #{tpu_custom_call.1} parent=11 // pred_fallthru
          _
        // Predicated region
        $region45: #{tpu_custom_call.1} parent=11 // pred_check
          %p389 = pneg %p265
        $region46: #{tpu_custom_call.1} parent=11 // pred_check_branch
          %391 = sbr.rel (%p389) target = $region48
        $region47: #{tpu_custom_call.1} parent=11 // pred_region
          _
        $region48: #{tpu_custom_call.1} parent=11 // pred_fallthru
          _
        // Predicated region
        $region49: #{tpu_custom_call.1} parent=11 // pred_check
          %p392 = pneg %p286
        $region50: #{tpu_custom_call.1} parent=11 // pred_check_branch
          %394 = sbr.rel (%p392) target = $region52
        $region51: #{tpu_custom_call.1} parent=11 // pred_region
          %s396 = ssub.s32 256, 256
          %397 = vsyncadd [#allocation10], %s396
          %s398 = sshll.u32 [#allocation11], 4
          %s399 = int_to_ptr.vmem [resolvable:$true] %s398
          %404 = dma.hbm_to_vmem [thread:$0]  %s11, 256, %s399, [#allocation10], 128, 128, 8
        $region52: #{tpu_custom_call.1} parent=11 // pred_fallthru
          _
      $region12: #{tpu_custom_call.1} parent=5 // pred_fallthru
        _
      %p405 = scmp.lt.s32.totalorder %s24, 2
      // Predicated region
      $region53: #{tpu_custom_call.1} parent=5 // pred_check
        %p406 = pneg %p405
      $region54: #{tpu_custom_call.1} parent=5 // pred_check_branch
        %408 = sbr.rel (%p406) target = $region56
      $region55: #{tpu_custom_call.1} parent=5 // pred_region
        // Predicated region
        $region57: #{tpu_custom_call.1} parent=55 // pred_check
          %p409 = pneg %p44
        $region58: #{tpu_custom_call.1} parent=55 // pred_check_branch
          %411 = sbr.rel (%p409) target = $region60
        $region59: #{tpu_custom_call.1} parent=55 // pred_region
          %p412 = scmp.lt.s32.totalorder %s24, 1
          %s413 = scalar_select %p412, %s24, 1
          %s414 = smul.addr %s413, 2
          %s415 = smul.addr %s414, 8
          %s416 = scalar_lea.vmem %s0, %s415
        $region60: #{tpu_custom_call.1} parent=55 // pred_fallthru
          _
        // Predicated region
        $region61: #{tpu_custom_call.1} parent=55 // pred_check
          %p417 = pneg %p70
        $region62: #{tpu_custom_call.1} parent=55 // pred_check_branch
          %419 = sbr.rel (%p417) target = $region64
        $region63: #{tpu_custom_call.1} parent=55 // pred_region
          %p420 = scmp.lt.s32.totalorder %s24, 1
          %s421 = scalar_select %p420, %s24, 1
          %s422 = smul.addr %s421, 8
          %s423 = scalar_lea.vmem %s1, %s422
        $region64: #{tpu_custom_call.1} parent=55 // pred_fallthru
          _
      $region56: #{tpu_custom_call.1} parent=5 // pred_fallthru
        _
      %p424 = scmp.le.s32.totalorder 1, %s24
      %p425 = scmp.lt.s32.totalorder %s24, 3
      %p426 = pnand %p424, %p425
      %p427 = pneg %p426
      // Predicated region
      $region65: #{tpu_custom_call.1} parent=5 // pred_check
        _
      $region66: #{tpu_custom_call.1} parent=5 // pred_check_branch
        %429 = sbr.rel (%p426) target = $region68
      $region67: #{tpu_custom_call.1} parent=5 // pred_region
        %s430 = ssub.s32 %s24, 1
        // Predicated region
        $region69: #{tpu_custom_call.1} parent=67 // pred_check
          %p431 = pneg %p97
        $region70: #{tpu_custom_call.1} parent=67 // pred_check_branch
          %433 = sbr.rel (%p431) target = $region72
        $region71: #{tpu_custom_call.1} parent=67 // pred_region
          %434 = dma.done [#allocation4], 512
        $region72: #{tpu_custom_call.1} parent=67 // pred_fallthru
          _
        // Predicated region
        $region73: #{tpu_custom_call.1} parent=67 // pred_check
          %p435 = pneg %p118
        $region74: #{tpu_custom_call.1} parent=67 // pred_check_branch
          %437 = sbr.rel (%p435) target = $region76
        $region75: #{tpu_custom_call.1} parent=67 // pred_region
          %438 = dma.done [#allocation7], 512
        $region76: #{tpu_custom_call.1} parent=67 // pred_fallthru
          _
        // Predicated region
        $region77: #{tpu_custom_call.1} parent=67 // pred_check
          %p439 = pneg %p139
        $region78: #{tpu_custom_call.1} parent=67 // pred_check_branch
          %441 = sbr.rel (%p439) target = $region80
        $region79: #{tpu_custom_call.1} parent=67 // pred_region
          %442 = dma.done [#allocation7], 512
        $region80: #{tpu_custom_call.1} parent=67 // pred_fallthru
          _
        // Predicated region
        $region81: #{tpu_custom_call.1} parent=67 // pred_check
          %p443 = pneg %p181
        $region82: #{tpu_custom_call.1} parent=67 // pred_check_branch
          %445 = sbr.rel (%p443) target = $region84
        $region83: #{tpu_custom_call.1} parent=67 // pred_region
          %446 = dma.done [#allocation10], 128
        $region84: #{tpu_custom_call.1} parent=67 // pred_fallthru
          _
        // Predicated region
        $region85: #{tpu_custom_call.1} parent=67 // pred_check
          %p447 = pneg %p286
        $region86: #{tpu_custom_call.1} parent=67 // pred_check_branch
          %449 = sbr.rel (%p447) target = $region88
        $region87: #{tpu_custom_call.1} parent=67 // pred_region
          %450 = dma.done [#allocation10], 256
        $region88: #{tpu_custom_call.1} parent=67 // pred_fallthru
          _
        %p451 = scmp.lt.s32.totalorder %s29, 1
        %s452 = scalar_select %p451, %s29, 1
        %s453 = smul.addr %s452, 2
        %s454 = smul.addr %s453, 8
        %s455 = scalar_lea.vmem %s0, %s454
        %p456 = pneg %p50
        %p457 = pneg %p47
        %p458 = scmp.lt.s32.totalorder %s29, 1
        %s459 = scalar_select %p458, %s29, 1
        %s460 = smul.addr %s459, 8
        %s461 = scalar_lea.vmem %s1, %s460
        %p462 = pneg %p76
        %p463 = pneg %p73
        %p464 = pneg %p97
        %p465 = pneg %p94
        %p466 = pneg %p118
        %p467 = pneg %p115
        %p468 = pneg %p139
        %p469 = pneg %p136
        %p470 = pneg %p160
        %p471 = pneg %p157
        %p472 = pneg %p181
        %p473 = pneg %p178
        %p474 = pneg %p202
        %p475 = pneg %p199
        %p476 = pneg %p223
        %p477 = pneg %p220
        %p478 = pneg %p244
        %p479 = pneg %p241
        %p480 = pneg %p265
        %p481 = pneg %p262
        %p482 = pneg %p286
        %p483 = pneg %p283
        %p484 = pneg %p312
        %p485 = pneg %p309
        %s486 = sand.u32 %s299, 1
        %s487 = scalar_lea.sflag [#allocation5], %s486
        %s488 = sand.u32 %s299, 1
        %s489 = smul.addr %s488, 8
        %s490 = scalar_lea.vmem [#allocation12], %s489
        %p491 = scmp.lt.s32.totalorder %s29, 1
        %s492 = scalar_select %p491, %s29, 1
        %s493 = smul.addr %s492, 2
        %s494 = smul.addr %s493, 8
        %s495 = scalar_lea.vmem %s0, %s494
        %p496 = scmp.lt.s32.totalorder %s29, 1
        %s497 = scalar_select %p496, %s29, 1
        %s498 = smul.addr %s497, 8
        %s499 = scalar_lea.vmem %s1, %s498
        %v500 = vld [vmem:[%s499] sm:$0xff]
        %v501 = vld [vmem:[%s495] sm:$0xff]
        %v502 = vld [vmem:[%s495 + $0x8] sm:$0xff]
        %v503 = vld [vmem:[#allocation3] sm:$0xff]
        %v504 = vld [vmem:[#allocation3 + $0x8] sm:$0xff]
        %v505 = vld [vmem:[#allocation3 + $0x10] sm:$0xff]
        %v506 = vld [vmem:[#allocation3 + $0x18] sm:$0xff]
        %v507 = vld [vmem:[#allocation6] sm:$0xff]
        %v508 = vld [vmem:[#allocation6 + $0x8] sm:$0xff]
        %v509 = vld [vmem:[#allocation6 + $0x10] sm:$0xff]
        %v510 = vld [vmem:[#allocation6 + $0x18] sm:$0xff]
        %v511 = vld [vmem:[#allocation8] sm:$0xff]
        %v512 = vld [vmem:[#allocation8 + $0x8] sm:$0xff]
        %v513 = vld [vmem:[#allocation8 + $0x10] sm:$0xff]
        %v514 = vld [vmem:[#allocation8 + $0x18] sm:$0xff]
        %v515 = vld [vmem:[%s5] sm:$0xff]
        %v516 = vld [vmem:[%s5 + $0x8] sm:$0xff]
        %v517 = vld [vmem:[%s5 + $0x10] sm:$0xff]
        %v518 = vld [vmem:[%s5 + $0x18] sm:$0xff]
        %v519 = vld [vmem:[%s5 + $0x20] sm:$0xff]
        %v520 = vld [vmem:[%s5 + $0x28] sm:$0xff]
        %v521 = vld [vmem:[%s5 + $0x30] sm:$0xff]
        %v522 = vld [vmem:[%s5 + $0x38] sm:$0xff]
        %v523 = vld [vmem:[#allocation9] sm:$0xff]
        %v524 = vlaneseq
        %v525 = vshrl.u32 %v524, 7
        %v526 = vsub.s32 0, %v525
        %v527 = vrot.slane %v523, %v526
        %vm528 = vcmask 261120
        %v530 = vsel %vm528, %v500, 0
        %532 = vmatprep.subr.mxu0 0.0
        %533 = vmatpush1.msra.mxu0 0.0
        %534 = vmatprep.subr.mxu0 0.0
        %535 = vmatpush1.msra.mxu0 0.0
        %536 = vmatprep.subr.mxu0 0.0
        %537 = vmatpush1.msra.mxu0 0.0
        %538 = vmatprep.subr.mxu0 0.0
        %539 = vmatpush1.msra.mxu0 0.0
        %540 = vmatprep.subr.mxu0 0.0
        %541 = vmatpush1.msra.mxu0 0.0
        %542 = vmatprep.subr.mxu0 0.0
        %543 = vmatpush1.msra.mxu0 0.0
        %544 = vmatprep.subr.mxu0 0.0
        %545 = vmatpush1.msra.mxu0 0.0
        %546 = vmatprep.subr.mxu0 0.0
        %547 = vmatpush1.msra.mxu0 0.0
        %548 = vmatprep.subr.mxu0 0.0
        %549 = vmatpush1.msra.mxu0 0.0
        %550 = vmatprep.subr.mxu0 0.0
        %551 = vmatpush1.msra.mxu0 0.0
        %552 = vmatprep.subr.mxu0 0.0
        %553 = vmatpush1.msra.mxu0 0.0
        %554 = vmatprep.subr.mxu0 0.0
        %555 = vmatpush1.msra.mxu0 0.0
        %556 = vmatprep.subr.mxu0 0.0
        %557 = vmatpush1.msra.mxu0 %v506
        %558 = vmatprep.subr.mxu0 0.0
        %559 = vmatpush1.msra.mxu0 %v505
        %560 = vmatprep.subr.mxu0 0.0
        %561 = vmatpush1.msra.mxu0 %v504
        %562 = vmatprep.subr.mxu0 0.0
        %563 = vmatpush1.msra.mxu0 %v503
        %564 = vmatprep.subr.mxu0 0.0
        %565 = vmatpush2.msra.mxu0 0.0
        %566 = vmatprep.subr.mxu0 0.0
        %567 = vmatpush2.msra.mxu0 0.0
        %568 = vmatprep.subr.mxu0 0.0
        %569 = vmatpush2.msra.mxu0 0.0
        %570 = vmatprep.subr.mxu0 0.0
        %571 = vmatpush2.msra.mxu0 0.0
        %572 = vmatprep.subr.mxu0 0.0
        %573 = vmatpush2.msra.mxu0 0.0
        %574 = vmatprep.subr.mxu0 0.0
        %575 = vmatpush2.msra.mxu0 0.0
        %576 = vmatprep.subr.mxu0 0.0
        %577 = vmatpush2.msra.mxu0 0.0
        %578 = vmatprep.subr.mxu0 0.0
        %579 = vmatpush2.msra.mxu0 0.0
        %580 = vmatprep.subr.mxu0 0.0
        %581 = vmatpush2.msra.mxu0 0.0
        %582 = vmatprep.subr.mxu0 0.0
        %583 = vmatpush2.msra.mxu0 0.0
        %584 = vmatprep.subr.mxu0 0.0
        %585 = vmatpush2.msra.mxu0 0.0
        %586 = vmatprep.subr.mxu0 0.0
        %587 = vmatpush2.msra.mxu0 0.0
        %588 = vmatprep.subr.mxu0 0.0
        %589 = vmatpush2.msra.mxu0 0.0
        %590 = vmatprep.subr.mxu0 0.0
        %591 = vmatpush2.msra.mxu0 0.0
        %592 = vmatprep.subr.mxu0 0.0
        %593 = vmatpush2.msra.mxu0 0.0
        %594 = vmatprep.subr.mxu0 0.0
        %595 = vmatpush2.msra.mxu0 0.0
        %596 = vmatprep.mubr.f32.mxu0 0.0
        %597 = vmatmul.mubr.f32.gmra.mxu0 %v530
        %v598 = vpop.f32.mrf.mxu0
        %v599 = vadd.f32 %v527, %v598
        %v600 = vpop.f32.mrf.mxu0
        %601 = vdwg.mxu0
        %606 = vrot.lane.b32.xlu0 %v503, 96
        %v607 = vpop.permute.xlu0 %606
        %608 = vrot.lane.b32.xlu0 %v504, 96
        %v609 = vpop.permute.xlu0 %608
        %610 = vrot.lane.b32.xlu0 %v505, 96
        %v611 = vpop.permute.xlu0 %610
        %612 = vrot.lane.b32.xlu0 %v506, 96
        %v613 = vpop.permute.xlu0 %612
        %v619 = vsel %vm528, %v501, 0
        %v622 = vsel %vm528, %v502, 0
        %624 = vmatprep.subr.mxu0 0.0
        %625 = vmatpush1.msra.mxu0 0.0
        %626 = vmatprep.subr.mxu0 0.0
        %627 = vmatpush1.msra.mxu0 0.0
        %628 = vmatprep.subr.mxu0 0.0
        %629 = vmatpush1.msra.mxu0 0.0
        %630 = vmatprep.subr.mxu0 0.0
        %631 = vmatpush1.msra.mxu0 0.0
        %632 = vmatprep.subr.mxu0 0.0
        %633 = vmatpush1.msra.mxu0 0.0
        %634 = vmatprep.subr.mxu0 0.0
        %635 = vmatpush1.msra.mxu0 0.0
        %636 = vmatprep.subr.mxu0 0.0
        %637 = vmatpush1.msra.mxu0 0.0
        %638 = vmatprep.subr.mxu0 0.0
        %639 = vmatpush1.msra.mxu0 0.0
        %640 = vmatprep.subr.mxu0 0.0
        %641 = vmatpush1.msra.mxu0 0.0
        %642 = vmatprep.subr.mxu0 0.0
        %643 = vmatpush1.msra.mxu0 0.0
        %644 = vmatprep.subr.mxu0 0.0
        %645 = vmatpush1.msra.mxu0 0.0
        %646 = vmatprep.subr.mxu0 0.0
        %647 = vmatpush1.msra.mxu0 0.0
        %648 = vmatprep.subr.mxu0 0.0
        %649 = vmatpush1.msra.mxu0 %v613
        %650 = vmatprep.subr.mxu0 0.0
        %651 = vmatpush1.msra.mxu0 %v611
        %652 = vmatprep.subr.mxu0 0.0
        %653 = vmatpush1.msra.mxu0 %v609
        %654 = vmatprep.subr.mxu0 0.0
        %655 = vmatpush1.msra.mxu0 %v607
        %656 = vmatprep.subr.mxu0 0.0
        %657 = vmatpush2.msra.mxu0 0.0
        %658 = vmatprep.subr.mxu0 0.0
        %659 = vmatpush2.msra.mxu0 0.0
        %660 = vmatprep.subr.mxu0 0.0
        %661 = vmatpush2.msra.mxu0 0.0
        %662 = vmatprep.subr.mxu0 0.0
        %663 = vmatpush2.msra.mxu0 0.0
        %664 = vmatprep.subr.mxu0 0.0
        %665 = vmatpush2.msra.mxu0 0.0
        %666 = vmatprep.subr.mxu0 0.0
        %667 = vmatpush2.msra.mxu0 0.0
        %668 = vmatprep.subr.mxu0 0.0
        %669 = vmatpush2.msra.mxu0 0.0
        %670 = vmatprep.subr.mxu0 0.0
        %671 = vmatpush2.msra.mxu0 0.0
        %672 = vmatprep.subr.mxu0 0.0
        %673 = vmatpush2.msra.mxu0 0.0
        %674 = vmatprep.subr.mxu0 0.0
        %675 = vmatpush2.msra.mxu0 0.0
        %676 = vmatprep.subr.mxu0 0.0
        %677 = vmatpush2.msra.mxu0 0.0
        %678 = vmatprep.subr.mxu0 0.0
        %679 = vmatpush2.msra.mxu0 0.0
        %680 = vmatprep.subr.mxu0 0.0
        %681 = vmatpush2.msra.mxu0 0.0
        %682 = vmatprep.subr.mxu0 0.0
        %683 = vmatpush2.msra.mxu0 0.0
        %684 = vmatprep.subr.mxu0 0.0
        %685 = vmatpush2.msra.mxu0 0.0
        %686 = vmatprep.subr.mxu0 0.0
        %687 = vmatpush2.msra.mxu0 0.0
        %688 = vmatprep.mubr.f32.mxu0 0.0
        %689 = vmatmul.mubr.f32.gmra.mxu0 %v619
        %v690 = vpop.f32.mrf.mxu0
        %v691 = vadd.f32 0.0, %v690
        %v692 = vpop.f32.mrf.mxu0
        %693 = vmatprep.mubr.f32.mxu0 0.0
        %694 = vmatmul.mubr.f32.gmra.mxu0 %v622
        %v695 = vpop.f32.mrf.mxu0
        %v696 = vadd.f32 0.0, %v695
        %v697 = vpop.f32.mrf.mxu0
        %698 = vdwg.mxu0
        %v699 = vlaneseq
        %v700 = vshrl.u32 %v699, 7
        %v701 = vsub.s32 1, %v700
        %v702 = vrot.slane %v523, %v701
        %v703 = vadd.f32 %v691, %v702
        %v704 = vadd.f32 %v696, %v702
        %v705 = vlaneseq
        %v706 = vshrl.u32 %v705, 7
        %v707 = vsub.s32 2, %v706
        %v708 = vrot.slane %v523, %v707
        %710 = vrot.lane.b32.xlu0 %v708, 32
        %v711 = vpop.permute.xlu0 %710
        %v713 = vadd.f32 %v691, %v711
        %v714 = vadd.f32 %v696, %v711
        %v716 = vsel %vm528, %v599, 0
        %v719 = vsel %vm528, %v703, 0
        %v722 = vsel %vm528, %v704, 0
        %724 = vmatprep.subr.mxu0 0.0
        %725 = vmatpush1.xpose.msra.mxu0 0.0
        %726 = vmatprep.subr.mxu0 0.0
        %727 = vmatpush1.xpose.msra.mxu0 0.0
        %728 = vmatprep.subr.mxu0 0.0
        %729 = vmatpush1.xpose.msra.mxu0 0.0
        %730 = vmatprep.subr.mxu0 0.0
        %731 = vmatpush1.xpose.msra.mxu0 0.0
        %732 = vmatprep.subr.mxu0 0.0
        %733 = vmatpush1.xpose.msra.mxu0 0.0
        %734 = vmatprep.subr.mxu0 0.0
        %735 = vmatpush1.xpose.msra.mxu0 0.0
        %736 = vmatprep.subr.mxu0 0.0
        %737 = vmatpush1.xpose.msra.mxu0 0.0
        %738 = vmatprep.subr.mxu0 0.0
        %739 = vmatpush1.xpose.msra.mxu0 0.0
        %740 = vmatprep.subr.mxu0 0.0
        %741 = vmatpush1.xpose.msra.mxu0 0.0
        %742 = vmatprep.subr.mxu0 0.0
        %743 = vmatpush1.xpose.msra.mxu0 0.0
        %744 = vmatprep.subr.mxu0 0.0
        %745 = vmatpush1.xpose.msra.mxu0 0.0
        %746 = vmatprep.subr.mxu0 0.0
        %747 = vmatpush1.xpose.msra.mxu0 0.0
        %748 = vmatprep.subr.mxu0 0.0
        %749 = vmatpush1.xpose.msra.mxu0 0.0
        %750 = vmatprep.subr.mxu0 0.0
        %751 = vmatpush1.xpose.msra.mxu0 0.0
        %752 = vmatprep.subr.mxu0 0.0
        %753 = vmatpush1.xpose.msra.mxu0 %v722
        %754 = vmatprep.subr.mxu0 0.0
        %755 = vmatpush1.xpose.msra.mxu0 %v719
        %756 = vmatprep.subr.mxu0 0.0
        %757 = vmatpush2.xpose.msra.mxu0 0.0
        %758 = vmatprep.subr.mxu0 0.0
        %759 = vmatpush2.xpose.msra.mxu0 0.0
        %760 = vmatprep.subr.mxu0 0.0
        %761 = vmatpush2.xpose.msra.mxu0 0.0
        %762 = vmatprep.subr.mxu0 0.0
        %763 = vmatpush2.xpose.msra.mxu0 0.0
        %764 = vmatprep.subr.mxu0 0.0
        %765 = vmatpush2.xpose.msra.mxu0 0.0
        %766 = vmatprep.subr.mxu0 0.0
        %767 = vmatpush2.xpose.msra.mxu0 0.0
        %768 = vmatprep.subr.mxu0 0.0
        %769 = vmatpush2.xpose.msra.mxu0 0.0
        %770 = vmatprep.subr.mxu0 0.0
        %771 = vmatpush2.xpose.msra.mxu0 0.0
        %772 = vmatprep.subr.mxu0 0.0
        %773 = vmatpush2.xpose.msra.mxu0 0.0
        %774 = vmatprep.subr.mxu0 0.0
        %775 = vmatpush2.xpose.msra.mxu0 0.0
        %776 = vmatprep.subr.mxu0 0.0
        %777 = vmatpush2.xpose.msra.mxu0 0.0
        %778 = vmatprep.subr.mxu0 0.0
        %779 = vmatpush2.xpose.msra.mxu0 0.0
        %780 = vmatprep.subr.mxu0 0.0
        %781 = vmatpush2.xpose.msra.mxu0 0.0
        %782 = vmatprep.subr.mxu0 0.0
        %783 = vmatpush2.xpose.msra.mxu0 0.0
        %784 = vmatprep.subr.mxu0 0.0
        %785 = vmatpush2.xpose.msra.mxu0 0.0
        %786 = vmatprep.subr.mxu0 0.0
        %787 = vmatpush2.xpose.msra.mxu0 0.0
        %788 = vmatprep.mubr.f32.mxu0 0.0
        %789 = vmatmul.mubr.f32.gmra.mxu0 %v716
        %v790 = vpop.f32.mrf.mxu0
        %v791 = vadd.f32 0.0, %v790
        %v792 = vpop.f32.mrf.mxu0
        %793 = vdwg.mxu0
        %v794 = vmul.f32 %v791, 0.17677669
        %vm795 = vcmask 130048
        %v796 = vsel %vm795, %v794, -inf
        %797 = vmax.xlane.f32.xlu0 %v796
        %v798 = vpop.xlane.xlu0 %797
        %v799 = vsub.f32 %v794, %v798
        %v800 = vmul.f32 %v799, 1.442695
        %v801 = vpow.pop %v800
        %v802 = vsel %vm795, %v801, 0.0
        %803 = vadd.xlane.f32.xlu0 %v802
        %v804 = vpop.xlane.xlu0 %803
        %v805 = vrcp.pop %v804
        %v806 = vmul.f32 %v801, %v805
        %809 = vrot.lane.b32.xlu0 %v713, 96
        %v810 = vpop.permute.xlu0 %809
        %811 = vrot.lane.b32.xlu0 %v714, 96
        %v812 = vpop.permute.xlu0 %811
        %v816 = vsel %vm795, %v806, 0
        %818 = vmatprep.subr.mxu0 0.0
        %819 = vmatpush1.msra.mxu0 0.0
        %820 = vmatprep.subr.mxu0 0.0
        %821 = vmatpush1.msra.mxu0 0.0
        %822 = vmatprep.subr.mxu0 0.0
        %823 = vmatpush1.msra.mxu0 0.0
        %824 = vmatprep.subr.mxu0 0.0
        %825 = vmatpush1.msra.mxu0 0.0
        %826 = vmatprep.subr.mxu0 0.0
        %827 = vmatpush1.msra.mxu0 0.0
        %828 = vmatprep.subr.mxu0 0.0
        %829 = vmatpush1.msra.mxu0 0.0
        %830 = vmatprep.subr.mxu0 0.0
        %831 = vmatpush1.msra.mxu0 0.0
        %832 = vmatprep.subr.mxu0 0.0
        %833 = vmatpush1.msra.mxu0 0.0
        %834 = vmatprep.subr.mxu0 0.0
        %835 = vmatpush1.msra.mxu0 0.0
        %836 = vmatprep.subr.mxu0 0.0
        %837 = vmatpush1.msra.mxu0 0.0
        %838 = vmatprep.subr.mxu0 0.0
        %839 = vmatpush1.msra.mxu0 0.0
        %840 = vmatprep.subr.mxu0 0.0
        %841 = vmatpush1.msra.mxu0 0.0
        %842 = vmatprep.subr.mxu0 0.0
        %843 = vmatpush1.msra.mxu0 0.0
        %844 = vmatprep.subr.mxu0 0.0
        %845 = vmatpush1.msra.mxu0 0.0
        %846 = vmatprep.subr.mxu0 0.0
        %847 = vmatpush1.msra.mxu0 %v812
        %848 = vmatprep.subr.mxu0 0.0
        %849 = vmatpush1.msra.mxu0 %v810
        %850 = vmatprep.subr.mxu0 0.0
        %851 = vmatpush2.msra.mxu0 0.0
        %852 = vmatprep.subr.mxu0 0.0
        %853 = vmatpush2.msra.mxu0 0.0
        %854 = vmatprep.subr.mxu0 0.0
        %855 = vmatpush2.msra.mxu0 0.0
        %856 = vmatprep.subr.mxu0 0.0
        %857 = vmatpush2.msra.mxu0 0.0
        %858 = vmatprep.subr.mxu0 0.0
        %859 = vmatpush2.msra.mxu0 0.0
        %860 = vmatprep.subr.mxu0 0.0
        %861 = vmatpush2.msra.mxu0 0.0
        %862 = vmatprep.subr.mxu0 0.0
        %863 = vmatpush2.msra.mxu0 0.0
        %864 = vmatprep.subr.mxu0 0.0
        %865 = vmatpush2.msra.mxu0 0.0
        %866 = vmatprep.subr.mxu0 0.0
        %867 = vmatpush2.msra.mxu0 0.0
        %868 = vmatprep.subr.mxu0 0.0
        %869 = vmatpush2.msra.mxu0 0.0
        %870 = vmatprep.subr.mxu0 0.0
        %871 = vmatpush2.msra.mxu0 0.0
        %872 = vmatprep.subr.mxu0 0.0
        %873 = vmatpush2.msra.mxu0 0.0
        %874 = vmatprep.subr.mxu0 0.0
        %875 = vmatpush2.msra.mxu0 0.0
        %876 = vmatprep.subr.mxu0 0.0
        %877 = vmatpush2.msra.mxu0 0.0
        %878 = vmatprep.subr.mxu0 0.0
        %879 = vmatpush2.msra.mxu0 0.0
        %880 = vmatprep.subr.mxu0 0.0
        %881 = vmatpush2.msra.mxu0 0.0
        %882 = vmatprep.mubr.f32.mxu0 0.0
        %883 = vmatmul.mubr.f32.gmra.mxu0 %v816
        %v884 = vpop.f32.mrf.mxu0
        %v885 = vadd.f32 0.0, %v884
        %v886 = vpop.f32.mrf.mxu0
        %887 = vdwg.mxu0
        %888 = vst.msk [vmem:[#allocation2] sm:$0xff] %vm528, %v885
        %v889 = vld [vmem:[#allocation2] sm:$0xff]
        %v890 = vlaneseq
        %v891 = vshrl.u32 %v890, 7
        %v892 = vsub.s32 3, %v891
        %v893 = vrot.slane %v523, %v892
        %v895 = vsel %vm528, %v889, 0
        %897 = vmatprep.subr.mxu0 0.0
        %898 = vmatpush1.msra.mxu0 0.0
        %899 = vmatprep.subr.mxu0 0.0
        %900 = vmatpush1.msra.mxu0 0.0
        %901 = vmatprep.subr.mxu0 0.0
        %902 = vmatpush1.msra.mxu0 0.0
        %903 = vmatprep.subr.mxu0 0.0
        %904 = vmatpush1.msra.mxu0 0.0
        %905 = vmatprep.subr.mxu0 0.0
        %906 = vmatpush1.msra.mxu0 0.0
        %907 = vmatprep.subr.mxu0 0.0
        %908 = vmatpush1.msra.mxu0 0.0
        %909 = vmatprep.subr.mxu0 0.0
        %910 = vmatpush1.msra.mxu0 0.0
        %911 = vmatprep.subr.mxu0 0.0
        %912 = vmatpush1.msra.mxu0 0.0
        %913 = vmatprep.subr.mxu0 0.0
        %914 = vmatpush1.msra.mxu0 0.0
        %915 = vmatprep.subr.mxu0 0.0
        %916 = vmatpush1.msra.mxu0 0.0
        %917 = vmatprep.subr.mxu0 0.0
        %918 = vmatpush1.msra.mxu0 0.0
        %919 = vmatprep.subr.mxu0 0.0
        %920 = vmatpush1.msra.mxu0 0.0
        %921 = vmatprep.subr.mxu0 0.0
        %922 = vmatpush1.msra.mxu0 %v510
        %923 = vmatprep.subr.mxu0 0.0
        %924 = vmatpush1.msra.mxu0 %v509
        %925 = vmatprep.subr.mxu0 0.0
        %926 = vmatpush1.msra.mxu0 %v508
        %927 = vmatprep.subr.mxu0 0.0
        %928 = vmatpush1.msra.mxu0 %v507
        %929 = vmatprep.subr.mxu0 0.0
        %930 = vmatpush2.msra.mxu0 0.0
        %931 = vmatprep.subr.mxu0 0.0
        %932 = vmatpush2.msra.mxu0 0.0
        %933 = vmatprep.subr.mxu0 0.0
        %934 = vmatpush2.msra.mxu0 0.0
        %935 = vmatprep.subr.mxu0 0.0
        %936 = vmatpush2.msra.mxu0 0.0
        %937 = vmatprep.subr.mxu0 0.0
        %938 = vmatpush2.msra.mxu0 0.0
        %939 = vmatprep.subr.mxu0 0.0
        %940 = vmatpush2.msra.mxu0 0.0
        %941 = vmatprep.subr.mxu0 0.0
        %942 = vmatpush2.msra.mxu0 0.0
        %943 = vmatprep.subr.mxu0 0.0
        %944 = vmatpush2.msra.mxu0 0.0
        %945 = vmatprep.subr.mxu0 0.0
        %946 = vmatpush2.msra.mxu0 0.0
        %947 = vmatprep.subr.mxu0 0.0
        %948 = vmatpush2.msra.mxu0 0.0
        %949 = vmatprep.subr.mxu0 0.0
        %950 = vmatpush2.msra.mxu0 0.0
        %951 = vmatprep.subr.mxu0 0.0
        %952 = vmatpush2.msra.mxu0 0.0
        %953 = vmatprep.subr.mxu0 0.0
        %954 = vmatpush2.msra.mxu0 0.0
        %955 = vmatprep.subr.mxu0 0.0
        %956 = vmatpush2.msra.mxu0 0.0
        %957 = vmatprep.subr.mxu0 0.0
        %958 = vmatpush2.msra.mxu0 0.0
        %959 = vmatprep.subr.mxu0 0.0
        %960 = vmatpush2.msra.mxu0 0.0
        %961 = vmatprep.mubr.f32.mxu0 0.0
        %962 = vmatmul.mubr.f32.gmra.mxu0 %v895
        %v963 = vpop.f32.mrf.mxu0
        %v964 = vadd.f32 %v893, %v963
        %v965 = vpop.f32.mrf.mxu0
        %966 = vdwg.mxu0
        %v967 = vadd.f32 %v964, %v500
        %v968 = vsel %vm528, %v967, 0.0
        %969 = vadd.xlane.f32.xlu0 %v968
        %v970 = vpop.xlane.xlu0 %969
        %v971 = vrcp.pop 32.0
        %v972 = vmul.f32 %v970, %v971
        %v973 = vsub.f32 %v967, %v972
        %v974 = vmul.f32 %v973, %v973
        %v975 = vsel %vm528, %v974, 0.0
        %976 = vadd.xlane.f32.xlu0 %v975
        %v977 = vpop.xlane.xlu0 %976
        %v978 = vmul.f32 %v977, %v971
        %v979 = vadd.f32 %v978, 1e-05
        %v980 = vrsqrt.pop %v979
        %v981 = vmul.f32 %v973, %v980
        %v982 = vlaneseq
        %v983 = vshrl.u32 %v982, 7
        %v984 = vsub.s32 4, %v983
        %v985 = vrot.slane %v523, %v984
        %v986 = vmul.f32 %v981, %v985
        %v987 = vlaneseq
        %v988 = vshrl.u32 %v987, 7
        %v989 = vsub.s32 5, %v988
        %v990 = vrot.slane %v523, %v989
        %v991 = vadd.f32 %v986, %v990
        %v992 = vlaneseq
        %v993 = vshrl.u32 %v992, 7
        %v994 = vsub.s32 6, %v993
        %v995 = vrot.slane %v523, %v994
        %v997 = vsel %vm528, %v991, 0
        %999 = vmatprep.subr.mxu0 0.0
        %1000 = vmatpush1.msra.mxu0 0.0
        %1001 = vmatprep.subr.mxu0 0.0
        %1002 = vmatpush1.msra.mxu0 0.0
        %1003 = vmatprep.subr.mxu0 0.0
        %1004 = vmatpush1.msra.mxu0 0.0
        %1005 = vmatprep.subr.mxu0 0.0
        %1006 = vmatpush1.msra.mxu0 0.0
        %1007 = vmatprep.subr.mxu0 0.0
        %1008 = vmatpush1.msra.mxu0 0.0
        %1009 = vmatprep.subr.mxu0 0.0
        %1010 = vmatpush1.msra.mxu0 0.0
        %1011 = vmatprep.subr.mxu0 0.0
        %1012 = vmatpush1.msra.mxu0 0.0
        %1013 = vmatprep.subr.mxu0 0.0
        %1014 = vmatpush1.msra.mxu0 0.0
        %1015 = vmatprep.subr.mxu0 0.0
        %1016 = vmatpush1.msra.mxu0 0.0
        %1017 = vmatprep.subr.mxu0 0.0
        %1018 = vmatpush1.msra.mxu0 0.0
        %1019 = vmatprep.subr.mxu0 0.0
        %1020 = vmatpush1.msra.mxu0 0.0
        %1021 = vmatprep.subr.mxu0 0.0
        %1022 = vmatpush1.msra.mxu0 0.0
        %1023 = vmatprep.subr.mxu0 0.0
        %1024 = vmatpush1.msra.mxu0 %v514
        %1025 = vmatprep.subr.mxu0 0.0
        %1026 = vmatpush1.msra.mxu0 %v513
        %1027 = vmatprep.subr.mxu0 0.0
        %1028 = vmatpush1.msra.mxu0 %v512
        %1029 = vmatprep.subr.mxu0 0.0
        %1030 = vmatpush1.msra.mxu0 %v511
        %1031 = vmatprep.subr.mxu0 0.0
        %1032 = vmatpush2.msra.mxu0 0.0
        %1033 = vmatprep.subr.mxu0 0.0
        %1034 = vmatpush2.msra.mxu0 0.0
        %1035 = vmatprep.subr.mxu0 0.0
        %1036 = vmatpush2.msra.mxu0 0.0
        %1037 = vmatprep.subr.mxu0 0.0
        %1038 = vmatpush2.msra.mxu0 0.0
        %1039 = vmatprep.subr.mxu0 0.0
        %1040 = vmatpush2.msra.mxu0 0.0
        %1041 = vmatprep.subr.mxu0 0.0
        %1042 = vmatpush2.msra.mxu0 0.0
        %1043 = vmatprep.subr.mxu0 0.0
        %1044 = vmatpush2.msra.mxu0 0.0
        %1045 = vmatprep.subr.mxu0 0.0
        %1046 = vmatpush2.msra.mxu0 0.0
        %1047 = vmatprep.subr.mxu0 0.0
        %1048 = vmatpush2.msra.mxu0 0.0
        %1049 = vmatprep.subr.mxu0 0.0
        %1050 = vmatpush2.msra.mxu0 0.0
        %1051 = vmatprep.subr.mxu0 0.0
        %1052 = vmatpush2.msra.mxu0 0.0
        %1053 = vmatprep.subr.mxu0 0.0
        %1054 = vmatpush2.msra.mxu0 0.0
        %1055 = vmatprep.subr.mxu0 0.0
        %1056 = vmatpush2.msra.mxu0 0.0
        %1057 = vmatprep.subr.mxu0 0.0
        %1058 = vmatpush2.msra.mxu0 0.0
        %1059 = vmatprep.subr.mxu0 0.0
        %1060 = vmatpush2.msra.mxu0 0.0
        %1061 = vmatprep.subr.mxu0 0.0
        %1062 = vmatpush2.msra.mxu0 0.0
        %1063 = vmatprep.mubr.f32.mxu0 0.0
        %1064 = vmatmul.mubr.f32.gmra.mxu0 %v997
        %v1065 = vpop.f32.mrf.mxu0
        %v1066 = vadd.f32 %v995, %v1065
        %v1067 = vpop.f32.mrf.mxu0
        %1068 = vdwg.mxu0
        %v1069 = vmul.f32 %v1066, 0.5
        %v1070 = vmul.f32 %v1066, 0.70710677
        %v1071 = vand.u32 2147483647, %v1070
        %v1072 = vmul.f32 %v1071, 0.3275911
        %v1073 = vadd.f32 %v1072, 1.0
        %v1074 = vrcp.pop %v1073
        %v1075 = vmul.f32 1.0, %v1074
        %v1076 = vmul.f32 %v1075, 1.0614054
        %v1077 = vadd.f32 %v1076, -1.4531521
        %v1078 = vmul.f32 %v1077, %v1075
        %v1079 = vadd.f32 %v1078, 1.4214138
        %v1080 = vmul.f32 %v1079, %v1075
        %v1081 = vadd.f32 %v1080, -0.28449672
        %v1082 = vmul.f32 %v1081, %v1075
        %v1083 = vadd.f32 %v1082, 0.2548296
        %v1084 = vmul.f32 %v1083, %v1075
        %v1085 = vsub.f32 0.0, %v1071
        %v1086 = vmul.f32 %v1085, %v1071
        %v1087 = vmul.f32 %v1086, 1.442695
        %v1088 = vpow.pop %v1087
        %v1089 = vmul.f32 %v1084, %v1088
        %v1090 = vsub.f32 1.0, %v1089
        %vm1091 = vcmp.ge.f32.partialorder %v1070, 0.0
        %v1092 = vsub.f32 0.0, %v1090
        %v1093 = vsel %vm1091, %v1090, %v1092
        %v1094 = vadd.f32 %v1093, 1.0
        %v1095 = vmul.f32 %v1069, %v1094
        %v1096 = vlaneseq
        %v1097 = vshrl.u32 %v1096, 7
        %v1098 = vsub.s32 7, %v1097
        %v1099 = vrot.slane %v523, %v1098
        %vm1100 = vcmask 523264
        %v1102 = vsel %vm1100, %v1095, 0
        %1104 = vmatprep.subr.mxu0 0.0
        %1105 = vmatpush1.msra.mxu0 0.0
        %1106 = vmatprep.subr.mxu0 0.0
        %1107 = vmatpush1.msra.mxu0 0.0
        %1108 = vmatprep.subr.mxu0 0.0
        %1109 = vmatpush1.msra.mxu0 0.0
        %1110 = vmatprep.subr.mxu0 0.0
        %1111 = vmatpush1.msra.mxu0 0.0
        %1112 = vmatprep.subr.mxu0 0.0
        %1113 = vmatpush1.msra.mxu0 0.0
        %1114 = vmatprep.subr.mxu0 0.0
        %1115 = vmatpush1.msra.mxu0 0.0
        %1116 = vmatprep.subr.mxu0 0.0
        %1117 = vmatpush1.msra.mxu0 0.0
        %1118 = vmatprep.subr.mxu0 0.0
        %1119 = vmatpush1.msra.mxu0 0.0
        %1120 = vmatprep.subr.mxu0 0.0
        %1121 = vmatpush1.msra.mxu0 %v522
        %1122 = vmatprep.subr.mxu0 0.0
        %1123 = vmatpush1.msra.mxu0 %v521
        %1124 = vmatprep.subr.mxu0 0.0
        %1125 = vmatpush1.msra.mxu0 %v520
        %1126 = vmatprep.subr.mxu0 0.0
        %1127 = vmatpush1.msra.mxu0 %v519
        %1128 = vmatprep.subr.mxu0 0.0
        %1129 = vmatpush1.msra.mxu0 %v518
        %1130 = vmatprep.subr.mxu0 0.0
        %1131 = vmatpush1.msra.mxu0 %v517
        %1132 = vmatprep.subr.mxu0 0.0
        %1133 = vmatpush1.msra.mxu0 %v516
        %1134 = vmatprep.subr.mxu0 0.0
        %1135 = vmatpush1.msra.mxu0 %v515
        %1136 = vmatprep.subr.mxu0 0.0
        %1137 = vmatpush2.msra.mxu0 0.0
        %1138 = vmatprep.subr.mxu0 0.0
        %1139 = vmatpush2.msra.mxu0 0.0
        %1140 = vmatprep.subr.mxu0 0.0
        %1141 = vmatpush2.msra.mxu0 0.0
        %1142 = vmatprep.subr.mxu0 0.0
        %1143 = vmatpush2.msra.mxu0 0.0
        %1144 = vmatprep.subr.mxu0 0.0
        %1145 = vmatpush2.msra.mxu0 0.0
        %1146 = vmatprep.subr.mxu0 0.0
        %1147 = vmatpush2.msra.mxu0 0.0
        %1148 = vmatprep.subr.mxu0 0.0
        %1149 = vmatpush2.msra.mxu0 0.0
        %1150 = vmatprep.subr.mxu0 0.0
        %1151 = vmatpush2.msra.mxu0 0.0
        %1152 = vmatprep.subr.mxu0 0.0
        %1153 = vmatpush2.msra.mxu0 0.0
        %1154 = vmatprep.subr.mxu0 0.0
        %1155 = vmatpush2.msra.mxu0 0.0
        %1156 = vmatprep.subr.mxu0 0.0
        %1157 = vmatpush2.msra.mxu0 0.0
        %1158 = vmatprep.subr.mxu0 0.0
        %1159 = vmatpush2.msra.mxu0 0.0
        %1160 = vmatprep.subr.mxu0 0.0
        %1161 = vmatpush2.msra.mxu0 0.0
        %1162 = vmatprep.subr.mxu0 0.0
        %1163 = vmatpush2.msra.mxu0 0.0
        %1164 = vmatprep.subr.mxu0 0.0
        %1165 = vmatpush2.msra.mxu0 0.0
        %1166 = vmatprep.subr.mxu0 0.0
        %1167 = vmatpush2.msra.mxu0 0.0
        %1168 = vmatprep.mubr.f32.mxu0 0.0
        %1169 = vmatmul.mubr.f32.gmra.mxu0 %v1102
        %v1170 = vpop.f32.mrf.mxu0
        %v1171 = vadd.f32 %v1099, %v1170
        %v1172 = vpop.f32.mrf.mxu0
        %1173 = vdwg.mxu0
        %v1174 = vadd.f32 %v1171, %v967
        %v1175 = vld [vmem:[%s7] sm:$0xff]
        %v1176 = vld [vmem:[%s7 + $0x8] sm:$0xff]
        %v1177 = vld [vmem:[%s7 + $0x10] sm:$0xff]
        %v1178 = vld [vmem:[%s7 + $0x18] sm:$0xff]
        %v1179 = vld [vmem:[%s8] sm:$0xff]
        %v1180 = vld [vmem:[%s8 + $0x8] sm:$0xff]
        %v1181 = vld [vmem:[%s8 + $0x10] sm:$0xff]
        %v1182 = vld [vmem:[%s8 + $0x18] sm:$0xff]
        %v1183 = vld [vmem:[%s9] sm:$0xff]
        %v1184 = vld [vmem:[%s9 + $0x8] sm:$0xff]
        %v1185 = vld [vmem:[%s9 + $0x10] sm:$0xff]
        %v1186 = vld [vmem:[%s9 + $0x18] sm:$0xff]
        %v1187 = vld [vmem:[%s10] sm:$0xff]
        %v1188 = vld [vmem:[%s10 + $0x8] sm:$0xff]
        %v1189 = vld [vmem:[%s10 + $0x10] sm:$0xff]
        %v1190 = vld [vmem:[%s10 + $0x18] sm:$0xff]
        %v1191 = vld [vmem:[%s10 + $0x20] sm:$0xff]
        %v1192 = vld [vmem:[%s10 + $0x28] sm:$0xff]
        %v1193 = vld [vmem:[%s10 + $0x30] sm:$0xff]
        %v1194 = vld [vmem:[%s10 + $0x38] sm:$0xff]
        %v1195 = vld [vmem:[#allocation11] sm:$0xff]
        %v1197 = vsel %vm528, %v1174, 0
        %1199 = vmatprep.subr.mxu0 0.0
        %1200 = vmatpush1.msra.mxu0 0.0
        %1201 = vmatprep.subr.mxu0 0.0
        %1202 = vmatpush1.msra.mxu0 0.0
        %1203 = vmatprep.subr.mxu0 0.0
        %1204 = vmatpush1.msra.mxu0 0.0
        %1205 = vmatprep.subr.mxu0 0.0
        %1206 = vmatpush1.msra.mxu0 0.0
        %1207 = vmatprep.subr.mxu0 0.0
        %1208 = vmatpush1.msra.mxu0 0.0
        %1209 = vmatprep.subr.mxu0 0.0
        %1210 = vmatpush1.msra.mxu0 0.0
        %1211 = vmatprep.subr.mxu0 0.0
        %1212 = vmatpush1.msra.mxu0 0.0
        %1213 = vmatprep.subr.mxu0 0.0
        %1214 = vmatpush1.msra.mxu0 0.0
        %1215 = vmatprep.subr.mxu0 0.0
        %1216 = vmatpush1.msra.mxu0 0.0
        %1217 = vmatprep.subr.mxu0 0.0
        %1218 = vmatpush1.msra.mxu0 0.0
        %1219 = vmatprep.subr.mxu0 0.0
        %1220 = vmatpush1.msra.mxu0 0.0
        %1221 = vmatprep.subr.mxu0 0.0
        %1222 = vmatpush1.msra.mxu0 0.0
        %1223 = vmatprep.subr.mxu0 0.0
        %1224 = vmatpush1.msra.mxu0 %v1178
        %1225 = vmatprep.subr.mxu0 0.0
        %1226 = vmatpush1.msra.mxu0 %v1177
        %1227 = vmatprep.subr.mxu0 0.0
        %1228 = vmatpush1.msra.mxu0 %v1176
        %1229 = vmatprep.subr.mxu0 0.0
        %1230 = vmatpush1.msra.mxu0 %v1175
        %1231 = vmatprep.subr.mxu0 0.0
        %1232 = vmatpush2.msra.mxu0 0.0
        %1233 = vmatprep.subr.mxu0 0.0
        %1234 = vmatpush2.msra.mxu0 0.0
        %1235 = vmatprep.subr.mxu0 0.0
        %1236 = vmatpush2.msra.mxu0 0.0
        %1237 = vmatprep.subr.mxu0 0.0
        %1238 = vmatpush2.msra.mxu0 0.0
        %1239 = vmatprep.subr.mxu0 0.0
        %1240 = vmatpush2.msra.mxu0 0.0
        %1241 = vmatprep.subr.mxu0 0.0
        %1242 = vmatpush2.msra.mxu0 0.0
        %1243 = vmatprep.subr.mxu0 0.0
        %1244 = vmatpush2.msra.mxu0 0.0
        %1245 = vmatprep.subr.mxu0 0.0
        %1246 = vmatpush2.msra.mxu0 0.0
        %1247 = vmatprep.subr.mxu0 0.0
        %1248 = vmatpush2.msra.mxu0 0.0
        %1249 = vmatprep.subr.mxu0 0.0
        %1250 = vmatpush2.msra.mxu0 0.0
        %1251 = vmatprep.subr.mxu0 0.0
        %1252 = vmatpush2.msra.mxu0 0.0
        %1253 = vmatprep.subr.mxu0 0.0
        %1254 = vmatpush2.msra.mxu0 0.0
        %1255 = vmatprep.subr.mxu0 0.0
        %1256 = vmatpush2.msra.mxu0 0.0
        %1257 = vmatprep.subr.mxu0 0.0
        %1258 = vmatpush2.msra.mxu0 0.0
        %1259 = vmatprep.subr.mxu0 0.0
        %1260 = vmatpush2.msra.mxu0 0.0
        %1261 = vmatprep.subr.mxu0 0.0
        %1262 = vmatpush2.msra.mxu0 0.0
        %1263 = vmatprep.mubr.f32.mxu0 0.0
        %1264 = vmatmul.mubr.f32.gmra.mxu0 %v1197
        %v1265 = vpop.f32.mrf.mxu0
        %v1266 = vadd.f32 0.0, %v1265
        %v1267 = vpop.f32.mrf.mxu0
        %1268 = vdwg.mxu0
        %v1269 = vlaneseq
        %v1270 = vshrl.u32 %v1269, 7
        %v1271 = vsub.s32 0, %v1270
        %v1272 = vrot.slane %v1195, %v1271
        %v1273 = vadd.f32 %v1266, %v1272
        %v1274 = vlaneseq
        %v1275 = vshrl.u32 %v1274, 7
        %v1276 = vsub.s32 1, %v1275
        %v1277 = vrot.slane %v1195, %v1276
        %1279 = vrot.lane.b32.xlu0 %v1277, 32
        %v1280 = vpop.permute.xlu0 %1279
        %v1282 = vadd.f32 %v1266, %v1280
        %v1283 = vlaneseq
        %v1284 = vshrl.u32 %v1283, 7
        %v1285 = vsub.s32 2, %v1284
        %v1286 = vrot.slane %v1195, %v1285
        %1288 = vrot.lane.b32.xlu0 %v1286, 64
        %v1289 = vpop.permute.xlu0 %1288
        %v1291 = vadd.f32 %v1266, %v1289
        %1293 = vrot.lane.b32.xlu0 %v1282, 96
        %v1294 = vpop.permute.xlu0 %1293
        %vm1295 = vcmask 64512
        %v1297 = vsel %vm1295, %v1273, 0
        %v1299 = vsel %vm1295, %v1294, 0
        %1301 = vmatprep.subr.mxu0 0.0
        %1302 = vmatpush1.xpose.msra.mxu0 0.0
        %1303 = vmatprep.subr.mxu0 0.0
        %1304 = vmatpush1.xpose.msra.mxu0 0.0
        %1305 = vmatprep.subr.mxu0 0.0
        %1306 = vmatpush1.xpose.msra.mxu0 0.0
        %1307 = vmatprep.subr.mxu0 0.0
        %1308 = vmatpush1.xpose.msra.mxu0 0.0
        %1309 = vmatprep.subr.mxu0 0.0
        %1310 = vmatpush1.xpose.msra.mxu0 0.0
        %1311 = vmatprep.subr.mxu0 0.0
        %1312 = vmatpush1.xpose.msra.mxu0 0.0
        %1313 = vmatprep.subr.mxu0 0.0
        %1314 = vmatpush1.xpose.msra.mxu0 0.0
        %1315 = vmatprep.subr.mxu0 0.0
        %1316 = vmatpush1.xpose.msra.mxu0 0.0
        %1317 = vmatprep.subr.mxu0 0.0
        %1318 = vmatpush1.xpose.msra.mxu0 0.0
        %1319 = vmatprep.subr.mxu0 0.0
        %1320 = vmatpush1.xpose.msra.mxu0 0.0
        %1321 = vmatprep.subr.mxu0 0.0
        %1322 = vmatpush1.xpose.msra.mxu0 0.0
        %1323 = vmatprep.subr.mxu0 0.0
        %1324 = vmatpush1.xpose.msra.mxu0 0.0
        %1325 = vmatprep.subr.mxu0 0.0
        %1326 = vmatpush1.xpose.msra.mxu0 0.0
        %1327 = vmatprep.subr.mxu0 0.0
        %1328 = vmatpush1.xpose.msra.mxu0 0.0
        %1329 = vmatprep.subr.mxu0 0.0
        %1330 = vmatpush1.xpose.msra.mxu0 0.0
        %1331 = vmatprep.subr.mxu0 0.0
        %1332 = vmatpush1.xpose.msra.mxu0 %v1299
        %1333 = vmatprep.subr.mxu0 0.0
        %1334 = vmatpush2.xpose.msra.mxu0 0.0
        %1335 = vmatprep.subr.mxu0 0.0
        %1336 = vmatpush2.xpose.msra.mxu0 0.0
        %1337 = vmatprep.subr.mxu0 0.0
        %1338 = vmatpush2.xpose.msra.mxu0 0.0
        %1339 = vmatprep.subr.mxu0 0.0
        %1340 = vmatpush2.xpose.msra.mxu0 0.0
        %1341 = vmatprep.subr.mxu0 0.0
        %1342 = vmatpush2.xpose.msra.mxu0 0.0
        %1343 = vmatprep.subr.mxu0 0.0
        %1344 = vmatpush2.xpose.msra.mxu0 0.0
        %1345 = vmatprep.subr.mxu0 0.0
        %1346 = vmatpush2.xpose.msra.mxu0 0.0
        %1347 = vmatprep.subr.mxu0 0.0
        %1348 = vmatpush2.xpose.msra.mxu0 0.0
        %1349 = vmatprep.subr.mxu0 0.0
        %1350 = vmatpush2.xpose.msra.mxu0 0.0
        %1351 = vmatprep.subr.mxu0 0.0
        %1352 = vmatpush2.xpose.msra.mxu0 0.0
        %1353 = vmatprep.subr.mxu0 0.0
        %1354 = vmatpush2.xpose.msra.mxu0 0.0
        %1355 = vmatprep.subr.mxu0 0.0
        %1356 = vmatpush2.xpose.msra.mxu0 0.0
        %1357 = vmatprep.subr.mxu0 0.0
        %1358 = vmatpush2.xpose.msra.mxu0 0.0
        %1359 = vmatprep.subr.mxu0 0.0
        %1360 = vmatpush2.xpose.msra.mxu0 0.0
        %1361 = vmatprep.subr.mxu0 0.0
        %1362 = vmatpush2.xpose.msra.mxu0 0.0
        %1363 = vmatprep.subr.mxu0 0.0
        %1364 = vmatpush2.xpose.msra.mxu0 0.0
        %1365 = vmatprep.mubr.f32.mxu0 0.0
        %1366 = vmatmul.mubr.f32.gmra.mxu0 %v1297
        %v1367 = vpop.f32.mrf.mxu0
        %v1368 = vadd.f32 0.0, %v1367
        %v1369 = vpop.f32.mrf.mxu0
        %1370 = vdwg.mxu0
        %v1371 = vmul.f32 %v1368, 0.35355338
        %v1372 = vsel %vm1295, %v1371, -inf
        %1373 = vmax.xlane.f32.xlu0 %v1372
        %v1374 = vpop.xlane.xlu0 %1373
        %v1375 = vsub.f32 %v1371, %v1374
        %v1376 = vmul.f32 %v1375, 1.442695
        %v1377 = vpow.pop %v1376
        %v1378 = vsel %vm1295, %v1377, 0.0
        %1379 = vadd.xlane.f32.xlu0 %v1378
        %v1380 = vpop.xlane.xlu0 %1379
        %v1381 = vrcp.pop %v1380
        %v1382 = vmul.f32 %v1377, %v1381
        %1384 = vrot.lane.b32.xlu0 %v1291, 64
        %v1385 = vpop.permute.xlu0 %1384
        %v1388 = vsel %vm1295, %v1382, 0
        %1390 = vmatprep.subr.mxu0 0.0
        %1391 = vmatpush1.msra.mxu0 0.0
        %1392 = vmatprep.subr.mxu0 0.0
        %1393 = vmatpush1.msra.mxu0 0.0
        %1394 = vmatprep.subr.mxu0 0.0
        %1395 = vmatpush1.msra.mxu0 0.0
        %1396 = vmatprep.subr.mxu0 0.0
        %1397 = vmatpush1.msra.mxu0 0.0
        %1398 = vmatprep.subr.mxu0 0.0
        %1399 = vmatpush1.msra.mxu0 0.0
        %1400 = vmatprep.subr.mxu0 0.0
        %1401 = vmatpush1.msra.mxu0 0.0
        %1402 = vmatprep.subr.mxu0 0.0
        %1403 = vmatpush1.msra.mxu0 0.0
        %1404 = vmatprep.subr.mxu0 0.0
        %1405 = vmatpush1.msra.mxu0 0.0
        %1406 = vmatprep.subr.mxu0 0.0
        %1407 = vmatpush1.msra.mxu0 0.0
        %1408 = vmatprep.subr.mxu0 0.0
        %1409 = vmatpush1.msra.mxu0 0.0
        %1410 = vmatprep.subr.mxu0 0.0
        %1411 = vmatpush1.msra.mxu0 0.0
        %1412 = vmatprep.subr.mxu0 0.0
        %1413 = vmatpush1.msra.mxu0 0.0
        %1414 = vmatprep.subr.mxu0 0.0
        %1415 = vmatpush1.msra.mxu0 0.0
        %1416 = vmatprep.subr.mxu0 0.0
        %1417 = vmatpush1.msra.mxu0 0.0
        %1418 = vmatprep.subr.mxu0 0.0
        %1419 = vmatpush1.msra.mxu0 0.0
        %1420 = vmatprep.subr.mxu0 0.0
        %1421 = vmatpush1.msra.mxu0 %v1385
        %1422 = vmatprep.subr.mxu0 0.0
        %1423 = vmatpush2.msra.mxu0 0.0
        %1424 = vmatprep.subr.mxu0 0.0
        %1425 = vmatpush2.msra.mxu0 0.0
        %1426 = vmatprep.subr.mxu0 0.0
        %1427 = vmatpush2.msra.mxu0 0.0
        %1428 = vmatprep.subr.mxu0 0.0
        %1429 = vmatpush2.msra.mxu0 0.0
        %1430 = vmatprep.subr.mxu0 0.0
        %1431 = vmatpush2.msra.mxu0 0.0
        %1432 = vmatprep.subr.mxu0 0.0
        %1433 = vmatpush2.msra.mxu0 0.0
        %1434 = vmatprep.subr.mxu0 0.0
        %1435 = vmatpush2.msra.mxu0 0.0
        %1436 = vmatprep.subr.mxu0 0.0
        %1437 = vmatpush2.msra.mxu0 0.0
        %1438 = vmatprep.subr.mxu0 0.0
        %1439 = vmatpush2.msra.mxu0 0.0
        %1440 = vmatprep.subr.mxu0 0.0
        %1441 = vmatpush2.msra.mxu0 0.0
        %1442 = vmatprep.subr.mxu0 0.0
        %1443 = vmatpush2.msra.mxu0 0.0
        %1444 = vmatprep.subr.mxu0 0.0
        %1445 = vmatpush2.msra.mxu0 0.0
        %1446 = vmatprep.subr.mxu0 0.0
        %1447 = vmatpush2.msra.mxu0 0.0
        %1448 = vmatprep.subr.mxu0 0.0
        %1449 = vmatpush2.msra.mxu0 0.0
        %1450 = vmatprep.subr.mxu0 0.0
        %1451 = vmatpush2.msra.mxu0 0.0
        %1452 = vmatprep.subr.mxu0 0.0
        %1453 = vmatpush2.msra.mxu0 0.0
        %1454 = vmatprep.mubr.f32.mxu0 0.0
        %1455 = vmatmul.mubr.f32.gmra.mxu0 %v1388
        %v1456 = vpop.f32.mrf.mxu0
        %v1457 = vadd.f32 0.0, %v1456
        %v1458 = vpop.f32.mrf.mxu0
        %1459 = vdwg.mxu0
        %1460 = vst.msk [vmem:[#allocation2] sm:$0xff] %vm1295, %v1457
        %1461 = vrot.lane.b32.xlu0 %v1273, 120
        %v1462 = vpop.permute.xlu0 %1461
        %1463 = vrot.lane.b32.xlu0 %v1282, 88
        %v1464 = vpop.permute.xlu0 %1463
        %v1465 = vsel %vm1295, %v1462, 0
        %v1467 = vsel %vm1295, %v1464, 0
        %1469 = vmatprep.subr.mxu0 0.0
        %1470 = vmatpush1.xpose.msra.mxu0 0.0
        %1471 = vmatprep.subr.mxu0 0.0
        %1472 = vmatpush1.xpose.msra.mxu0 0.0
        %1473 = vmatprep.subr.mxu0 0.0
        %1474 = vmatpush1.xpose.msra.mxu0 0.0
        %1475 = vmatprep.subr.mxu0 0.0
        %1476 = vmatpush1.xpose.msra.mxu0 0.0
        %1477 = vmatprep.subr.mxu0 0.0
        %1478 = vmatpush1.xpose.msra.mxu0 0.0
        %1479 = vmatprep.subr.mxu0 0.0
        %1480 = vmatpush1.xpose.msra.mxu0 0.0
        %1481 = vmatprep.subr.mxu0 0.0
        %1482 = vmatpush1.xpose.msra.mxu0 0.0
        %1483 = vmatprep.subr.mxu0 0.0
        %1484 = vmatpush1.xpose.msra.mxu0 0.0
        %1485 = vmatprep.subr.mxu0 0.0
        %1486 = vmatpush1.xpose.msra.mxu0 0.0
        %1487 = vmatprep.subr.mxu0 0.0
        %1488 = vmatpush1.xpose.msra.mxu0 0.0
        %1489 = vmatprep.subr.mxu0 0.0
        %1490 = vmatpush1.xpose.msra.mxu0 0.0
        %1491 = vmatprep.subr.mxu0 0.0
        %1492 = vmatpush1.xpose.msra.mxu0 0.0
        %1493 = vmatprep.subr.mxu0 0.0
        %1494 = vmatpush1.xpose.msra.mxu0 0.0
        %1495 = vmatprep.subr.mxu0 0.0
        %1496 = vmatpush1.xpose.msra.mxu0 0.0
        %1497 = vmatprep.subr.mxu0 0.0
        %1498 = vmatpush1.xpose.msra.mxu0 0.0
        %1499 = vmatprep.subr.mxu0 0.0
        %1500 = vmatpush1.xpose.msra.mxu0 %v1467
        %1501 = vmatprep.subr.mxu0 0.0
        %1502 = vmatpush2.xpose.msra.mxu0 0.0
        %1503 = vmatprep.subr.mxu0 0.0
        %1504 = vmatpush2.xpose.msra.mxu0 0.0
        %1505 = vmatprep.subr.mxu0 0.0
        %1506 = vmatpush2.xpose.msra.mxu0 0.0
        %1507 = vmatprep.subr.mxu0 0.0
        %1508 = vmatpush2.xpose.msra.mxu0 0.0
        %1509 = vmatprep.subr.mxu0 0.0
        %1510 = vmatpush2.xpose.msra.mxu0 0.0
        %1511 = vmatprep.subr.mxu0 0.0
        %1512 = vmatpush2.xpose.msra.mxu0 0.0
        %1513 = vmatprep.subr.mxu0 0.0
        %1514 = vmatpush2.xpose.msra.mxu0 0.0
        %1515 = vmatprep.subr.mxu0 0.0
        %1516 = vmatpush2.xpose.msra.mxu0 0.0
        %1517 = vmatprep.subr.mxu0 0.0
        %1518 = vmatpush2.xpose.msra.mxu0 0.0
        %1519 = vmatprep.subr.mxu0 0.0
        %1520 = vmatpush2.xpose.msra.mxu0 0.0
        %1521 = vmatprep.subr.mxu0 0.0
        %1522 = vmatpush2.xpose.msra.mxu0 0.0
        %1523 = vmatprep.subr.mxu0 0.0
        %1524 = vmatpush2.xpose.msra.mxu0 0.0
        %1525 = vmatprep.subr.mxu0 0.0
        %1526 = vmatpush2.xpose.msra.mxu0 0.0
        %1527 = vmatprep.subr.mxu0 0.0
        %1528 = vmatpush2.xpose.msra.mxu0 0.0
        %1529 = vmatprep.subr.mxu0 0.0
        %1530 = vmatpush2.xpose.msra.mxu0 0.0
        %1531 = vmatprep.subr.mxu0 0.0
        %1532 = vmatpush2.xpose.msra.mxu0 0.0
        %1533 = vmatprep.mubr.f32.mxu0 0.0
        %1534 = vmatmul.mubr.f32.gmra.mxu0 %v1465
        %v1535 = vpop.f32.mrf.mxu0
        %v1536 = vadd.f32 0.0, %v1535
        %v1537 = vpop.f32.mrf.mxu0
        %1538 = vdwg.mxu0
        %v1539 = vmul.f32 %v1536, 0.35355338
        %v1540 = vsel %vm1295, %v1539, -inf
        %1541 = vmax.xlane.f32.xlu0 %v1540
        %v1542 = vpop.xlane.xlu0 %1541
        %v1543 = vsub.f32 %v1539, %v1542
        %v1544 = vmul.f32 %v1543, 1.442695
        %v1545 = vpow.pop %v1544
        %v1546 = vsel %vm1295, %v1545, 0.0
        %1547 = vadd.xlane.f32.xlu0 %v1546
        %v1548 = vpop.xlane.xlu0 %1547
        %v1549 = vrcp.pop %v1548
        %v1550 = vmul.f32 %v1545, %v1549
        %1551 = vrot.lane.b32.xlu0 %v1291, 56
        %v1552 = vpop.permute.xlu0 %1551
        %v1555 = vsel %vm1295, %v1550, 0
        %1557 = vmatprep.subr.mxu0 0.0
        %1558 = vmatpush1.msra.mxu0 0.0
        %1559 = vmatprep.subr.mxu0 0.0
        %1560 = vmatpush1.msra.mxu0 0.0
        %1561 = vmatprep.subr.mxu0 0.0
        %1562 = vmatpush1.msra.mxu0 0.0
        %1563 = vmatprep.subr.mxu0 0.0
        %1564 = vmatpush1.msra.mxu0 0.0
        %1565 = vmatprep.subr.mxu0 0.0
        %1566 = vmatpush1.msra.mxu0 0.0
        %1567 = vmatprep.subr.mxu0 0.0
        %1568 = vmatpush1.msra.mxu0 0.0
        %1569 = vmatprep.subr.mxu0 0.0
        %1570 = vmatpush1.msra.mxu0 0.0
        %1571 = vmatprep.subr.mxu0 0.0
        %1572 = vmatpush1.msra.mxu0 0.0
        %1573 = vmatprep.subr.mxu0 0.0
        %1574 = vmatpush1.msra.mxu0 0.0
        %1575 = vmatprep.subr.mxu0 0.0
        %1576 = vmatpush1.msra.mxu0 0.0
        %1577 = vmatprep.subr.mxu0 0.0
        %1578 = vmatpush1.msra.mxu0 0.0
        %1579 = vmatprep.subr.mxu0 0.0
        %1580 = vmatpush1.msra.mxu0 0.0
        %1581 = vmatprep.subr.mxu0 0.0
        %1582 = vmatpush1.msra.mxu0 0.0
        %1583 = vmatprep.subr.mxu0 0.0
        %1584 = vmatpush1.msra.mxu0 0.0
        %1585 = vmatprep.subr.mxu0 0.0
        %1586 = vmatpush1.msra.mxu0 0.0
        %1587 = vmatprep.subr.mxu0 0.0
        %1588 = vmatpush1.msra.mxu0 %v1552
        %1589 = vmatprep.subr.mxu0 0.0
        %1590 = vmatpush2.msra.mxu0 0.0
        %1591 = vmatprep.subr.mxu0 0.0
        %1592 = vmatpush2.msra.mxu0 0.0
        %1593 = vmatprep.subr.mxu0 0.0
        %1594 = vmatpush2.msra.mxu0 0.0
        %1595 = vmatprep.subr.mxu0 0.0
        %1596 = vmatpush2.msra.mxu0 0.0
        %1597 = vmatprep.subr.mxu0 0.0
        %1598 = vmatpush2.msra.mxu0 0.0
        %1599 = vmatprep.subr.mxu0 0.0
        %1600 = vmatpush2.msra.mxu0 0.0
        %1601 = vmatprep.subr.mxu0 0.0
        %1602 = vmatpush2.msra.mxu0 0.0
        %1603 = vmatprep.subr.mxu0 0.0
        %1604 = vmatpush2.msra.mxu0 0.0
        %1605 = vmatprep.subr.mxu0 0.0
        %1606 = vmatpush2.msra.mxu0 0.0
        %1607 = vmatprep.subr.mxu0 0.0
        %1608 = vmatpush2.msra.mxu0 0.0
        %1609 = vmatprep.subr.mxu0 0.0
        %1610 = vmatpush2.msra.mxu0 0.0
        %1611 = vmatprep.subr.mxu0 0.0
        %1612 = vmatpush2.msra.mxu0 0.0
        %1613 = vmatprep.subr.mxu0 0.0
        %1614 = vmatpush2.msra.mxu0 0.0
        %1615 = vmatprep.subr.mxu0 0.0
        %1616 = vmatpush2.msra.mxu0 0.0
        %1617 = vmatprep.subr.mxu0 0.0
        %1618 = vmatpush2.msra.mxu0 0.0
        %1619 = vmatprep.subr.mxu0 0.0
        %1620 = vmatpush2.msra.mxu0 0.0
        %1621 = vmatprep.mubr.f32.mxu0 0.0
        %1622 = vmatmul.mubr.f32.gmra.mxu0 %v1555
        %v1623 = vpop.f32.mrf.mxu0
        %v1624 = vadd.f32 0.0, %v1623
        %v1625 = vpop.f32.mrf.mxu0
        %1626 = vdwg.mxu0
        %1628 = vrot.lane.b32.xlu0 %v1624, 8
        %v1629 = vpop.permute.xlu0 %1628
        %vm1631 = vcmask 130112
        %1632 = vst.msk [vmem:[#allocation2] sm:$0xff] %vm1631, %v1629
        %1633 = vrot.lane.b32.xlu0 %v1273, 112
        %v1634 = vpop.permute.xlu0 %1633
        %1635 = vrot.lane.b32.xlu0 %v1282, 80
        %v1636 = vpop.permute.xlu0 %1635
        %v1637 = vsel %vm1295, %v1634, 0
        %v1639 = vsel %vm1295, %v1636, 0
        %1641 = vmatprep.subr.mxu0 0.0
        %1642 = vmatpush1.xpose.msra.mxu0 0.0
        %1643 = vmatprep.subr.mxu0 0.0
        %1644 = vmatpush1.xpose.msra.mxu0 0.0
        %1645 = vmatprep.subr.mxu0 0.0
        %1646 = vmatpush1.xpose.msra.mxu0 0.0
        %1647 = vmatprep.subr.mxu0 0.0
        %1648 = vmatpush1.xpose.msra.mxu0 0.0
        %1649 = vmatprep.subr.mxu0 0.0
        %1650 = vmatpush1.xpose.msra.mxu0 0.0
        %1651 = vmatprep.subr.mxu0 0.0
        %1652 = vmatpush1.xpose.msra.mxu0 0.0
        %1653 = vmatprep.subr.mxu0 0.0
        %1654 = vmatpush1.xpose.msra.mxu0 0.0
        %1655 = vmatprep.subr.mxu0 0.0
        %1656 = vmatpush1.xpose.msra.mxu0 0.0
        %1657 = vmatprep.subr.mxu0 0.0
        %1658 = vmatpush1.xpose.msra.mxu0 0.0
        %1659 = vmatprep.subr.mxu0 0.0
        %1660 = vmatpush1.xpose.msra.mxu0 0.0
        %1661 = vmatprep.subr.mxu0 0.0
        %1662 = vmatpush1.xpose.msra.mxu0 0.0
        %1663 = vmatprep.subr.mxu0 0.0
        %1664 = vmatpush1.xpose.msra.mxu0 0.0
        %1665 = vmatprep.subr.mxu0 0.0
        %1666 = vmatpush1.xpose.msra.mxu0 0.0
        %1667 = vmatprep.subr.mxu0 0.0
        %1668 = vmatpush1.xpose.msra.mxu0 0.0
        %1669 = vmatprep.subr.mxu0 0.0
        %1670 = vmatpush1.xpose.msra.mxu0 0.0
        %1671 = vmatprep.subr.mxu0 0.0
        %1672 = vmatpush1.xpose.msra.mxu0 %v1639
        %1673 = vmatprep.subr.mxu0 0.0
        %1674 = vmatpush2.xpose.msra.mxu0 0.0
        %1675 = vmatprep.subr.mxu0 0.0
        %1676 = vmatpush2.xpose.msra.mxu0 0.0
        %1677 = vmatprep.subr.mxu0 0.0
        %1678 = vmatpush2.xpose.msra.mxu0 0.0
        %1679 = vmatprep.subr.mxu0 0.0
        %1680 = vmatpush2.xpose.msra.mxu0 0.0
        %1681 = vmatprep.subr.mxu0 0.0
        %1682 = vmatpush2.xpose.msra.mxu0 0.0
        %1683 = vmatprep.subr.mxu0 0.0
        %1684 = vmatpush2.xpose.msra.mxu0 0.0
        %1685 = vmatprep.subr.mxu0 0.0
        %1686 = vmatpush2.xpose.msra.mxu0 0.0
        %1687 = vmatprep.subr.mxu0 0.0
        %1688 = vmatpush2.xpose.msra.mxu0 0.0
        %1689 = vmatprep.subr.mxu0 0.0
        %1690 = vmatpush2.xpose.msra.mxu0 0.0
        %1691 = vmatprep.subr.mxu0 0.0
        %1692 = vmatpush2.xpose.msra.mxu0 0.0
        %1693 = vmatprep.subr.mxu0 0.0
        %1694 = vmatpush2.xpose.msra.mxu0 0.0
        %1695 = vmatprep.subr.mxu0 0.0
        %1696 = vmatpush2.xpose.msra.mxu0 0.0
        %1697 = vmatprep.subr.mxu0 0.0
        %1698 = vmatpush2.xpose.msra.mxu0 0.0
        %1699 = vmatprep.subr.mxu0 0.0
        %1700 = vmatpush2.xpose.msra.mxu0 0.0
        %1701 = vmatprep.subr.mxu0 0.0
        %1702 = vmatpush2.xpose.msra.mxu0 0.0
        %1703 = vmatprep.subr.mxu0 0.0
        %1704 = vmatpush2.xpose.msra.mxu0 0.0
        %1705 = vmatprep.mubr.f32.mxu0 0.0
        %1706 = vmatmul.mubr.f32.gmra.mxu0 %v1637
        %v1707 = vpop.f32.mrf.mxu0
        %v1708 = vadd.f32 0.0, %v1707
        %v1709 = vpop.f32.mrf.mxu0
        %1710 = vdwg.mxu0
        %v1711 = vmul.f32 %v1708, 0.35355338
        %v1712 = vsel %vm1295, %v1711, -inf
        %1713 = vmax.xlane.f32.xlu0 %v1712
        %v1714 = vpop.xlane.xlu0 %1713
        %v1715 = vsub.f32 %v1711, %v1714
        %v1716 = vmul.f32 %v1715, 1.442695
        %v1717 = vpow.pop %v1716
        %v1718 = vsel %vm1295, %v1717, 0.0
        %1719 = vadd.xlane.f32.xlu0 %v1718
        %v1720 = vpop.xlane.xlu0 %1719
        %v1721 = vrcp.pop %v1720
        %v1722 = vmul.f32 %v1717, %v1721
        %1723 = vrot.lane.b32.xlu0 %v1291, 48
        %v1724 = vpop.permute.xlu0 %1723
        %v1727 = vsel %vm1295, %v1722, 0
        %1729 = vmatprep.subr.mxu0 0.0
        %1730 = vmatpush1.msra.mxu0 0.0
        %1731 = vmatprep.subr.mxu0 0.0
        %1732 = vmatpush1.msra.mxu0 0.0
        %1733 = vmatprep.subr.mxu0 0.0
        %1734 = vmatpush1.msra.mxu0 0.0
        %1735 = vmatprep.subr.mxu0 0.0
        %1736 = vmatpush1.msra.mxu0 0.0
        %1737 = vmatprep.subr.mxu0 0.0
        %1738 = vmatpush1.msra.mxu0 0.0
        %1739 = vmatprep.subr.mxu0 0.0
        %1740 = vmatpush1.msra.mxu0 0.0
        %1741 = vmatprep.subr.mxu0 0.0
        %1742 = vmatpush1.msra.mxu0 0.0
        %1743 = vmatprep.subr.mxu0 0.0
        %1744 = vmatpush1.msra.mxu0 0.0
        %1745 = vmatprep.subr.mxu0 0.0
        %1746 = vmatpush1.msra.mxu0 0.0
        %1747 = vmatprep.subr.mxu0 0.0
        %1748 = vmatpush1.msra.mxu0 0.0
        %1749 = vmatprep.subr.mxu0 0.0
        %1750 = vmatpush1.msra.mxu0 0.0
        %1751 = vmatprep.subr.mxu0 0.0
        %1752 = vmatpush1.msra.mxu0 0.0
        %1753 = vmatprep.subr.mxu0 0.0
        %1754 = vmatpush1.msra.mxu0 0.0
        %1755 = vmatprep.subr.mxu0 0.0
        %1756 = vmatpush1.msra.mxu0 0.0
        %1757 = vmatprep.subr.mxu0 0.0
        %1758 = vmatpush1.msra.mxu0 0.0
        %1759 = vmatprep.subr.mxu0 0.0
        %1760 = vmatpush1.msra.mxu0 %v1724
        %1761 = vmatprep.subr.mxu0 0.0
        %1762 = vmatpush2.msra.mxu0 0.0
        %1763 = vmatprep.subr.mxu0 0.0
        %1764 = vmatpush2.msra.mxu0 0.0
        %1765 = vmatprep.subr.mxu0 0.0
        %1766 = vmatpush2.msra.mxu0 0.0
        %1767 = vmatprep.subr.mxu0 0.0
        %1768 = vmatpush2.msra.mxu0 0.0
        %1769 = vmatprep.subr.mxu0 0.0
        %1770 = vmatpush2.msra.mxu0 0.0
        %1771 = vmatprep.subr.mxu0 0.0
        %1772 = vmatpush2.msra.mxu0 0.0
        %1773 = vmatprep.subr.mxu0 0.0
        %1774 = vmatpush2.msra.mxu0 0.0
        %1775 = vmatprep.subr.mxu0 0.0
        %1776 = vmatpush2.msra.mxu0 0.0
        %1777 = vmatprep.subr.mxu0 0.0
        %1778 = vmatpush2.msra.mxu0 0.0
        %1779 = vmatprep.subr.mxu0 0.0
        %1780 = vmatpush2.msra.mxu0 0.0
        %1781 = vmatprep.subr.mxu0 0.0
        %1782 = vmatpush2.msra.mxu0 0.0
        %1783 = vmatprep.subr.mxu0 0.0
        %1784 = vmatpush2.msra.mxu0 0.0
        %1785 = vmatprep.subr.mxu0 0.0
        %1786 = vmatpush2.msra.mxu0 0.0
        %1787 = vmatprep.subr.mxu0 0.0
        %1788 = vmatpush2.msra.mxu0 0.0
        %1789 = vmatprep.subr.mxu0 0.0
        %1790 = vmatpush2.msra.mxu0 0.0
        %1791 = vmatprep.subr.mxu0 0.0
        %1792 = vmatpush2.msra.mxu0 0.0
        %1793 = vmatprep.mubr.f32.mxu0 0.0
        %1794 = vmatmul.mubr.f32.gmra.mxu0 %v1727
        %v1795 = vpop.f32.mrf.mxu0
        %v1796 = vadd.f32 0.0, %v1795
        %v1797 = vpop.f32.mrf.mxu0
        %1798 = vdwg.mxu0
        %1800 = vrot.lane.b32.xlu0 %v1796, 16
        %v1801 = vpop.permute.xlu0 %1800
        %vm1803 = vcmask 195712
        %1804 = vst.msk [vmem:[#allocation2] sm:$0xff] %vm1803, %v1801
        %1805 = vrot.lane.b32.xlu0 %v1273, 104
        %v1806 = vpop.permute.xlu0 %1805
        %1807 = vrot.lane.b32.xlu0 %v1282, 72
        %v1808 = vpop.permute.xlu0 %1807
        %v1809 = vsel %vm1295, %v1806, 0
        %v1811 = vsel %vm1295, %v1808, 0
        %1813 = vmatprep.subr.mxu0 0.0
        %1814 = vmatpush1.xpose.msra.mxu0 0.0
        %1815 = vmatprep.subr.mxu0 0.0
        %1816 = vmatpush1.xpose.msra.mxu0 0.0
        %1817 = vmatprep.subr.mxu0 0.0
        %1818 = vmatpush1.xpose.msra.mxu0 0.0
        %1819 = vmatprep.subr.mxu0 0.0
        %1820 = vmatpush1.xpose.msra.mxu0 0.0
        %1821 = vmatprep.subr.mxu0 0.0
        %1822 = vmatpush1.xpose.msra.mxu0 0.0
        %1823 = vmatprep.subr.mxu0 0.0
        %1824 = vmatpush1.xpose.msra.mxu0 0.0
        %1825 = vmatprep.subr.mxu0 0.0
        %1826 = vmatpush1.xpose.msra.mxu0 0.0
        %1827 = vmatprep.subr.mxu0 0.0
        %1828 = vmatpush1.xpose.msra.mxu0 0.0
        %1829 = vmatprep.subr.mxu0 0.0
        %1830 = vmatpush1.xpose.msra.mxu0 0.0
        %1831 = vmatprep.subr.mxu0 0.0
        %1832 = vmatpush1.xpose.msra.mxu0 0.0
        %1833 = vmatprep.subr.mxu0 0.0
        %1834 = vmatpush1.xpose.msra.mxu0 0.0
        %1835 = vmatprep.subr.mxu0 0.0
        %1836 = vmatpush1.xpose.msra.mxu0 0.0
        %1837 = vmatprep.subr.mxu0 0.0
        %1838 = vmatpush1.xpose.msra.mxu0 0.0
        %1839 = vmatprep.subr.mxu0 0.0
        %1840 = vmatpush1.xpose.msra.mxu0 0.0
        %1841 = vmatprep.subr.mxu0 0.0
        %1842 = vmatpush1.xpose.msra.mxu0 0.0
        %1843 = vmatprep.subr.mxu0 0.0
        %1844 = vmatpush1.xpose.msra.mxu0 %v1811
        %1845 = vmatprep.subr.mxu0 0.0
        %1846 = vmatpush2.xpose.msra.mxu0 0.0
        %1847 = vmatprep.subr.mxu0 0.0
        %1848 = vmatpush2.xpose.msra.mxu0 0.0
        %1849 = vmatprep.subr.mxu0 0.0
        %1850 = vmatpush2.xpose.msra.mxu0 0.0
        %1851 = vmatprep.subr.mxu0 0.0
        %1852 = vmatpush2.xpose.msra.mxu0 0.0
        %1853 = vmatprep.subr.mxu0 0.0
        %1854 = vmatpush2.xpose.msra.mxu0 0.0
        %1855 = vmatprep.subr.mxu0 0.0
        %1856 = vmatpush2.xpose.msra.mxu0 0.0
        %1857 = vmatprep.subr.mxu0 0.0
        %1858 = vmatpush2.xpose.msra.mxu0 0.0
        %1859 = vmatprep.subr.mxu0 0.0
        %1860 = vmatpush2.xpose.msra.mxu0 0.0
        %1861 = vmatprep.subr.mxu0 0.0
        %1862 = vmatpush2.xpose.msra.mxu0 0.0
        %1863 = vmatprep.subr.mxu0 0.0
        %1864 = vmatpush2.xpose.msra.mxu0 0.0
        %1865 = vmatprep.subr.mxu0 0.0
        %1866 = vmatpush2.xpose.msra.mxu0 0.0
        %1867 = vmatprep.subr.mxu0 0.0
        %1868 = vmatpush2.xpose.msra.mxu0 0.0
        %1869 = vmatprep.subr.mxu0 0.0
        %1870 = vmatpush2.xpose.msra.mxu0 0.0
        %1871 = vmatprep.subr.mxu0 0.0
        %1872 = vmatpush2.xpose.msra.mxu0 0.0
        %1873 = vmatprep.subr.mxu0 0.0
        %1874 = vmatpush2.xpose.msra.mxu0 0.0
        %1875 = vmatprep.subr.mxu0 0.0
        %1876 = vmatpush2.xpose.msra.mxu0 0.0
        %1877 = vmatprep.mubr.f32.mxu0 0.0
        %1878 = vmatmul.mubr.f32.gmra.mxu0 %v1809
        %v1879 = vpop.f32.mrf.mxu0
        %v1880 = vadd.f32 0.0, %v1879
        %v1881 = vpop.f32.mrf.mxu0
        %1882 = vdwg.mxu0
        %v1883 = vmul.f32 %v1880, 0.35355338
        %v1884 = vsel %vm1295, %v1883, -inf
        %1885 = vmax.xlane.f32.xlu0 %v1884
        %v1886 = vpop.xlane.xlu0 %1885
        %v1887 = vsub.f32 %v1883, %v1886
        %v1888 = vmul.f32 %v1887, 1.442695
        %v1889 = vpow.pop %v1888
        %v1890 = vsel %vm1295, %v1889, 0.0
        %1891 = vadd.xlane.f32.xlu0 %v1890
        %v1892 = vpop.xlane.xlu0 %1891
        %v1893 = vrcp.pop %v1892
        %v1894 = vmul.f32 %v1889, %v1893
        %1895 = vrot.lane.b32.xlu0 %v1291, 40
        %v1896 = vpop.permute.xlu0 %1895
        %v1899 = vsel %vm1295, %v1894, 0
        %1901 = vmatprep.subr.mxu0 0.0
        %1902 = vmatpush1.msra.mxu0 0.0
        %1903 = vmatprep.subr.mxu0 0.0
        %1904 = vmatpush1.msra.mxu0 0.0
        %1905 = vmatprep.subr.mxu0 0.0
        %1906 = vmatpush1.msra.mxu0 0.0
        %1907 = vmatprep.subr.mxu0 0.0
        %1908 = vmatpush1.msra.mxu0 0.0
        %1909 = vmatprep.subr.mxu0 0.0
        %1910 = vmatpush1.msra.mxu0 0.0
        %1911 = vmatprep.subr.mxu0 0.0
        %1912 = vmatpush1.msra.mxu0 0.0
        %1913 = vmatprep.subr.mxu0 0.0
        %1914 = vmatpush1.msra.mxu0 0.0
        %1915 = vmatprep.subr.mxu0 0.0
        %1916 = vmatpush1.msra.mxu0 0.0
        %1917 = vmatprep.subr.mxu0 0.0
        %1918 = vmatpush1.msra.mxu0 0.0
        %1919 = vmatprep.subr.mxu0 0.0
        %1920 = vmatpush1.msra.mxu0 0.0
        %1921 = vmatprep.subr.mxu0 0.0
        %1922 = vmatpush1.msra.mxu0 0.0
        %1923 = vmatprep.subr.mxu0 0.0
        %1924 = vmatpush1.msra.mxu0 0.0
        %1925 = vmatprep.subr.mxu0 0.0
        %1926 = vmatpush1.msra.mxu0 0.0
        %1927 = vmatprep.subr.mxu0 0.0
        %1928 = vmatpush1.msra.mxu0 0.0
        %1929 = vmatprep.subr.mxu0 0.0
        %1930 = vmatpush1.msra.mxu0 0.0
        %1931 = vmatprep.subr.mxu0 0.0
        %1932 = vmatpush1.msra.mxu0 %v1896
        %1933 = vmatprep.subr.mxu0 0.0
        %1934 = vmatpush2.msra.mxu0 0.0
        %1935 = vmatprep.subr.mxu0 0.0
        %1936 = vmatpush2.msra.mxu0 0.0
        %1937 = vmatprep.subr.mxu0 0.0
        %1938 = vmatpush2.msra.mxu0 0.0
        %1939 = vmatprep.subr.mxu0 0.0
        %1940 = vmatpush2.msra.mxu0 0.0
        %1941 = vmatprep.subr.mxu0 0.0
        %1942 = vmatpush2.msra.mxu0 0.0
        %1943 = vmatprep.subr.mxu0 0.0
        %1944 = vmatpush2.msra.mxu0 0.0
        %1945 = vmatprep.subr.mxu0 0.0
        %1946 = vmatpush2.msra.mxu0 0.0
        %1947 = vmatprep.subr.mxu0 0.0
        %1948 = vmatpush2.msra.mxu0 0.0
        %1949 = vmatprep.subr.mxu0 0.0
        %1950 = vmatpush2.msra.mxu0 0.0
        %1951 = vmatprep.subr.mxu0 0.0
        %1952 = vmatpush2.msra.mxu0 0.0
        %1953 = vmatprep.subr.mxu0 0.0
        %1954 = vmatpush2.msra.mxu0 0.0
        %1955 = vmatprep.subr.mxu0 0.0
        %1956 = vmatpush2.msra.mxu0 0.0
        %1957 = vmatprep.subr.mxu0 0.0
        %1958 = vmatpush2.msra.mxu0 0.0
        %1959 = vmatprep.subr.mxu0 0.0
        %1960 = vmatpush2.msra.mxu0 0.0
        %1961 = vmatprep.subr.mxu0 0.0
        %1962 = vmatpush2.msra.mxu0 0.0
        %1963 = vmatprep.subr.mxu0 0.0
        %1964 = vmatpush2.msra.mxu0 0.0
        %1965 = vmatprep.mubr.f32.mxu0 0.0
        %1966 = vmatmul.mubr.f32.gmra.mxu0 %v1899
        %v1967 = vpop.f32.mrf.mxu0
        %v1968 = vadd.f32 0.0, %v1967
        %v1969 = vpop.f32.mrf.mxu0
        %1970 = vdwg.mxu0
        %1972 = vrot.lane.b32.xlu0 %v1968, 24
        %v1973 = vpop.permute.xlu0 %1972
        %vm1975 = vcmask 261312
        %1976 = vst.msk [vmem:[#allocation2] sm:$0xff] %vm1975, %v1973
        %v1977 = vld [vmem:[#allocation2] sm:$0xff]
        %v1978 = vlaneseq
        %v1979 = vshrl.u32 %v1978, 7
        %v1980 = vsub.s32 3, %v1979
        %v1981 = vrot.slane %v1195, %v1980
        %v1983 = vsel %vm528, %v1977, 0
        %1985 = vmatprep.subr.mxu0 0.0
        %1986 = vmatpush1.msra.mxu0 0.0
        %1987 = vmatprep.subr.mxu0 0.0
        %1988 = vmatpush1.msra.mxu0 0.0
        %1989 = vmatprep.subr.mxu0 0.0
        %1990 = vmatpush1.msra.mxu0 0.0
        %1991 = vmatprep.subr.mxu0 0.0
        %1992 = vmatpush1.msra.mxu0 0.0
        %1993 = vmatprep.subr.mxu0 0.0
        %1994 = vmatpush1.msra.mxu0 0.0
        %1995 = vmatprep.subr.mxu0 0.0
        %1996 = vmatpush1.msra.mxu0 0.0
        %1997 = vmatprep.subr.mxu0 0.0
        %1998 = vmatpush1.msra.mxu0 0.0
        %1999 = vmatprep.subr.mxu0 0.0
        %2000 = vmatpush1.msra.mxu0 0.0
        %2001 = vmatprep.subr.mxu0 0.0
        %2002 = vmatpush1.msra.mxu0 0.0
        %2003 = vmatprep.subr.mxu0 0.0
        %2004 = vmatpush1.msra.mxu0 0.0
        %2005 = vmatprep.subr.mxu0 0.0
        %2006 = vmatpush1.msra.mxu0 0.0
        %2007 = vmatprep.subr.mxu0 0.0
        %2008 = vmatpush1.msra.mxu0 0.0
        %2009 = vmatprep.subr.mxu0 0.0
        %2010 = vmatpush1.msra.mxu0 %v1182
        %2011 = vmatprep.subr.mxu0 0.0
        %2012 = vmatpush1.msra.mxu0 %v1181
        %2013 = vmatprep.subr.mxu0 0.0
        %2014 = vmatpush1.msra.mxu0 %v1180
        %2015 = vmatprep.subr.mxu0 0.0
        %2016 = vmatpush1.msra.mxu0 %v1179
        %2017 = vmatprep.subr.mxu0 0.0
        %2018 = vmatpush2.msra.mxu0 0.0
        %2019 = vmatprep.subr.mxu0 0.0
        %2020 = vmatpush2.msra.mxu0 0.0
        %2021 = vmatprep.subr.mxu0 0.0
        %2022 = vmatpush2.msra.mxu0 0.0
        %2023 = vmatprep.subr.mxu0 0.0
        %2024 = vmatpush2.msra.mxu0 0.0
        %2025 = vmatprep.subr.mxu0 0.0
        %2026 = vmatpush2.msra.mxu0 0.0
        %2027 = vmatprep.subr.mxu0 0.0
        %2028 = vmatpush2.msra.mxu0 0.0
        %2029 = vmatprep.subr.mxu0 0.0
        %2030 = vmatpush2.msra.mxu0 0.0
        %2031 = vmatprep.subr.mxu0 0.0
        %2032 = vmatpush2.msra.mxu0 0.0
        %2033 = vmatprep.subr.mxu0 0.0
        %2034 = vmatpush2.msra.mxu0 0.0
        %2035 = vmatprep.subr.mxu0 0.0
        %2036 = vmatpush2.msra.mxu0 0.0
        %2037 = vmatprep.subr.mxu0 0.0
        %2038 = vmatpush2.msra.mxu0 0.0
        %2039 = vmatprep.subr.mxu0 0.0
        %2040 = vmatpush2.msra.mxu0 0.0
        %2041 = vmatprep.subr.mxu0 0.0
        %2042 = vmatpush2.msra.mxu0 0.0
        %2043 = vmatprep.subr.mxu0 0.0
        %2044 = vmatpush2.msra.mxu0 0.0
        %2045 = vmatprep.subr.mxu0 0.0
        %2046 = vmatpush2.msra.mxu0 0.0
        %2047 = vmatprep.subr.mxu0 0.0
        %2048 = vmatpush2.msra.mxu0 0.0
        %2049 = vmatprep.mubr.f32.mxu0 0.0
        %2050 = vmatmul.mubr.f32.gmra.mxu0 %v1983
        %v2051 = vpop.f32.mrf.mxu0
        %v2052 = vadd.f32 %v1981, %v2051
        %v2053 = vpop.f32.mrf.mxu0
        %2054 = vdwg.mxu0
        %v2055 = vadd.f32 %v2052, %v1174
        %v2056 = vsel %vm528, %v2055, 0.0
        %2057 = vadd.xlane.f32.xlu0 %v2056
        %v2058 = vpop.xlane.xlu0 %2057
        %v2059 = vmul.f32 %v2058, %v971
        %v2060 = vsub.f32 %v2055, %v2059
        %v2061 = vmul.f32 %v2060, %v2060
        %v2062 = vsel %vm528, %v2061, 0.0
        %2063 = vadd.xlane.f32.xlu0 %v2062
        %v2064 = vpop.xlane.xlu0 %2063
        %v2065 = vmul.f32 %v2064, %v971
        %v2066 = vadd.f32 %v2065, 1e-05
        %v2067 = vrsqrt.pop %v2066
        %v2068 = vmul.f32 %v2060, %v2067
        %v2069 = vlaneseq
        %v2070 = vshrl.u32 %v2069, 7
        %v2071 = vsub.s32 4, %v2070
        %v2072 = vrot.slane %v1195, %v2071
        %v2073 = vmul.f32 %v2068, %v2072
        %v2074 = vlaneseq
        %v2075 = vshrl.u32 %v2074, 7
        %v2076 = vsub.s32 5, %v2075
        %v2077 = vrot.slane %v1195, %v2076
        %v2078 = vadd.f32 %v2073, %v2077
        %v2079 = vlaneseq
        %v2080 = vshrl.u32 %v2079, 7
        %v2081 = vsub.s32 6, %v2080
        %v2082 = vrot.slane %v1195, %v2081
        %v2084 = vsel %vm528, %v2078, 0
        %2086 = vmatprep.subr.mxu0 0.0
        %2087 = vmatpush1.msra.mxu0 0.0
        %2088 = vmatprep.subr.mxu0 0.0
        %2089 = vmatpush1.msra.mxu0 0.0
        %2090 = vmatprep.subr.mxu0 0.0
        %2091 = vmatpush1.msra.mxu0 0.0
        %2092 = vmatprep.subr.mxu0 0.0
        %2093 = vmatpush1.msra.mxu0 0.0
        %2094 = vmatprep.subr.mxu0 0.0
        %2095 = vmatpush1.msra.mxu0 0.0
        %2096 = vmatprep.subr.mxu0 0.0
        %2097 = vmatpush1.msra.mxu0 0.0
        %2098 = vmatprep.subr.mxu0 0.0
        %2099 = vmatpush1.msra.mxu0 0.0
        %2100 = vmatprep.subr.mxu0 0.0
        %2101 = vmatpush1.msra.mxu0 0.0
        %2102 = vmatprep.subr.mxu0 0.0
        %2103 = vmatpush1.msra.mxu0 0.0
        %2104 = vmatprep.subr.mxu0 0.0
        %2105 = vmatpush1.msra.mxu0 0.0
        %2106 = vmatprep.subr.mxu0 0.0
        %2107 = vmatpush1.msra.mxu0 0.0
        %2108 = vmatprep.subr.mxu0 0.0
        %2109 = vmatpush1.msra.mxu0 0.0
        %2110 = vmatprep.subr.mxu0 0.0
        %2111 = vmatpush1.msra.mxu0 %v1186
        %2112 = vmatprep.subr.mxu0 0.0
        %2113 = vmatpush1.msra.mxu0 %v1185
        %2114 = vmatprep.subr.mxu0 0.0
        %2115 = vmatpush1.msra.mxu0 %v1184
        %2116 = vmatprep.subr.mxu0 0.0
        %2117 = vmatpush1.msra.mxu0 %v1183
        %2118 = vmatprep.subr.mxu0 0.0
        %2119 = vmatpush2.msra.mxu0 0.0
        %2120 = vmatprep.subr.mxu0 0.0
        %2121 = vmatpush2.msra.mxu0 0.0
        %2122 = vmatprep.subr.mxu0 0.0
        %2123 = vmatpush2.msra.mxu0 0.0
        %2124 = vmatprep.subr.mxu0 0.0
        %2125 = vmatpush2.msra.mxu0 0.0
        %2126 = vmatprep.subr.mxu0 0.0
        %2127 = vmatpush2.msra.mxu0 0.0
        %2128 = vmatprep.subr.mxu0 0.0
        %2129 = vmatpush2.msra.mxu0 0.0
        %2130 = vmatprep.subr.mxu0 0.0
        %2131 = vmatpush2.msra.mxu0 0.0
        %2132 = vmatprep.subr.mxu0 0.0
        %2133 = vmatpush2.msra.mxu0 0.0
        %2134 = vmatprep.subr.mxu0 0.0
        %2135 = vmatpush2.msra.mxu0 0.0
        %2136 = vmatprep.subr.mxu0 0.0
        %2137 = vmatpush2.msra.mxu0 0.0
        %2138 = vmatprep.subr.mxu0 0.0
        %2139 = vmatpush2.msra.mxu0 0.0
        %2140 = vmatprep.subr.mxu0 0.0
        %2141 = vmatpush2.msra.mxu0 0.0
        %2142 = vmatprep.subr.mxu0 0.0
        %2143 = vmatpush2.msra.mxu0 0.0
        %2144 = vmatprep.subr.mxu0 0.0
        %2145 = vmatpush2.msra.mxu0 0.0
        %2146 = vmatprep.subr.mxu0 0.0
        %2147 = vmatpush2.msra.mxu0 0.0
        %2148 = vmatprep.subr.mxu0 0.0
        %2149 = vmatpush2.msra.mxu0 0.0
        %2150 = vmatprep.mubr.f32.mxu0 0.0
        %2151 = vmatmul.mubr.f32.gmra.mxu0 %v2084
        %v2152 = vpop.f32.mrf.mxu0
        %v2153 = vadd.f32 %v2082, %v2152
        %v2154 = vpop.f32.mrf.mxu0
        %2155 = vdwg.mxu0
        %v2156 = vmul.f32 %v2153, 0.5
        %v2157 = vmul.f32 %v2153, 0.70710677
        %v2158 = vand.u32 2147483647, %v2157
        %v2159 = vmul.f32 %v2158, 0.3275911
        %v2160 = vadd.f32 %v2159, 1.0
        %v2161 = vrcp.pop %v2160
        %v2162 = vmul.f32 1.0, %v2161
        %v2163 = vmul.f32 %v2162, 1.0614054
        %v2164 = vadd.f32 %v2163, -1.4531521
        %v2165 = vmul.f32 %v2164, %v2162
        %v2166 = vadd.f32 %v2165, 1.4214138
        %v2167 = vmul.f32 %v2166, %v2162
        %v2168 = vadd.f32 %v2167, -0.28449672
        %v2169 = vmul.f32 %v2168, %v2162
        %v2170 = vadd.f32 %v2169, 0.2548296
        %v2171 = vmul.f32 %v2170, %v2162
        %v2172 = vsub.f32 0.0, %v2158
        %v2173 = vmul.f32 %v2172, %v2158
        %v2174 = vmul.f32 %v2173, 1.442695
        %v2175 = vpow.pop %v2174
        %v2176 = vmul.f32 %v2171, %v2175
        %v2177 = vsub.f32 1.0, %v2176
        %vm2178 = vcmp.ge.f32.partialorder %v2157, 0.0
        %v2179 = vsub.f32 0.0, %v2177
        %v2180 = vsel %vm2178, %v2177, %v2179
        %v2181 = vadd.f32 %v2180, 1.0
        %v2182 = vmul.f32 %v2156, %v2181
        %v2183 = vlaneseq
        %v2184 = vshrl.u32 %v2183, 7
        %v2185 = vsub.s32 7, %v2184
        %v2186 = vrot.slane %v1195, %v2185
        %v2188 = vsel %vm1100, %v2182, 0
        %2190 = vmatprep.subr.mxu0 0.0
        %2191 = vmatpush1.msra.mxu0 0.0
        %2192 = vmatprep.subr.mxu0 0.0
        %2193 = vmatpush1.msra.mxu0 0.0
        %2194 = vmatprep.subr.mxu0 0.0
        %2195 = vmatpush1.msra.mxu0 0.0
        %2196 = vmatprep.subr.mxu0 0.0
        %2197 = vmatpush1.msra.mxu0 0.0
        %2198 = vmatprep.subr.mxu0 0.0
        %2199 = vmatpush1.msra.mxu0 0.0
        %2200 = vmatprep.subr.mxu0 0.0
        %2201 = vmatpush1.msra.mxu0 0.0
        %2202 = vmatprep.subr.mxu0 0.0
        %2203 = vmatpush1.msra.mxu0 0.0
        %2204 = vmatprep.subr.mxu0 0.0
        %2205 = vmatpush1.msra.mxu0 0.0
        %2206 = vmatprep.subr.mxu0 0.0
        %2207 = vmatpush1.msra.mxu0 %v1194
        %2208 = vmatprep.subr.mxu0 0.0
        %2209 = vmatpush1.msra.mxu0 %v1193
        %2210 = vmatprep.subr.mxu0 0.0
        %2211 = vmatpush1.msra.mxu0 %v1192
        %2212 = vmatprep.subr.mxu0 0.0
        %2213 = vmatpush1.msra.mxu0 %v1191
        %2214 = vmatprep.subr.mxu0 0.0
        %2215 = vmatpush1.msra.mxu0 %v1190
        %2216 = vmatprep.subr.mxu0 0.0
        %2217 = vmatpush1.msra.mxu0 %v1189
        %2218 = vmatprep.subr.mxu0 0.0
        %2219 = vmatpush1.msra.mxu0 %v1188
        %2220 = vmatprep.subr.mxu0 0.0
        %2221 = vmatpush1.msra.mxu0 %v1187
        %2222 = vmatprep.subr.mxu0 0.0
        %2223 = vmatpush2.msra.mxu0 0.0
        %2224 = vmatprep.subr.mxu0 0.0
        %2225 = vmatpush2.msra.mxu0 0.0
        %2226 = vmatprep.subr.mxu0 0.0
        %2227 = vmatpush2.msra.mxu0 0.0
        %2228 = vmatprep.subr.mxu0 0.0
        %2229 = vmatpush2.msra.mxu0 0.0
        %2230 = vmatprep.subr.mxu0 0.0
        %2231 = vmatpush2.msra.mxu0 0.0
        %2232 = vmatprep.subr.mxu0 0.0
        %2233 = vmatpush2.msra.mxu0 0.0
        %2234 = vmatprep.subr.mxu0 0.0
        %2235 = vmatpush2.msra.mxu0 0.0
        %2236 = vmatprep.subr.mxu0 0.0
        %2237 = vmatpush2.msra.mxu0 0.0
        %2238 = vmatprep.subr.mxu0 0.0
        %2239 = vmatpush2.msra.mxu0 0.0
        %2240 = vmatprep.subr.mxu0 0.0
        %2241 = vmatpush2.msra.mxu0 0.0
        %2242 = vmatprep.subr.mxu0 0.0
        %2243 = vmatpush2.msra.mxu0 0.0
        %2244 = vmatprep.subr.mxu0 0.0
        %2245 = vmatpush2.msra.mxu0 0.0
        %2246 = vmatprep.subr.mxu0 0.0
        %2247 = vmatpush2.msra.mxu0 0.0
        %2248 = vmatprep.subr.mxu0 0.0
        %2249 = vmatpush2.msra.mxu0 0.0
        %2250 = vmatprep.subr.mxu0 0.0
        %2251 = vmatpush2.msra.mxu0 0.0
        %2252 = vmatprep.subr.mxu0 0.0
        %2253 = vmatpush2.msra.mxu0 0.0
        %2254 = vmatprep.mubr.f32.mxu0 0.0
        %2255 = vmatmul.mubr.f32.gmra.mxu0 %v2188
        %v2256 = vpop.f32.mrf.mxu0
        %v2257 = vadd.f32 %v2186, %v2256
        %v2258 = vpop.f32.mrf.mxu0
        %2259 = vdwg.mxu0
        %v2260 = vadd.f32 %v2257, %v2055
        %s2261 = scalar_lea.vmem %s7, 32
        %v2262 = vld [vmem:[%s2261] sm:$0xff]
        %v2263 = vld [vmem:[%s2261 + $0x8] sm:$0xff]
        %v2264 = vld [vmem:[%s2261 + $0x10] sm:$0xff]
        %v2265 = vld [vmem:[%s2261 + $0x18] sm:$0xff]
        %s2266 = scalar_lea.vmem %s8, 32
        %v2267 = vld [vmem:[%s2266] sm:$0xff]
        %v2268 = vld [vmem:[%s2266 + $0x8] sm:$0xff]
        %v2269 = vld [vmem:[%s2266 + $0x10] sm:$0xff]
        %v2270 = vld [vmem:[%s2266 + $0x18] sm:$0xff]
        %s2271 = scalar_lea.vmem %s9, 32
        %v2272 = vld [vmem:[%s2271] sm:$0xff]
        %v2273 = vld [vmem:[%s2271 + $0x8] sm:$0xff]
        %v2274 = vld [vmem:[%s2271 + $0x10] sm:$0xff]
        %v2275 = vld [vmem:[%s2271 + $0x18] sm:$0xff]
        %s2276 = scalar_lea.vmem %s10, 64
        %v2277 = vld [vmem:[%s2276] sm:$0xff]
        %v2278 = vld [vmem:[%s2276 + $0x8] sm:$0xff]
        %v2279 = vld [vmem:[%s2276 + $0x10] sm:$0xff]
        %v2280 = vld [vmem:[%s2276 + $0x18] sm:$0xff]
        %v2281 = vld [vmem:[%s2276 + $0x20] sm:$0xff]
        %v2282 = vld [vmem:[%s2276 + $0x28] sm:$0xff]
        %v2283 = vld [vmem:[%s2276 + $0x30] sm:$0xff]
        %v2284 = vld [vmem:[%s2276 + $0x38] sm:$0xff]
        %s2285 = scalar_lea.vmem [#allocation11], 8
        %v2286 = vld [vmem:[%s2285] sm:$0xff]
        %v2288 = vsel %vm528, %v2260, 0
        %2290 = vmatprep.subr.mxu0 0.0
        %2291 = vmatpush1.msra.mxu0 0.0
        %2292 = vmatprep.subr.mxu0 0.0
        %2293 = vmatpush1.msra.mxu0 0.0
        %2294 = vmatprep.subr.mxu0 0.0
        %2295 = vmatpush1.msra.mxu0 0.0
        %2296 = vmatprep.subr.mxu0 0.0
        %2297 = vmatpush1.msra.mxu0 0.0
        %2298 = vmatprep.subr.mxu0 0.0
        %2299 = vmatpush1.msra.mxu0 0.0
        %2300 = vmatprep.subr.mxu0 0.0
        %2301 = vmatpush1.msra.mxu0 0.0
        %2302 = vmatprep.subr.mxu0 0.0
        %2303 = vmatpush1.msra.mxu0 0.0
        %2304 = vmatprep.subr.mxu0 0.0
        %2305 = vmatpush1.msra.mxu0 0.0
        %2306 = vmatprep.subr.mxu0 0.0
        %2307 = vmatpush1.msra.mxu0 0.0
        %2308 = vmatprep.subr.mxu0 0.0
        %2309 = vmatpush1.msra.mxu0 0.0
        %2310 = vmatprep.subr.mxu0 0.0
        %2311 = vmatpush1.msra.mxu0 0.0
        %2312 = vmatprep.subr.mxu0 0.0
        %2313 = vmatpush1.msra.mxu0 0.0
        %2314 = vmatprep.subr.mxu0 0.0
        %2315 = vmatpush1.msra.mxu0 %v2265
        %2316 = vmatprep.subr.mxu0 0.0
        %2317 = vmatpush1.msra.mxu0 %v2264
        %2318 = vmatprep.subr.mxu0 0.0
        %2319 = vmatpush1.msra.mxu0 %v2263
        %2320 = vmatprep.subr.mxu0 0.0
        %2321 = vmatpush1.msra.mxu0 %v2262
        %2322 = vmatprep.subr.mxu0 0.0
        %2323 = vmatpush2.msra.mxu0 0.0
        %2324 = vmatprep.subr.mxu0 0.0
        %2325 = vmatpush2.msra.mxu0 0.0
        %2326 = vmatprep.subr.mxu0 0.0
        %2327 = vmatpush2.msra.mxu0 0.0
        %2328 = vmatprep.subr.mxu0 0.0
        %2329 = vmatpush2.msra.mxu0 0.0
        %2330 = vmatprep.subr.mxu0 0.0
        %2331 = vmatpush2.msra.mxu0 0.0
        %2332 = vmatprep.subr.mxu0 0.0
        %2333 = vmatpush2.msra.mxu0 0.0
        %2334 = vmatprep.subr.mxu0 0.0
        %2335 = vmatpush2.msra.mxu0 0.0
        %2336 = vmatprep.subr.mxu0 0.0
        %2337 = vmatpush2.msra.mxu0 0.0
        %2338 = vmatprep.subr.mxu0 0.0
        %2339 = vmatpush2.msra.mxu0 0.0
        %2340 = vmatprep.subr.mxu0 0.0
        %2341 = vmatpush2.msra.mxu0 0.0
        %2342 = vmatprep.subr.mxu0 0.0
        %2343 = vmatpush2.msra.mxu0 0.0
        %2344 = vmatprep.subr.mxu0 0.0
        %2345 = vmatpush2.msra.mxu0 0.0
        %2346 = vmatprep.subr.mxu0 0.0
        %2347 = vmatpush2.msra.mxu0 0.0
        %2348 = vmatprep.subr.mxu0 0.0
        %2349 = vmatpush2.msra.mxu0 0.0
        %2350 = vmatprep.subr.mxu0 0.0
        %2351 = vmatpush2.msra.mxu0 0.0
        %2352 = vmatprep.subr.mxu0 0.0
        %2353 = vmatpush2.msra.mxu0 0.0
        %2354 = vmatprep.mubr.f32.mxu0 0.0
        %2355 = vmatmul.mubr.f32.gmra.mxu0 %v2288
        %v2356 = vpop.f32.mrf.mxu0
        %v2357 = vadd.f32 0.0, %v2356
        %v2358 = vpop.f32.mrf.mxu0
        %2359 = vdwg.mxu0
        %v2360 = vlaneseq
        %v2361 = vshrl.u32 %v2360, 7
        %v2362 = vsub.s32 0, %v2361
        %v2363 = vrot.slane %v2286, %v2362
        %v2364 = vadd.f32 %v2357, %v2363
        %v2365 = vlaneseq
        %v2366 = vshrl.u32 %v2365, 7
        %v2367 = vsub.s32 1, %v2366
        %v2368 = vrot.slane %v2286, %v2367
        %2370 = vrot.lane.b32.xlu0 %v2368, 32
        %v2371 = vpop.permute.xlu0 %2370
        %v2373 = vadd.f32 %v2357, %v2371
        %v2374 = vlaneseq
        %v2375 = vshrl.u32 %v2374, 7
        %v2376 = vsub.s32 2, %v2375
        %v2377 = vrot.slane %v2286, %v2376
        %2379 = vrot.lane.b32.xlu0 %v2377, 64
        %v2380 = vpop.permute.xlu0 %2379
        %v2382 = vadd.f32 %v2357, %v2380
        %2384 = vrot.lane.b32.xlu0 %v2373, 96
        %v2385 = vpop.permute.xlu0 %2384
        %v2387 = vsel %vm1295, %v2364, 0
        %v2389 = vsel %vm1295, %v2385, 0
        %2391 = vmatprep.subr.mxu0 0.0
        %2392 = vmatpush1.xpose.msra.mxu0 0.0
        %2393 = vmatprep.subr.mxu0 0.0
        %2394 = vmatpush1.xpose.msra.mxu0 0.0
        %2395 = vmatprep.subr.mxu0 0.0
        %2396 = vmatpush1.xpose.msra.mxu0 0.0
        %2397 = vmatprep.subr.mxu0 0.0
        %2398 = vmatpush1.xpose.msra.mxu0 0.0
        %2399 = vmatprep.subr.mxu0 0.0
        %2400 = vmatpush1.xpose.msra.mxu0 0.0
        %2401 = vmatprep.subr.mxu0 0.0
        %2402 = vmatpush1.xpose.msra.mxu0 0.0
        %2403 = vmatprep.subr.mxu0 0.0
        %2404 = vmatpush1.xpose.msra.mxu0 0.0
        %2405 = vmatprep.subr.mxu0 0.0
        %2406 = vmatpush1.xpose.msra.mxu0 0.0
        %2407 = vmatprep.subr.mxu0 0.0
        %2408 = vmatpush1.xpose.msra.mxu0 0.0
        %2409 = vmatprep.subr.mxu0 0.0
        %2410 = vmatpush1.xpose.msra.mxu0 0.0
        %2411 = vmatprep.subr.mxu0 0.0
        %2412 = vmatpush1.xpose.msra.mxu0 0.0
        %2413 = vmatprep.subr.mxu0 0.0
        %2414 = vmatpush1.xpose.msra.mxu0 0.0
        %2415 = vmatprep.subr.mxu0 0.0
        %2416 = vmatpush1.xpose.msra.mxu0 0.0
        %2417 = vmatprep.subr.mxu0 0.0
        %2418 = vmatpush1.xpose.msra.mxu0 0.0
        %2419 = vmatprep.subr.mxu0 0.0
        %2420 = vmatpush1.xpose.msra.mxu0 0.0
        %2421 = vmatprep.subr.mxu0 0.0
        %2422 = vmatpush1.xpose.msra.mxu0 %v2389
        %2423 = vmatprep.subr.mxu0 0.0
        %2424 = vmatpush2.xpose.msra.mxu0 0.0
        %2425 = vmatprep.subr.mxu0 0.0
        %2426 = vmatpush2.xpose.msra.mxu0 0.0
        %2427 = vmatprep.subr.mxu0 0.0
        %2428 = vmatpush2.xpose.msra.mxu0 0.0
        %2429 = vmatprep.subr.mxu0 0.0
        %2430 = vmatpush2.xpose.msra.mxu0 0.0
        %2431 = vmatprep.subr.mxu0 0.0
        %2432 = vmatpush2.xpose.msra.mxu0 0.0
        %2433 = vmatprep.subr.mxu0 0.0
        %2434 = vmatpush2.xpose.msra.mxu0 0.0
        %2435 = vmatprep.subr.mxu0 0.0
        %2436 = vmatpush2.xpose.msra.mxu0 0.0
        %2437 = vmatprep.subr.mxu0 0.0
        %2438 = vmatpush2.xpose.msra.mxu0 0.0
        %2439 = vmatprep.subr.mxu0 0.0
        %2440 = vmatpush2.xpose.msra.mxu0 0.0
        %2441 = vmatprep.subr.mxu0 0.0
        %2442 = vmatpush2.xpose.msra.mxu0 0.0
        %2443 = vmatprep.subr.mxu0 0.0
        %2444 = vmatpush2.xpose.msra.mxu0 0.0
        %2445 = vmatprep.subr.mxu0 0.0
        %2446 = vmatpush2.xpose.msra.mxu0 0.0
        %2447 = vmatprep.subr.mxu0 0.0
        %2448 = vmatpush2.xpose.msra.mxu0 0.0
        %2449 = vmatprep.subr.mxu0 0.0
        %2450 = vmatpush2.xpose.msra.mxu0 0.0
        %2451 = vmatprep.subr.mxu0 0.0
        %2452 = vmatpush2.xpose.msra.mxu0 0.0
        %2453 = vmatprep.subr.mxu0 0.0
        %2454 = vmatpush2.xpose.msra.mxu0 0.0
        %2455 = vmatprep.mubr.f32.mxu0 0.0
        %2456 = vmatmul.mubr.f32.gmra.mxu0 %v2387
        %v2457 = vpop.f32.mrf.mxu0
        %v2458 = vadd.f32 0.0, %v2457
        %v2459 = vpop.f32.mrf.mxu0
        %2460 = vdwg.mxu0
        %v2461 = vmul.f32 %v2458, 0.35355338
        %v2462 = vsel %vm1295, %v2461, -inf
        %2463 = vmax.xlane.f32.xlu0 %v2462
        %v2464 = vpop.xlane.xlu0 %2463
        %v2465 = vsub.f32 %v2461, %v2464
        %v2466 = vmul.f32 %v2465, 1.442695
        %v2467 = vpow.pop %v2466
        %v2468 = vsel %vm1295, %v2467, 0.0
        %2469 = vadd.xlane.f32.xlu0 %v2468
        %v2470 = vpop.xlane.xlu0 %2469
        %v2471 = vrcp.pop %v2470
        %v2472 = vmul.f32 %v2467, %v2471
        %2474 = vrot.lane.b32.xlu0 %v2382, 64
        %v2475 = vpop.permute.xlu0 %2474
        %v2478 = vsel %vm1295, %v2472, 0
        %2480 = vmatprep.subr.mxu0 0.0
        %2481 = vmatpush1.msra.mxu0 0.0
        %2482 = vmatprep.subr.mxu0 0.0
        %2483 = vmatpush1.msra.mxu0 0.0
        %2484 = vmatprep.subr.mxu0 0.0
        %2485 = vmatpush1.msra.mxu0 0.0
        %2486 = vmatprep.subr.mxu0 0.0
        %2487 = vmatpush1.msra.mxu0 0.0
        %2488 = vmatprep.subr.mxu0 0.0
        %2489 = vmatpush1.msra.mxu0 0.0
        %2490 = vmatprep.subr.mxu0 0.0
        %2491 = vmatpush1.msra.mxu0 0.0
        %2492 = vmatprep.subr.mxu0 0.0
        %2493 = vmatpush1.msra.mxu0 0.0
        %2494 = vmatprep.subr.mxu0 0.0
        %2495 = vmatpush1.msra.mxu0 0.0
        %2496 = vmatprep.subr.mxu0 0.0
        %2497 = vmatpush1.msra.mxu0 0.0
        %2498 = vmatprep.subr.mxu0 0.0
        %2499 = vmatpush1.msra.mxu0 0.0
        %2500 = vmatprep.subr.mxu0 0.0
        %2501 = vmatpush1.msra.mxu0 0.0
        %2502 = vmatprep.subr.mxu0 0.0
        %2503 = vmatpush1.msra.mxu0 0.0
        %2504 = vmatprep.subr.mxu0 0.0
        %2505 = vmatpush1.msra.mxu0 0.0
        %2506 = vmatprep.subr.mxu0 0.0
        %2507 = vmatpush1.msra.mxu0 0.0
        %2508 = vmatprep.subr.mxu0 0.0
        %2509 = vmatpush1.msra.mxu0 0.0
        %2510 = vmatprep.subr.mxu0 0.0
        %2511 = vmatpush1.msra.mxu0 %v2475
        %2512 = vmatprep.subr.mxu0 0.0
        %2513 = vmatpush2.msra.mxu0 0.0
        %2514 = vmatprep.subr.mxu0 0.0
        %2515 = vmatpush2.msra.mxu0 0.0
        %2516 = vmatprep.subr.mxu0 0.0
        %2517 = vmatpush2.msra.mxu0 0.0
        %2518 = vmatprep.subr.mxu0 0.0
        %2519 = vmatpush2.msra.mxu0 0.0
        %2520 = vmatprep.subr.mxu0 0.0
        %2521 = vmatpush2.msra.mxu0 0.0
        %2522 = vmatprep.subr.mxu0 0.0
        %2523 = vmatpush2.msra.mxu0 0.0
        %2524 = vmatprep.subr.mxu0 0.0
        %2525 = vmatpush2.msra.mxu0 0.0
        %2526 = vmatprep.subr.mxu0 0.0
        %2527 = vmatpush2.msra.mxu0 0.0
        %2528 = vmatprep.subr.mxu0 0.0
        %2529 = vmatpush2.msra.mxu0 0.0
        %2530 = vmatprep.subr.mxu0 0.0
        %2531 = vmatpush2.msra.mxu0 0.0
        %2532 = vmatprep.subr.mxu0 0.0
        %2533 = vmatpush2.msra.mxu0 0.0
        %2534 = vmatprep.subr.mxu0 0.0
        %2535 = vmatpush2.msra.mxu0 0.0
        %2536 = vmatprep.subr.mxu0 0.0
        %2537 = vmatpush2.msra.mxu0 0.0
        %2538 = vmatprep.subr.mxu0 0.0
        %2539 = vmatpush2.msra.mxu0 0.0
        %2540 = vmatprep.subr.mxu0 0.0
        %2541 = vmatpush2.msra.mxu0 0.0
        %2542 = vmatprep.subr.mxu0 0.0
        %2543 = vmatpush2.msra.mxu0 0.0
        %2544 = vmatprep.mubr.f32.mxu0 0.0
        %2545 = vmatmul.mubr.f32.gmra.mxu0 %v2478
        %v2546 = vpop.f32.mrf.mxu0
        %v2547 = vadd.f32 0.0, %v2546
        %v2548 = vpop.f32.mrf.mxu0
        %2549 = vdwg.mxu0
        %2550 = vst.msk [vmem:[#allocation2] sm:$0xff] %vm1295, %v2547
        %2551 = vrot.lane.b32.xlu0 %v2364, 120
        %v2552 = vpop.permute.xlu0 %2551
        %2553 = vrot.lane.b32.xlu0 %v2373, 88
        %v2554 = vpop.permute.xlu0 %2553
        %v2555 = vsel %vm1295, %v2552, 0
        %v2557 = vsel %vm1295, %v2554, 0
        %2559 = vmatprep.subr.mxu0 0.0
        %2560 = vmatpush1.xpose.msra.mxu0 0.0
        %2561 = vmatprep.subr.mxu0 0.0
        %2562 = vmatpush1.xpose.msra.mxu0 0.0
        %2563 = vmatprep.subr.mxu0 0.0
        %2564 = vmatpush1.xpose.msra.mxu0 0.0
        %2565 = vmatprep.subr.mxu0 0.0
        %2566 = vmatpush1.xpose.msra.mxu0 0.0
        %2567 = vmatprep.subr.mxu0 0.0
        %2568 = vmatpush1.xpose.msra.mxu0 0.0
        %2569 = vmatprep.subr.mxu0 0.0
        %2570 = vmatpush1.xpose.msra.mxu0 0.0
        %2571 = vmatprep.subr.mxu0 0.0
        %2572 = vmatpush1.xpose.msra.mxu0 0.0
        %2573 = vmatprep.subr.mxu0 0.0
        %2574 = vmatpush1.xpose.msra.mxu0 0.0
        %2575 = vmatprep.subr.mxu0 0.0
        %2576 = vmatpush1.xpose.msra.mxu0 0.0
        %2577 = vmatprep.subr.mxu0 0.0
        %2578 = vmatpush1.xpose.msra.mxu0 0.0
        %2579 = vmatprep.subr.mxu0 0.0
        %2580 = vmatpush1.xpose.msra.mxu0 0.0
        %2581 = vmatprep.subr.mxu0 0.0
        %2582 = vmatpush1.xpose.msra.mxu0 0.0
        %2583 = vmatprep.subr.mxu0 0.0
        %2584 = vmatpush1.xpose.msra.mxu0 0.0
        %2585 = vmatprep.subr.mxu0 0.0
        %2586 = vmatpush1.xpose.msra.mxu0 0.0
        %2587 = vmatprep.subr.mxu0 0.0
        %2588 = vmatpush1.xpose.msra.mxu0 0.0
        %2589 = vmatprep.subr.mxu0 0.0
        %2590 = vmatpush1.xpose.msra.mxu0 %v2557
        %2591 = vmatprep.subr.mxu0 0.0
        %2592 = vmatpush2.xpose.msra.mxu0 0.0
        %2593 = vmatprep.subr.mxu0 0.0
        %2594 = vmatpush2.xpose.msra.mxu0 0.0
        %2595 = vmatprep.subr.mxu0 0.0
        %2596 = vmatpush2.xpose.msra.mxu0 0.0
        %2597 = vmatprep.subr.mxu0 0.0
        %2598 = vmatpush2.xpose.msra.mxu0 0.0
        %2599 = vmatprep.subr.mxu0 0.0
        %2600 = vmatpush2.xpose.msra.mxu0 0.0
        %2601 = vmatprep.subr.mxu0 0.0
        %2602 = vmatpush2.xpose.msra.mxu0 0.0
        %2603 = vmatprep.subr.mxu0 0.0
        %2604 = vmatpush2.xpose.msra.mxu0 0.0
        %2605 = vmatprep.subr.mxu0 0.0
        %2606 = vmatpush2.xpose.msra.mxu0 0.0
        %2607 = vmatprep.subr.mxu0 0.0
        %2608 = vmatpush2.xpose.msra.mxu0 0.0
        %2609 = vmatprep.subr.mxu0 0.0
        %2610 = vmatpush2.xpose.msra.mxu0 0.0
        %2611 = vmatprep.subr.mxu0 0.0
        %2612 = vmatpush2.xpose.msra.mxu0 0.0
        %2613 = vmatprep.subr.mxu0 0.0
        %2614 = vmatpush2.xpose.msra.mxu0 0.0
        %2615 = vmatprep.subr.mxu0 0.0
        %2616 = vmatpush2.xpose.msra.mxu0 0.0
        %2617 = vmatprep.subr.mxu0 0.0
        %2618 = vmatpush2.xpose.msra.mxu0 0.0
        %2619 = vmatprep.subr.mxu0 0.0
        %2620 = vmatpush2.xpose.msra.mxu0 0.0
        %2621 = vmatprep.subr.mxu0 0.0
        %2622 = vmatpush2.xpose.msra.mxu0 0.0
        %2623 = vmatprep.mubr.f32.mxu0 0.0
        %2624 = vmatmul.mubr.f32.gmra.mxu0 %v2555
        %v2625 = vpop.f32.mrf.mxu0
        %v2626 = vadd.f32 0.0, %v2625
        %v2627 = vpop.f32.mrf.mxu0
        %2628 = vdwg.mxu0
        %v2629 = vmul.f32 %v2626, 0.35355338
        %v2630 = vsel %vm1295, %v2629, -inf
        %2631 = vmax.xlane.f32.xlu0 %v2630
        %v2632 = vpop.xlane.xlu0 %2631
        %v2633 = vsub.f32 %v2629, %v2632
        %v2634 = vmul.f32 %v2633, 1.442695
        %v2635 = vpow.pop %v2634
        %v2636 = vsel %vm1295, %v2635, 0.0
        %2637 = vadd.xlane.f32.xlu0 %v2636
        %v2638 = vpop.xlane.xlu0 %2637
        %v2639 = vrcp.pop %v2638
        %v2640 = vmul.f32 %v2635, %v2639
        %2641 = vrot.lane.b32.xlu0 %v2382, 56
        %v2642 = vpop.permute.xlu0 %2641
        %v2645 = vsel %vm1295, %v2640, 0
        %2647 = vmatprep.subr.mxu0 0.0
        %2648 = vmatpush1.msra.mxu0 0.0
        %2649 = vmatprep.subr.mxu0 0.0
        %2650 = vmatpush1.msra.mxu0 0.0
        %2651 = vmatprep.subr.mxu0 0.0
        %2652 = vmatpush1.msra.mxu0 0.0
        %2653 = vmatprep.subr.mxu0 0.0
        %2654 = vmatpush1.msra.mxu0 0.0
        %2655 = vmatprep.subr.mxu0 0.0
        %2656 = vmatpush1.msra.mxu0 0.0
        %2657 = vmatprep.subr.mxu0 0.0
        %2658 = vmatpush1.msra.mxu0 0.0
        %2659 = vmatprep.subr.mxu0 0.0
        %2660 = vmatpush1.msra.mxu0 0.0
        %2661 = vmatprep.subr.mxu0 0.0
        %2662 = vmatpush1.msra.mxu0 0.0
        %2663 = vmatprep.subr.mxu0 0.0
        %2664 = vmatpush1.msra.mxu0 0.0
        %2665 = vmatprep.subr.mxu0 0.0
        %2666 = vmatpush1.msra.mxu0 0.0
        %2667 = vmatprep.subr.mxu0 0.0
        %2668 = vmatpush1.msra.mxu0 0.0
        %2669 = vmatprep.subr.mxu0 0.0
        %2670 = vmatpush1.msra.mxu0 0.0
        %2671 = vmatprep.subr.mxu0 0.0
        %2672 = vmatpush1.msra.mxu0 0.0
        %2673 = vmatprep.subr.mxu0 0.0
        %2674 = vmatpush1.msra.mxu0 0.0
        %2675 = vmatprep.subr.mxu0 0.0
        %2676 = vmatpush1.msra.mxu0 0.0
        %2677 = vmatprep.subr.mxu0 0.0
        %2678 = vmatpush1.msra.mxu0 %v2642
        %2679 = vmatprep.subr.mxu0 0.0
        %2680 = vmatpush2.msra.mxu0 0.0
        %2681 = vmatprep.subr.mxu0 0.0
        %2682 = vmatpush2.msra.mxu0 0.0
        %2683 = vmatprep.subr.mxu0 0.0
        %2684 = vmatpush2.msra.mxu0 0.0
        %2685 = vmatprep.subr.mxu0 0.0
        %2686 = vmatpush2.msra.mxu0 0.0
        %2687 = vmatprep.subr.mxu0 0.0
        %2688 = vmatpush2.msra.mxu0 0.0
        %2689 = vmatprep.subr.mxu0 0.0
        %2690 = vmatpush2.msra.mxu0 0.0
        %2691 = vmatprep.subr.mxu0 0.0
        %2692 = vmatpush2.msra.mxu0 0.0
        %2693 = vmatprep.subr.mxu0 0.0
        %2694 = vmatpush2.msra.mxu0 0.0
        %2695 = vmatprep.subr.mxu0 0.0
        %2696 = vmatpush2.msra.mxu0 0.0
        %2697 = vmatprep.subr.mxu0 0.0
        %2698 = vmatpush2.msra.mxu0 0.0
        %2699 = vmatprep.subr.mxu0 0.0
        %2700 = vmatpush2.msra.mxu0 0.0
        %2701 = vmatprep.subr.mxu0 0.0
        %2702 = vmatpush2.msra.mxu0 0.0
        %2703 = vmatprep.subr.mxu0 0.0
        %2704 = vmatpush2.msra.mxu0 0.0
        %2705 = vmatprep.subr.mxu0 0.0
        %2706 = vmatpush2.msra.mxu0 0.0
        %2707 = vmatprep.subr.mxu0 0.0
        %2708 = vmatpush2.msra.mxu0 0.0
        %2709 = vmatprep.subr.mxu0 0.0
        %2710 = vmatpush2.msra.mxu0 0.0
        %2711 = vmatprep.mubr.f32.mxu0 0.0
        %2712 = vmatmul.mubr.f32.gmra.mxu0 %v2645
        %v2713 = vpop.f32.mrf.mxu0
        %v2714 = vadd.f32 0.0, %v2713
        %v2715 = vpop.f32.mrf.mxu0
        %2716 = vdwg.mxu0
        %2718 = vrot.lane.b32.xlu0 %v2714, 8
        %v2719 = vpop.permute.xlu0 %2718
        %2721 = vst.msk [vmem:[#allocation2] sm:$0xff] %vm1631, %v2719
        %2722 = vrot.lane.b32.xlu0 %v2364, 112
        %v2723 = vpop.permute.xlu0 %2722
        %2724 = vrot.lane.b32.xlu0 %v2373, 80
        %v2725 = vpop.permute.xlu0 %2724
        %v2726 = vsel %vm1295, %v2723, 0
        %v2728 = vsel %vm1295, %v2725, 0
        %2730 = vmatprep.subr.mxu0 0.0
        %2731 = vmatpush1.xpose.msra.mxu0 0.0
        %2732 = vmatprep.subr.mxu0 0.0
        %2733 = vmatpush1.xpose.msra.mxu0 0.0
        %2734 = vmatprep.subr.mxu0 0.0
        %2735 = vmatpush1.xpose.msra.mxu0 0.0
        %2736 = vmatprep.subr.mxu0 0.0
        %2737 = vmatpush1.xpose.msra.mxu0 0.0
        %2738 = vmatprep.subr.mxu0 0.0
        %2739 = vmatpush1.xpose.msra.mxu0 0.0
        %2740 = vmatprep.subr.mxu0 0.0
        %2741 = vmatpush1.xpose.msra.mxu0 0.0
        %2742 = vmatprep.subr.mxu0 0.0
        %2743 = vmatpush1.xpose.msra.mxu0 0.0
        %2744 = vmatprep.subr.mxu0 0.0
        %2745 = vmatpush1.xpose.msra.mxu0 0.0
        %2746 = vmatprep.subr.mxu0 0.0
        %2747 = vmatpush1.xpose.msra.mxu0 0.0
        %2748 = vmatprep.subr.mxu0 0.0
        %2749 = vmatpush1.xpose.msra.mxu0 0.0
        %2750 = vmatprep.subr.mxu0 0.0
        %2751 = vmatpush1.xpose.msra.mxu0 0.0
        %2752 = vmatprep.subr.mxu0 0.0
        %2753 = vmatpush1.xpose.msra.mxu0 0.0
        %2754 = vmatprep.subr.mxu0 0.0
        %2755 = vmatpush1.xpose.msra.mxu0 0.0
        %2756 = vmatprep.subr.mxu0 0.0
        %2757 = vmatpush1.xpose.msra.mxu0 0.0
        %2758 = vmatprep.subr.mxu0 0.0
        %2759 = vmatpush1.xpose.msra.mxu0 0.0
        %2760 = vmatprep.subr.mxu0 0.0
        %2761 = vmatpush1.xpose.msra.mxu0 %v2728
        %2762 = vmatprep.subr.mxu0 0.0
        %2763 = vmatpush2.xpose.msra.mxu0 0.0
        %2764 = vmatprep.subr.mxu0 0.0
        %2765 = vmatpush2.xpose.msra.mxu0 0.0
        %2766 = vmatprep.subr.mxu0 0.0
        %2767 = vmatpush2.xpose.msra.mxu0 0.0
        %2768 = vmatprep.subr.mxu0 0.0
        %2769 = vmatpush2.xpose.msra.mxu0 0.0
        %2770 = vmatprep.subr.mxu0 0.0
        %2771 = vmatpush2.xpose.msra.mxu0 0.0
        %2772 = vmatprep.subr.mxu0 0.0
        %2773 = vmatpush2.xpose.msra.mxu0 0.0
        %2774 = vmatprep.subr.mxu0 0.0
        %2775 = vmatpush2.xpose.msra.mxu0 0.0
        %2776 = vmatprep.subr.mxu0 0.0
        %2777 = vmatpush2.xpose.msra.mxu0 0.0
        %2778 = vmatprep.subr.mxu0 0.0
        %2779 = vmatpush2.xpose.msra.mxu0 0.0
        %2780 = vmatprep.subr.mxu0 0.0
        %2781 = vmatpush2.xpose.msra.mxu0 0.0
        %2782 = vmatprep.subr.mxu0 0.0
        %2783 = vmatpush2.xpose.msra.mxu0 0.0
        %2784 = vmatprep.subr.mxu0 0.0
        %2785 = vmatpush2.xpose.msra.mxu0 0.0
        %2786 = vmatprep.subr.mxu0 0.0
        %2787 = vmatpush2.xpose.msra.mxu0 0.0
        %2788 = vmatprep.subr.mxu0 0.0
        %2789 = vmatpush2.xpose.msra.mxu0 0.0
        %2790 = vmatprep.subr.mxu0 0.0
        %2791 = vmatpush2.xpose.msra.mxu0 0.0
        %2792 = vmatprep.subr.mxu0 0.0
        %2793 = vmatpush2.xpose.msra.mxu0 0.0
        %2794 = vmatprep.mubr.f32.mxu0 0.0
        %2795 = vmatmul.mubr.f32.gmra.mxu0 %v2726
        %v2796 = vpop.f32.mrf.mxu0
        %v2797 = vadd.f32 0.0, %v2796
        %v2798 = vpop.f32.mrf.mxu0
        %2799 = vdwg.mxu0
        %v2800 = vmul.f32 %v2797, 0.35355338
        %v2801 = vsel %vm1295, %v2800, -inf
        %2802 = vmax.xlane.f32.xlu0 %v2801
        %v2803 = vpop.xlane.xlu0 %2802
        %v2804 = vsub.f32 %v2800, %v2803
        %v2805 = vmul.f32 %v2804, 1.442695
        %v2806 = vpow.pop %v2805
        %v2807 = vsel %vm1295, %v2806, 0.0
        %2808 = vadd.xlane.f32.xlu0 %v2807
        %v2809 = vpop.xlane.xlu0 %2808
        %v2810 = vrcp.pop %v2809
        %v2811 = vmul.f32 %v2806, %v2810
        %2812 = vrot.lane.b32.xlu0 %v2382, 48
        %v2813 = vpop.permute.xlu0 %2812
        %v2816 = vsel %vm1295, %v2811, 0
        %2818 = vmatprep.subr.mxu0 0.0
        %2819 = vmatpush1.msra.mxu0 0.0
        %2820 = vmatprep.subr.mxu0 0.0
        %2821 = vmatpush1.msra.mxu0 0.0
        %2822 = vmatprep.subr.mxu0 0.0
        %2823 = vmatpush1.msra.mxu0 0.0
        %2824 = vmatprep.subr.mxu0 0.0
        %2825 = vmatpush1.msra.mxu0 0.0
        %2826 = vmatprep.subr.mxu0 0.0
        %2827 = vmatpush1.msra.mxu0 0.0
        %2828 = vmatprep.subr.mxu0 0.0
        %2829 = vmatpush1.msra.mxu0 0.0
        %2830 = vmatprep.subr.mxu0 0.0
        %2831 = vmatpush1.msra.mxu0 0.0
        %2832 = vmatprep.subr.mxu0 0.0
        %2833 = vmatpush1.msra.mxu0 0.0
        %2834 = vmatprep.subr.mxu0 0.0
        %2835 = vmatpush1.msra.mxu0 0.0
        %2836 = vmatprep.subr.mxu0 0.0
        %2837 = vmatpush1.msra.mxu0 0.0
        %2838 = vmatprep.subr.mxu0 0.0
        %2839 = vmatpush1.msra.mxu0 0.0
        %2840 = vmatprep.subr.mxu0 0.0
        %2841 = vmatpush1.msra.mxu0 0.0
        %2842 = vmatprep.subr.mxu0 0.0
        %2843 = vmatpush1.msra.mxu0 0.0
        %2844 = vmatprep.subr.mxu0 0.0
        %2845 = vmatpush1.msra.mxu0 0.0
        %2846 = vmatprep.subr.mxu0 0.0
        %2847 = vmatpush1.msra.mxu0 0.0
        %2848 = vmatprep.subr.mxu0 0.0
        %2849 = vmatpush1.msra.mxu0 %v2813
        %2850 = vmatprep.subr.mxu0 0.0
        %2851 = vmatpush2.msra.mxu0 0.0
        %2852 = vmatprep.subr.mxu0 0.0
        %2853 = vmatpush2.msra.mxu0 0.0
        %2854 = vmatprep.subr.mxu0 0.0
        %2855 = vmatpush2.msra.mxu0 0.0
        %2856 = vmatprep.subr.mxu0 0.0
        %2857 = vmatpush2.msra.mxu0 0.0
        %2858 = vmatprep.subr.mxu0 0.0
        %2859 = vmatpush2.msra.mxu0 0.0
        %2860 = vmatprep.subr.mxu0 0.0
        %2861 = vmatpush2.msra.mxu0 0.0
        %2862 = vmatprep.subr.mxu0 0.0
        %2863 = vmatpush2.msra.mxu0 0.0
        %2864 = vmatprep.subr.mxu0 0.0
        %2865 = vmatpush2.msra.mxu0 0.0
        %2866 = vmatprep.subr.mxu0 0.0
        %2867 = vmatpush2.msra.mxu0 0.0
        %2868 = vmatprep.subr.mxu0 0.0
        %2869 = vmatpush2.msra.mxu0 0.0
        %2870 = vmatprep.subr.mxu0 0.0
        %2871 = vmatpush2.msra.mxu0 0.0
        %2872 = vmatprep.subr.mxu0 0.0
        %2873 = vmatpush2.msra.mxu0 0.0
        %2874 = vmatprep.subr.mxu0 0.0
        %2875 = vmatpush2.msra.mxu0 0.0
        %2876 = vmatprep.subr.mxu0 0.0
        %2877 = vmatpush2.msra.mxu0 0.0
        %2878 = vmatprep.subr.mxu0 0.0
        %2879 = vmatpush2.msra.mxu0 0.0
        %2880 = vmatprep.subr.mxu0 0.0
        %2881 = vmatpush2.msra.mxu0 0.0
        %2882 = vmatprep.mubr.f32.mxu0 0.0
        %2883 = vmatmul.mubr.f32.gmra.mxu0 %v2816
        %v2884 = vpop.f32.mrf.mxu0
        %v2885 = vadd.f32 0.0, %v2884
        %v2886 = vpop.f32.mrf.mxu0
        %2887 = vdwg.mxu0
        %2889 = vrot.lane.b32.xlu0 %v2885, 16
        %v2890 = vpop.permute.xlu0 %2889
        %2892 = vst.msk [vmem:[#allocation2] sm:$0xff] %vm1803, %v2890
        %2893 = vrot.lane.b32.xlu0 %v2364, 104
        %v2894 = vpop.permute.xlu0 %2893
        %2895 = vrot.lane.b32.xlu0 %v2373, 72
        %v2896 = vpop.permute.xlu0 %2895
        %v2897 = vsel %vm1295, %v2894, 0
        %v2899 = vsel %vm1295, %v2896, 0
        %2901 = vmatprep.subr.mxu0 0.0
        %2902 = vmatpush1.xpose.msra.mxu0 0.0
        %2903 = vmatprep.subr.mxu0 0.0
        %2904 = vmatpush1.xpose.msra.mxu0 0.0
        %2905 = vmatprep.subr.mxu0 0.0
        %2906 = vmatpush1.xpose.msra.mxu0 0.0
        %2907 = vmatprep.subr.mxu0 0.0
        %2908 = vmatpush1.xpose.msra.mxu0 0.0
        %2909 = vmatprep.subr.mxu0 0.0
        %2910 = vmatpush1.xpose.msra.mxu0 0.0
        %2911 = vmatprep.subr.mxu0 0.0
        %2912 = vmatpush1.xpose.msra.mxu0 0.0
        %2913 = vmatprep.subr.mxu0 0.0
        %2914 = vmatpush1.xpose.msra.mxu0 0.0
        %2915 = vmatprep.subr.mxu0 0.0
        %2916 = vmatpush1.xpose.msra.mxu0 0.0
        %2917 = vmatprep.subr.mxu0 0.0
        %2918 = vmatpush1.xpose.msra.mxu0 0.0
        %2919 = vmatprep.subr.mxu0 0.0
        %2920 = vmatpush1.xpose.msra.mxu0 0.0
        %2921 = vmatprep.subr.mxu0 0.0
        %2922 = vmatpush1.xpose.msra.mxu0 0.0
        %2923 = vmatprep.subr.mxu0 0.0
        %2924 = vmatpush1.xpose.msra.mxu0 0.0
        %2925 = vmatprep.subr.mxu0 0.0
        %2926 = vmatpush1.xpose.msra.mxu0 0.0
        %2927 = vmatprep.subr.mxu0 0.0
        %2928 = vmatpush1.xpose.msra.mxu0 0.0
        %2929 = vmatprep.subr.mxu0 0.0
        %2930 = vmatpush1.xpose.msra.mxu0 0.0
        %2931 = vmatprep.subr.mxu0 0.0
        %2932 = vmatpush1.xpose.msra.mxu0 %v2899
        %2933 = vmatprep.subr.mxu0 0.0
        %2934 = vmatpush2.xpose.msra.mxu0 0.0
        %2935 = vmatprep.subr.mxu0 0.0
        %2936 = vmatpush2.xpose.msra.mxu0 0.0
        %2937 = vmatprep.subr.mxu0 0.0
        %2938 = vmatpush2.xpose.msra.mxu0 0.0
        %2939 = vmatprep.subr.mxu0 0.0
        %2940 = vmatpush2.xpose.msra.mxu0 0.0
        %2941 = vmatprep.subr.mxu0 0.0
        %2942 = vmatpush2.xpose.msra.mxu0 0.0
        %2943 = vmatprep.subr.mxu0 0.0
        %2944 = vmatpush2.xpose.msra.mxu0 0.0
        %2945 = vmatprep.subr.mxu0 0.0
        %2946 = vmatpush2.xpose.msra.mxu0 0.0
        %2947 = vmatprep.subr.mxu0 0.0
        %2948 = vmatpush2.xpose.msra.mxu0 0.0
        %2949 = vmatprep.subr.mxu0 0.0
        %2950 = vmatpush2.xpose.msra.mxu0 0.0
        %2951 = vmatprep.subr.mxu0 0.0
        %2952 = vmatpush2.xpose.msra.mxu0 0.0
        %2953 = vmatprep.subr.mxu0 0.0
        %2954 = vmatpush2.xpose.msra.mxu0 0.0
        %2955 = vmatprep.subr.mxu0 0.0
        %2956 = vmatpush2.xpose.msra.mxu0 0.0
        %2957 = vmatprep.subr.mxu0 0.0
        %2958 = vmatpush2.xpose.msra.mxu0 0.0
        %2959 = vmatprep.subr.mxu0 0.0
        %2960 = vmatpush2.xpose.msra.mxu0 0.0
        %2961 = vmatprep.subr.mxu0 0.0
        %2962 = vmatpush2.xpose.msra.mxu0 0.0
        %2963 = vmatprep.subr.mxu0 0.0
        %2964 = vmatpush2.xpose.msra.mxu0 0.0
        %2965 = vmatprep.mubr.f32.mxu0 0.0
        %2966 = vmatmul.mubr.f32.gmra.mxu0 %v2897
        %v2967 = vpop.f32.mrf.mxu0
        %v2968 = vadd.f32 0.0, %v2967
        %v2969 = vpop.f32.mrf.mxu0
        %2970 = vdwg.mxu0
        %v2971 = vmul.f32 %v2968, 0.35355338
        %v2972 = vsel %vm1295, %v2971, -inf
        %2973 = vmax.xlane.f32.xlu0 %v2972
        %v2974 = vpop.xlane.xlu0 %2973
        %v2975 = vsub.f32 %v2971, %v2974
        %v2976 = vmul.f32 %v2975, 1.442695
        %v2977 = vpow.pop %v2976
        %v2978 = vsel %vm1295, %v2977, 0.0
        %2979 = vadd.xlane.f32.xlu0 %v2978
        %v2980 = vpop.xlane.xlu0 %2979
        %v2981 = vrcp.pop %v2980
        %v2982 = vmul.f32 %v2977, %v2981
        %2983 = vrot.lane.b32.xlu0 %v2382, 40
        %v2984 = vpop.permute.xlu0 %2983
        %v2987 = vsel %vm1295, %v2982, 0
        %2989 = vmatprep.subr.mxu0 0.0
        %2990 = vmatpush1.msra.mxu0 0.0
        %2991 = vmatprep.subr.mxu0 0.0
        %2992 = vmatpush1.msra.mxu0 0.0
        %2993 = vmatprep.subr.mxu0 0.0
        %2994 = vmatpush1.msra.mxu0 0.0
        %2995 = vmatprep.subr.mxu0 0.0
        %2996 = vmatpush1.msra.mxu0 0.0
        %2997 = vmatprep.subr.mxu0 0.0
        %2998 = vmatpush1.msra.mxu0 0.0
        %2999 = vmatprep.subr.mxu0 0.0
        %3000 = vmatpush1.msra.mxu0 0.0
        %3001 = vmatprep.subr.mxu0 0.0
        %3002 = vmatpush1.msra.mxu0 0.0
        %3003 = vmatprep.subr.mxu0 0.0
        %3004 = vmatpush1.msra.mxu0 0.0
        %3005 = vmatprep.subr.mxu0 0.0
        %3006 = vmatpush1.msra.mxu0 0.0
        %3007 = vmatprep.subr.mxu0 0.0
        %3008 = vmatpush1.msra.mxu0 0.0
        %3009 = vmatprep.subr.mxu0 0.0
        %3010 = vmatpush1.msra.mxu0 0.0
        %3011 = vmatprep.subr.mxu0 0.0
        %3012 = vmatpush1.msra.mxu0 0.0
        %3013 = vmatprep.subr.mxu0 0.0
        %3014 = vmatpush1.msra.mxu0 0.0
        %3015 = vmatprep.subr.mxu0 0.0
        %3016 = vmatpush1.msra.mxu0 0.0
        %3017 = vmatprep.subr.mxu0 0.0
        %3018 = vmatpush1.msra.mxu0 0.0
        %3019 = vmatprep.subr.mxu0 0.0
        %3020 = vmatpush1.msra.mxu0 %v2984
        %3021 = vmatprep.subr.mxu0 0.0
        %3022 = vmatpush2.msra.mxu0 0.0
        %3023 = vmatprep.subr.mxu0 0.0
        %3024 = vmatpush2.msra.mxu0 0.0
        %3025 = vmatprep.subr.mxu0 0.0
        %3026 = vmatpush2.msra.mxu0 0.0
        %3027 = vmatprep.subr.mxu0 0.0
        %3028 = vmatpush2.msra.mxu0 0.0
        %3029 = vmatprep.subr.mxu0 0.0
        %3030 = vmatpush2.msra.mxu0 0.0
        %3031 = vmatprep.subr.mxu0 0.0
        %3032 = vmatpush2.msra.mxu0 0.0
        %3033 = vmatprep.subr.mxu0 0.0
        %3034 = vmatpush2.msra.mxu0 0.0
        %3035 = vmatprep.subr.mxu0 0.0
        %3036 = vmatpush2.msra.mxu0 0.0
        %3037 = vmatprep.subr.mxu0 0.0
        %3038 = vmatpush2.msra.mxu0 0.0
        %3039 = vmatprep.subr.mxu0 0.0
        %3040 = vmatpush2.msra.mxu0 0.0
        %3041 = vmatprep.subr.mxu0 0.0
        %3042 = vmatpush2.msra.mxu0 0.0
        %3043 = vmatprep.subr.mxu0 0.0
        %3044 = vmatpush2.msra.mxu0 0.0
        %3045 = vmatprep.subr.mxu0 0.0
        %3046 = vmatpush2.msra.mxu0 0.0
        %3047 = vmatprep.subr.mxu0 0.0
        %3048 = vmatpush2.msra.mxu0 0.0
        %3049 = vmatprep.subr.mxu0 0.0
        %3050 = vmatpush2.msra.mxu0 0.0
        %3051 = vmatprep.subr.mxu0 0.0
        %3052 = vmatpush2.msra.mxu0 0.0
        %3053 = vmatprep.mubr.f32.mxu0 0.0
        %3054 = vmatmul.mubr.f32.gmra.mxu0 %v2987
        %v3055 = vpop.f32.mrf.mxu0
        %v3056 = vadd.f32 0.0, %v3055
        %v3057 = vpop.f32.mrf.mxu0
        %3058 = vdwg.mxu0
        %3060 = vrot.lane.b32.xlu0 %v3056, 24
        %v3061 = vpop.permute.xlu0 %3060
        %3063 = vst.msk [vmem:[#allocation2] sm:$0xff] %vm1975, %v3061
        %v3064 = vld [vmem:[#allocation2] sm:$0xff]
        %v3065 = vlaneseq
        %v3066 = vshrl.u32 %v3065, 7
        %v3067 = vsub.s32 3, %v3066
        %v3068 = vrot.slane %v2286, %v3067
        %v3070 = vsel %vm528, %v3064, 0
        %3072 = vmatprep.subr.mxu0 0.0
        %3073 = vmatpush1.msra.mxu0 0.0
        %3074 = vmatprep.subr.mxu0 0.0
        %3075 = vmatpush1.msra.mxu0 0.0
        %3076 = vmatprep.subr.mxu0 0.0
        %3077 = vmatpush1.msra.mxu0 0.0
        %3078 = vmatprep.subr.mxu0 0.0
        %3079 = vmatpush1.msra.mxu0 0.0
        %3080 = vmatprep.subr.mxu0 0.0
        %3081 = vmatpush1.msra.mxu0 0.0
        %3082 = vmatprep.subr.mxu0 0.0
        %3083 = vmatpush1.msra.mxu0 0.0
        %3084 = vmatprep.subr.mxu0 0.0
        %3085 = vmatpush1.msra.mxu0 0.0
        %3086 = vmatprep.subr.mxu0 0.0
        %3087 = vmatpush1.msra.mxu0 0.0
        %3088 = vmatprep.subr.mxu0 0.0
        %3089 = vmatpush1.msra.mxu0 0.0
        %3090 = vmatprep.subr.mxu0 0.0
        %3091 = vmatpush1.msra.mxu0 0.0
        %3092 = vmatprep.subr.mxu0 0.0
        %3093 = vmatpush1.msra.mxu0 0.0
        %3094 = vmatprep.subr.mxu0 0.0
        %3095 = vmatpush1.msra.mxu0 0.0
        %3096 = vmatprep.subr.mxu0 0.0
        %3097 = vmatpush1.msra.mxu0 %v2270
        %3098 = vmatprep.subr.mxu0 0.0
        %3099 = vmatpush1.msra.mxu0 %v2269
        %3100 = vmatprep.subr.mxu0 0.0
        %3101 = vmatpush1.msra.mxu0 %v2268
        %3102 = vmatprep.subr.mxu0 0.0
        %3103 = vmatpush1.msra.mxu0 %v2267
        %3104 = vmatprep.subr.mxu0 0.0
        %3105 = vmatpush2.msra.mxu0 0.0
        %3106 = vmatprep.subr.mxu0 0.0
        %3107 = vmatpush2.msra.mxu0 0.0
        %3108 = vmatprep.subr.mxu0 0.0
        %3109 = vmatpush2.msra.mxu0 0.0
        %3110 = vmatprep.subr.mxu0 0.0
        %3111 = vmatpush2.msra.mxu0 0.0
        %3112 = vmatprep.subr.mxu0 0.0
        %3113 = vmatpush2.msra.mxu0 0.0
        %3114 = vmatprep.subr.mxu0 0.0
        %3115 = vmatpush2.msra.mxu0 0.0
        %3116 = vmatprep.subr.mxu0 0.0
        %3117 = vmatpush2.msra.mxu0 0.0
        %3118 = vmatprep.subr.mxu0 0.0
        %3119 = vmatpush2.msra.mxu0 0.0
        %3120 = vmatprep.subr.mxu0 0.0
        %3121 = vmatpush2.msra.mxu0 0.0
        %3122 = vmatprep.subr.mxu0 0.0
        %3123 = vmatpush2.msra.mxu0 0.0
        %3124 = vmatprep.subr.mxu0 0.0
        %3125 = vmatpush2.msra.mxu0 0.0
        %3126 = vmatprep.subr.mxu0 0.0
        %3127 = vmatpush2.msra.mxu0 0.0
        %3128 = vmatprep.subr.mxu0 0.0
        %3129 = vmatpush2.msra.mxu0 0.0
        %3130 = vmatprep.subr.mxu0 0.0
        %3131 = vmatpush2.msra.mxu0 0.0
        %3132 = vmatprep.subr.mxu0 0.0
        %3133 = vmatpush2.msra.mxu0 0.0
        %3134 = vmatprep.subr.mxu0 0.0
        %3135 = vmatpush2.msra.mxu0 0.0
        %3136 = vmatprep.mubr.f32.mxu0 0.0
        %3137 = vmatmul.mubr.f32.gmra.mxu0 %v3070
        %v3138 = vpop.f32.mrf.mxu0
        %v3139 = vadd.f32 %v3068, %v3138
        %v3140 = vpop.f32.mrf.mxu0
        %3141 = vdwg.mxu0
        %v3142 = vadd.f32 %v3139, %v2260
        %v3143 = vsel %vm528, %v3142, 0.0
        %3144 = vadd.xlane.f32.xlu0 %v3143
        %v3145 = vpop.xlane.xlu0 %3144
        %v3146 = vmul.f32 %v3145, %v971
        %v3147 = vsub.f32 %v3142, %v3146
        %v3148 = vmul.f32 %v3147, %v3147
        %v3149 = vsel %vm528, %v3148, 0.0
        %3150 = vadd.xlane.f32.xlu0 %v3149
        %v3151 = vpop.xlane.xlu0 %3150
        %v3152 = vmul.f32 %v3151, %v971
        %v3153 = vadd.f32 %v3152, 1e-05
        %v3154 = vrsqrt.pop %v3153
        %v3155 = vmul.f32 %v3147, %v3154
        %v3156 = vlaneseq
        %v3157 = vshrl.u32 %v3156, 7
        %v3158 = vsub.s32 4, %v3157
        %v3159 = vrot.slane %v2286, %v3158
        %v3160 = vmul.f32 %v3155, %v3159
        %v3161 = vlaneseq
        %v3162 = vshrl.u32 %v3161, 7
        %v3163 = vsub.s32 5, %v3162
        %v3164 = vrot.slane %v2286, %v3163
        %v3165 = vadd.f32 %v3160, %v3164
        %v3166 = vlaneseq
        %v3167 = vshrl.u32 %v3166, 7
        %v3168 = vsub.s32 6, %v3167
        %v3169 = vrot.slane %v2286, %v3168
        %v3171 = vsel %vm528, %v3165, 0
        %3173 = vmatprep.subr.mxu0 0.0
        %3174 = vmatpush1.msra.mxu0 0.0
        %3175 = vmatprep.subr.mxu0 0.0
        %3176 = vmatpush1.msra.mxu0 0.0
        %3177 = vmatprep.subr.mxu0 0.0
        %3178 = vmatpush1.msra.mxu0 0.0
        %3179 = vmatprep.subr.mxu0 0.0
        %3180 = vmatpush1.msra.mxu0 0.0
        %3181 = vmatprep.subr.mxu0 0.0
        %3182 = vmatpush1.msra.mxu0 0.0
        %3183 = vmatprep.subr.mxu0 0.0
        %3184 = vmatpush1.msra.mxu0 0.0
        %3185 = vmatprep.subr.mxu0 0.0
        %3186 = vmatpush1.msra.mxu0 0.0
        %3187 = vmatprep.subr.mxu0 0.0
        %3188 = vmatpush1.msra.mxu0 0.0
        %3189 = vmatprep.subr.mxu0 0.0
        %3190 = vmatpush1.msra.mxu0 0.0
        %3191 = vmatprep.subr.mxu0 0.0
        %3192 = vmatpush1.msra.mxu0 0.0
        %3193 = vmatprep.subr.mxu0 0.0
        %3194 = vmatpush1.msra.mxu0 0.0
        %3195 = vmatprep.subr.mxu0 0.0
        %3196 = vmatpush1.msra.mxu0 0.0
        %3197 = vmatprep.subr.mxu0 0.0
        %3198 = vmatpush1.msra.mxu0 %v2275
        %3199 = vmatprep.subr.mxu0 0.0
        %3200 = vmatpush1.msra.mxu0 %v2274
        %3201 = vmatprep.subr.mxu0 0.0
        %3202 = vmatpush1.msra.mxu0 %v2273
        %3203 = vmatprep.subr.mxu0 0.0
        %3204 = vmatpush1.msra.mxu0 %v2272
        %3205 = vmatprep.subr.mxu0 0.0
        %3206 = vmatpush2.msra.mxu0 0.0
        %3207 = vmatprep.subr.mxu0 0.0
        %3208 = vmatpush2.msra.mxu0 0.0
        %3209 = vmatprep.subr.mxu0 0.0
        %3210 = vmatpush2.msra.mxu0 0.0
        %3211 = vmatprep.subr.mxu0 0.0
        %3212 = vmatpush2.msra.mxu0 0.0
        %3213 = vmatprep.subr.mxu0 0.0
        %3214 = vmatpush2.msra.mxu0 0.0
        %3215 = vmatprep.subr.mxu0 0.0
        %3216 = vmatpush2.msra.mxu0 0.0
        %3217 = vmatprep.subr.mxu0 0.0
        %3218 = vmatpush2.msra.mxu0 0.0
        %3219 = vmatprep.subr.mxu0 0.0
        %3220 = vmatpush2.msra.mxu0 0.0
        %3221 = vmatprep.subr.mxu0 0.0
        %3222 = vmatpush2.msra.mxu0 0.0
        %3223 = vmatprep.subr.mxu0 0.0
        %3224 = vmatpush2.msra.mxu0 0.0
        %3225 = vmatprep.subr.mxu0 0.0
        %3226 = vmatpush2.msra.mxu0 0.0
        %3227 = vmatprep.subr.mxu0 0.0
        %3228 = vmatpush2.msra.mxu0 0.0
        %3229 = vmatprep.subr.mxu0 0.0
        %3230 = vmatpush2.msra.mxu0 0.0
        %3231 = vmatprep.subr.mxu0 0.0
        %3232 = vmatpush2.msra.mxu0 0.0
        %3233 = vmatprep.subr.mxu0 0.0
        %3234 = vmatpush2.msra.mxu0 0.0
        %3235 = vmatprep.subr.mxu0 0.0
        %3236 = vmatpush2.msra.mxu0 0.0
        %3237 = vmatprep.mubr.f32.mxu0 0.0
        %3238 = vmatmul.mubr.f32.gmra.mxu0 %v3171
        %v3239 = vpop.f32.mrf.mxu0
        %v3240 = vadd.f32 %v3169, %v3239
        %v3241 = vpop.f32.mrf.mxu0
        %3242 = vdwg.mxu0
        %v3243 = vmul.f32 %v3240, 0.5
        %v3244 = vmul.f32 %v3240, 0.70710677
        %v3245 = vand.u32 2147483647, %v3244
        %v3246 = vmul.f32 %v3245, 0.3275911
        %v3247 = vadd.f32 %v3246, 1.0
        %v3248 = vrcp.pop %v3247
        %v3249 = vmul.f32 1.0, %v3248
        %v3250 = vmul.f32 %v3249, 1.0614054
        %v3251 = vadd.f32 %v3250, -1.4531521
        %v3252 = vmul.f32 %v3251, %v3249
        %v3253 = vadd.f32 %v3252, 1.4214138
        %v3254 = vmul.f32 %v3253, %v3249
        %v3255 = vadd.f32 %v3254, -0.28449672
        %v3256 = vmul.f32 %v3255, %v3249
        %v3257 = vadd.f32 %v3256, 0.2548296
        %v3258 = vmul.f32 %v3257, %v3249
        %v3259 = vsub.f32 0.0, %v3245
        %v3260 = vmul.f32 %v3259, %v3245
        %v3261 = vmul.f32 %v3260, 1.442695
        %v3262 = vpow.pop %v3261
        %v3263 = vmul.f32 %v3258, %v3262
        %v3264 = vsub.f32 1.0, %v3263
        %vm3265 = vcmp.ge.f32.partialorder %v3244, 0.0
        %v3266 = vsub.f32 0.0, %v3264
        %v3267 = vsel %vm3265, %v3264, %v3266
        %v3268 = vadd.f32 %v3267, 1.0
        %v3269 = vmul.f32 %v3243, %v3268
        %v3270 = vlaneseq
        %v3271 = vshrl.u32 %v3270, 7
        %v3272 = vsub.s32 7, %v3271
        %v3273 = vrot.slane %v2286, %v3272
        %v3275 = vsel %vm1100, %v3269, 0
        %3277 = vmatprep.subr.mxu0 0.0
        %3278 = vmatpush1.msra.mxu0 0.0
        %3279 = vmatprep.subr.mxu0 0.0
        %3280 = vmatpush1.msra.mxu0 0.0
        %3281 = vmatprep.subr.mxu0 0.0
        %3282 = vmatpush1.msra.mxu0 0.0
        %3283 = vmatprep.subr.mxu0 0.0
        %3284 = vmatpush1.msra.mxu0 0.0
        %3285 = vmatprep.subr.mxu0 0.0
        %3286 = vmatpush1.msra.mxu0 0.0
        %3287 = vmatprep.subr.mxu0 0.0
        %3288 = vmatpush1.msra.mxu0 0.0
        %3289 = vmatprep.subr.mxu0 0.0
        %3290 = vmatpush1.msra.mxu0 0.0
        %3291 = vmatprep.subr.mxu0 0.0
        %3292 = vmatpush1.msra.mxu0 0.0
        %3293 = vmatprep.subr.mxu0 0.0
        %3294 = vmatpush1.msra.mxu0 %v2284
        %3295 = vmatprep.subr.mxu0 0.0
        %3296 = vmatpush1.msra.mxu0 %v2283
        %3297 = vmatprep.subr.mxu0 0.0
        %3298 = vmatpush1.msra.mxu0 %v2282
        %3299 = vmatprep.subr.mxu0 0.0
        %3300 = vmatpush1.msra.mxu0 %v2281
        %3301 = vmatprep.subr.mxu0 0.0
        %3302 = vmatpush1.msra.mxu0 %v2280
        %3303 = vmatprep.subr.mxu0 0.0
        %3304 = vmatpush1.msra.mxu0 %v2279
        %3305 = vmatprep.subr.mxu0 0.0
        %3306 = vmatpush1.msra.mxu0 %v2278
        %3307 = vmatprep.subr.mxu0 0.0
        %3308 = vmatpush1.msra.mxu0 %v2277
        %3309 = vmatprep.subr.mxu0 0.0
        %3310 = vmatpush2.msra.mxu0 0.0
        %3311 = vmatprep.subr.mxu0 0.0
        %3312 = vmatpush2.msra.mxu0 0.0
        %3313 = vmatprep.subr.mxu0 0.0
        %3314 = vmatpush2.msra.mxu0 0.0
        %3315 = vmatprep.subr.mxu0 0.0
        %3316 = vmatpush2.msra.mxu0 0.0
        %3317 = vmatprep.subr.mxu0 0.0
        %3318 = vmatpush2.msra.mxu0 0.0
        %3319 = vmatprep.subr.mxu0 0.0
        %3320 = vmatpush2.msra.mxu0 0.0
        %3321 = vmatprep.subr.mxu0 0.0
        %3322 = vmatpush2.msra.mxu0 0.0
        %3323 = vmatprep.subr.mxu0 0.0
        %3324 = vmatpush2.msra.mxu0 0.0
        %3325 = vmatprep.subr.mxu0 0.0
        %3326 = vmatpush2.msra.mxu0 0.0
        %3327 = vmatprep.subr.mxu0 0.0
        %3328 = vmatpush2.msra.mxu0 0.0
        %3329 = vmatprep.subr.mxu0 0.0
        %3330 = vmatpush2.msra.mxu0 0.0
        %3331 = vmatprep.subr.mxu0 0.0
        %3332 = vmatpush2.msra.mxu0 0.0
        %3333 = vmatprep.subr.mxu0 0.0
        %3334 = vmatpush2.msra.mxu0 0.0
        %3335 = vmatprep.subr.mxu0 0.0
        %3336 = vmatpush2.msra.mxu0 0.0
        %3337 = vmatprep.subr.mxu0 0.0
        %3338 = vmatpush2.msra.mxu0 0.0
        %3339 = vmatprep.subr.mxu0 0.0
        %3340 = vmatpush2.msra.mxu0 0.0
        %3341 = vmatprep.mubr.f32.mxu0 0.0
        %3342 = vmatmul.mubr.f32.gmra.mxu0 %v3275
        %v3343 = vpop.f32.mrf.mxu0
        %v3344 = vadd.f32 %v3273, %v3343
        %v3345 = vpop.f32.mrf.mxu0
        %3346 = vdwg.mxu0
        %v3347 = vadd.f32 %v3344, %v3142
        %3348 = vst.msk [vmem:[%s490] sm:$0xff] %vm528, %v3347
        %s3349 = sand.u32 %s299, 1
        %s3350 = scalar_lea.sflag [#allocation5], %s3349
        %s3351 = sand.u32 %s299, 1
        %s3352 = smul.addr %s3351, 8
        %s3353 = scalar_lea.vmem [#allocation12], %s3352
        // Predicated region
        $region89: #{tpu_custom_call.1} parent=67 // pred_check
          %p3354 = pneg %p309
        $region90: #{tpu_custom_call.1} parent=67 // pred_check_branch
          %3356 = sbr.rel (%p3354) target = $region92
        $region91: #{tpu_custom_call.1} parent=67 // pred_region
          %s3358 = ssub.s32 128, 128
          %3359 = vsyncadd %s3350, %s3358
          %s3360 = smul.addr %s29, 128
          %s3361 = scalar_lea.hbm %s12, %s3360
          %s3363 = sshll.u32 %s3353, 4
          %s3364 = int_to_ptr.vmem [resolvable:$true] %s3363
          %3366 = dma.vmem_to_hbm [thread:$0]  %s3364, 128, %s3361, %s3350
        $region92: #{tpu_custom_call.1} parent=67 // pred_fallthru
          _
      $region68: #{tpu_custom_call.1} parent=5 // pred_fallthru
        _
      %p3367 = scmp.le.s32.totalorder 2, %s24
      // Predicated region
      $region93: #{tpu_custom_call.1} parent=5 // pred_check
        %p3368 = pneg %p3367
      $region94: #{tpu_custom_call.1} parent=5 // pred_check_branch
        %3370 = sbr.rel (%p3368) target = $region96
      $region95: #{tpu_custom_call.1} parent=5 // pred_region
        %s3371 = ssub.s32 %s24, 2
        // Predicated region
        $region97: #{tpu_custom_call.1} parent=95 // pred_check
          %p3372 = pneg %p315
        $region98: #{tpu_custom_call.1} parent=95 // pred_check_branch
          %3374 = sbr.rel (%p3372) target = $region100
        $region99: #{tpu_custom_call.1} parent=95 // pred_region
          %s3375 = sand.u32 %s300, 1
          %s3376 = scalar_lea.sflag [#allocation5], %s3375
          %s3377 = sand.u32 %s300, 1
          %s3378 = smul.addr %s3377, 8
          %s3379 = scalar_lea.vmem [#allocation12], %s3378
          %3380 = dma.done %s3376, 128
        $region100: #{tpu_custom_call.1} parent=95 // pred_fallthru
          _
      $region96: #{tpu_custom_call.1} parent=5 // pred_fallthru
        _
    $region6: #{tpu_custom_call.1} parent=1 // loop_footer
      %s28 = sadd.s32 1, %s24
    $region7: #{tpu_custom_call.1} parent=1 // loop_footer_branch
      %23 = sbr.rel target = $region3
    $region8: #{tpu_custom_call.1} parent=1 // loop_exit
      _
    %3381 = vsyncpa [#allocation4], 1
    %s3382 = scalar_lea.sflag [#allocation4], 1
    %3383 = vsyncpa %s3382, 1
    %3384 = vsyncpa [#allocation7], 1
    %3385 = vsyncpa [#allocation10], 1
    %3386 = vsyncpa [#allocation5], 1
    %s3387 = scalar_lea.sflag [#allocation5], 1
    %3388 = vsyncpa %s3387, 1

</llo_original>
